<compile_context>
chip_gen: v7x
topology: tpu7x:2x2x1
jax: 0.10.0
libtpu: 0.0.40
codegen_flags: <defaults>
</compile_context>

<pallas_src>
import functools

import numpy as np
import jax
import jax.numpy as jnp
from jax.experimental import pallas as pl
from jax.experimental.pallas import tpu as pltpu


# ----------------------------------------------------------------------------
# Helpers
# ----------------------------------------------------------------------------
def _round_up(x, m):
    return ((x + m - 1) // m) * m


def _choose_row_tile(h, d):
    """Row-block size: a multiple of 2*d that divides H (prefer ~8 rows)."""
    step = 2 * d
    cands = [t for t in range(step, h + 1, step) if h % t == 0]
    if not cands:
        return h                      # fallback: one whole-H row block
    target = max(step, 8)
    small = [t for t in cands if t <= target]
    return max(small) if small else min(cands)


def _choose_k_tile(cin):
    """Cin reduction tile: multiple of 128 if possible, else full Cin."""
    for cand in (512, 256, 128):
        if cin % cand == 0 and cin > cand:
            return cand
    return cin


# ----------------------------------------------------------------------------
# Pallas kernel: fused 3x3 conv (9-tap accumulation) + folded-BN bias + ReLU
# ----------------------------------------------------------------------------
def _conv_bnr_kernel(x_ref, xh_ref, w_ref, b_ref, o_ref, acc_ref, *,
                     d, th, wo, tk, tn, kb):
    k = pl.program_id(3)

    @pl.when(k == 0)
    def _init():
        acc_ref[...] = jnp.zeros_like(acc_ref)

    # Assemble the (th + 2d, wo + 2d, tk) padded-input window for this row
    # block: th rows from the main view + 2d halo rows from the next-block view.
    x_main = x_ref[0, :, :, :]                  # (th,      wo + 2d, tk)
    x_halo = xh_ref[0, : 2 * d, :, :]           # (2d,      wo + 2d, tk)
    x_win = jnp.concatenate([x_main, x_halo], axis=0)

    m = th * wo
    contrib = None
    for kh in range(3):
        for kw in range(3):
            patch = x_win[kh * d: kh * d + th, kw * d: kw * d + wo, :]
            part = jnp.dot(patch.reshape(m, tk), w_ref[kh, kw, :, :],
                           preferred_element_type=jnp.float32)
            contrib = part if contrib is None else contrib + part
    acc_ref[...] = acc_ref[...] + contrib

    @pl.when(k == kb - 1)
    def _epilogue():
        y = acc_ref[...] + b_ref[...]           # folded BatchNorm bias
        y = jnp.maximum(y, 0.0)                 # ReLU
        o_ref[0, :, :, :] = y.reshape(th, wo, tn).astype(o_ref.dtype)


# ----------------------------------------------------------------------------
# Wrapper: ConvBNR forward (NCHW in / NCHW out), BN in eval mode (folded)
# ----------------------------------------------------------------------------
def conv_bnr_forward(x_nchw, weight_oihw, gamma, beta, run_mean, run_var,
                     eps=1e-5, dilation=1, out_dtype=jnp.float32):
    N, Cin, H, W = x_nchw.shape
    Cout, Cin_w, KH, KW = weight_oihw.shape
    assert Cin_w == Cin
    assert (KH, KW) == (3, 3), "implemented for ConvBNR default kernel_size=3"
    d = int(dilation)
    assert d >= 1 and H >= 2 * d, "spatial size too small for this tiling"

    # --- Fold BatchNorm (eval) into the conv weights / bias ------------------
    scale = gamma / jnp.sqrt(run_var + eps)                 # (Cout,)
    bias = beta - scale * run_mean                          # (Cout,) (conv has no bias)
    w_hwio = jnp.transpose(weight_oihw, (2, 3, 1, 0))       # (3, 3, Cin, Cout)
    w_folded = w_hwio * scale[None, None, None, :]

    # --- Pad channels / width for lane- and sublane-friendly layouts ---------
    cp = _round_up(Cout, 128)                               # lane-dense output
    wo = _round_up(W, 8)                                    # sublane-friendly rows
    w_folded = jnp.pad(w_folded, ((0, 0), (0, 0), (0, 0), (0, cp - Cout)))
    bias_p = jnp.pad(bias, (0, cp - Cout)).reshape(1, cp).astype(jnp.float32)

    x_nhwc = jnp.transpose(x_nchw, (0, 2, 3, 1))
    xp = jnp.pad(x_nhwc, ((0, 0), (d, d), (d, (wo - W) + d), (0, 0)))
    # xp: (N, H + 2d, wo + 2d, Cin)

    # bf16 MXU operands, f32 accumulation inside the kernel.
    xp = xp.astype(jnp.bfloat16)
    w_folded = w_folded.astype(jnp.bfloat16)

    # --- Tile selection -------------------------------------------------------
    th = _choose_row_tile(H, d)
    tn = 256 if cp % 256 == 0 else 128
    tk = _choose_k_tile(Cin)
    hb_n, ob_n, kb_n = H // th, cp // tn, Cin // tk
    wp = wo + 2 * d

    # Halo view: the 2d rows just below each th-row block of the padded input.
    if th % (2 * d) == 0:
        halo_bh = 2 * d
        hstride = th // (2 * d)
        halo_map = lambda n, hb, j, k: (n, (hb + 1) * hstride, 0, k)
    else:
        # Fallback (e.g. odd H): full-size next block; only its first 2d rows
        # are read in-kernel (edge block may be partially out of range, unused).
        halo_bh = th
        halo_map = lambda n, hb, j, k: (n, hb + 1, 0, k)

    kernel = functools.partial(_conv_bnr_kernel, d=d, th=th, wo=wo,
                               tk=tk, tn=tn, kb=kb_n)

    flops = 2 * N * H * wo * cp * 9 * Cin
    bytes_accessed = (xp.size * 2 + w_folded.size * 2 + bias_p.size * 4
                      + N * H * wo * cp * 4)

    grid_spec = pltpu.PrefetchScalarGridSpec(
        num_scalar_prefetch=0,
        grid=(N, hb_n, ob_n, kb_n),
        in_specs=[
            pl.BlockSpec((1, th, wp, tk), lambda n, hb, j, k: (n, hb, 0, k)),
            pl.BlockSpec((1, halo_bh, wp, tk), halo_map),
            pl.BlockSpec((3, 3, tk, tn), lambda n, hb, j, k: (0, 0, k, j)),
            pl.BlockSpec((1, tn), lambda n, hb, j, k: (0, j)),
        ],
        out_specs=pl.BlockSpec((1, th, wo, tn), lambda n, hb, j, k: (n, hb, 0, j)),
        scratch_shapes=[pltpu.VMEM((th * wo, tn), jnp.float32)],
    )

    out = pl.pallas_call(
        kernel,
        out_shape=jax.ShapeDtypeStruct((N, H, wo, cp), out_dtype),
        grid_spec=grid_spec,
        compiler_params=pltpu.CompilerParams(
            dimension_semantics=("parallel", "parallel", "parallel", "arbitrary"),
            vmem_limit_bytes=48 * 1024 * 1024),
        cost_estimate=pl.CostEstimate(
            flops=int(flops), transcendentals=0,
            bytes_accessed=int(bytes_accessed)),
    )(xp, xp, w_folded, bias_p)

    out = out[:, :, :W, :Cout]                     # drop width / channel padding
    return jnp.transpose(out, (0, 3, 1, 2))        # back to NCHW


# ----------------------------------------------------------------------------
# Pure-JAX reference (lax.conv) for correctness checking
# ----------------------------------------------------------------------------
def conv_bnr_reference(x_nchw, weight_oihw, gamma, beta, run_mean, run_var,
                       eps=1e-5, dilation=1, match_bf16=True):
    d = dilation
    scale = gamma / jnp.sqrt(run_var + eps)
    bias = beta - scale * run_mean
    w_hwio = jnp.transpose(weight_oihw, (2, 3, 1, 0)) * scale[None, None, None, :]
    x_nhwc = jnp.transpose(x_nchw, (0, 2, 3, 1))
    if match_bf16:   # emulate the kernel's bf16 operand policy (f32 accumulation)
        x_nhwc = x_nhwc.astype(jnp.bfloat16).astype(jnp.float32)
        w_hwio = w_hwio.astype(jnp.bfloat16).astype(jnp.float32)
    y = jax.lax.conv_general_dilated(
        x_nhwc, w_hwio, window_strides=(1, 1),
        padding=((d, d), (d, d)), rhs_dilation=(d, d),
        dimension_numbers=("NHWC", "HWIO", "NHWC"),
        precision=jax.lax.Precision.HIGHEST)
    y = jnp.maximum(y + bias, 0.0)
    return jnp.transpose(y, (0, 3, 1, 2))


# ----------------------------------------------------------------------------
# Demo / self-test
# ----------------------------------------------------------------------------
if __name__ == "__main__":
    key = jax.random.PRNGKey(0)
    kx, kw, kg, kb, km, kv = jax.random.split(key, 6)

    # Small shapes consistent with ConvBNR usage in CTO_net (e.g. 256 -> 128).
    N, Cin, H, W = 2, 256, 16, 16
    Cout = 128

    x = jax.random.normal(kx, (N, Cin, H, W), jnp.float32)
    weight = jax.random.normal(kw, (Cout, Cin, 3, 3), jnp.float32) / np.sqrt(9 * Cin)
    gamma = 1.0 + 0.1 * jax.random.normal(kg, (Cout,), jnp.float32)
    beta = 0.1 * jax.random.normal(kb, (Cout,), jnp.float32)
    run_mean = 0.1 * jax.random.normal(km, (Cout,), jnp.float32)
    run_var = 1.0 + 0.1 * jax.random.uniform(kv, (Cout,), jnp.float32)

    fwd = jax.jit(conv_bnr_forward)
    out = jax.block_until_ready(fwd(x, weight, gamma, beta, run_mean, run_var))
    assert out.shape == (N, Cout, H, W), out.shape

    # Structural check: same bf16 operand rounding, f32 accumulation.
    ref_bf16 = conv_bnr_reference(x, weight, gamma, beta, run_mean, run_var,
                                  match_bf16=True)
    np.testing.assert_allclose(np.asarray(out), np.asarray(ref_bf16),
                               rtol=1e-3, atol=1e-3)

    # Fidelity check against the full-precision module math (conv -> BN -> ReLU).
    ref_f32 = conv_bnr_reference(x, weight, gamma, beta, run_mean, run_var,
                                 match_bf16=False)
    np.testing.assert_allclose(np.asarray(out), np.asarray(ref_f32),
                               rtol=5e-2, atol=5e-2)

    print("KERNEL_OK")
</pallas_src>

<mosaic_0001>
module attributes {stable_mosaic.version = 11 : i64} {
  func.func @_conv_bnr_kernel(%arg0: i32, %arg1: i32, %arg2: i32, %arg3: i32, %arg4: memref<1x8x18x128xbf16, #tpu.memory_space<vmem>>, %arg5: memref<1x2x18x128xbf16, #tpu.memory_space<vmem>>, %arg6: memref<3x3x128x128xbf16, #tpu.memory_space<vmem>>, %arg7: memref<1x128xf32, #tpu.memory_space<vmem>>, %arg8: memref<1x8x16x128xf32, #tpu.memory_space<vmem>>, %arg9: memref<128x128xf32, #tpu.memory_space<vmem>>) attributes {dimension_semantics = [#tpu.dimension_semantics<parallel>, #tpu.dimension_semantics<parallel>, #tpu.dimension_semantics<parallel>, #tpu.dimension_semantics<arbitrary>], iteration_bounds = array<i64: 2, 2, 1, 2>, scalar_prefetch = 0 : i64, scratch_operands = 1 : i64, tpu.core_type = #tpu.core_type<tc>, window_params = [{transform_indices = @transform_0, window_bounds = array<i64: 1, 8, 18, 128>}, {transform_indices = @transform_1, window_bounds = array<i64: 1, 2, 18, 128>}, {transform_indices = @transform_2, window_bounds = array<i64: 3, 3, 128, 128>}, {transform_indices = @transform_3, window_bounds = array<i64: 1, 128>}, {transform_indices = @transform_4, window_bounds = array<i64: 1, 8, 16, 128>}]} {
    %c0_i32 = arith.constant 0 : i32
    %0 = arith.cmpi eq, %arg3, %c0_i32 : i32
    %1 = arith.extui %0 : i1 to i32
    %c0_i32_0 = arith.constant 0 : i32
    %2 = arith.cmpi ne, %1, %c0_i32_0 : i32
    scf.if %2 {
      %cst_55 = arith.constant 0.000000e+00 : f32
      %67 = vector.broadcast %cst_55 : f32 to vector<128x128xf32>
      %c0_56 = arith.constant 0 : index
      %c0_57 = arith.constant 0 : index
      %68 = vector.load %arg9[%c0_56, %c0_57] : memref<128x128xf32, #tpu.memory_space<vmem>>, vector<128x128xf32>
      tpu.vector_store %arg9[%c0_56, %c0_57], %67 {strides = array<i32>} : memref<128x128xf32, #tpu.memory_space<vmem>>, vector<128x128xf32>,
    } else {
    }
    %c0 = arith.constant 0 : index
    %c0_1 = arith.constant 0 : index
    %c0_2 = arith.constant 0 : index
    %c0_3 = arith.constant 0 : index
    %3 = vector.load %arg4[%c0, %c0_1, %c0_2, %c0_3] : memref<1x8x18x128xbf16, #tpu.memory_space<vmem>>, vector<1x8x18x128xbf16>
    %4 = vector.shape_cast %3 : vector<1x8x18x128xbf16> to vector<8x18x128xbf16>
    %c0_4 = arith.constant 0 : index
    %c0_5 = arith.constant 0 : index
    %c0_6 = arith.constant 0 : index
    %c0_7 = arith.constant 0 : index
    %5 = vector.load %arg5[%c0_4, %c0_5, %c0_6, %c0_7] : memref<1x2x18x128xbf16, #tpu.memory_space<vmem>>, vector<1x2x18x128xbf16>
    %6 = vector.shape_cast %5 : vector<1x2x18x128xbf16> to vector<2x18x128xbf16>
    %7 = tpu.concatenate %4, %6 in 0 : vector<8x18x128xbf16>, vector<2x18x128xbf16> -> vector<10x18x128xbf16>
    %8 = vector.extract_strided_slice %7 {offsets = [0, 0, 0], sizes = [8, 16, 128], strides = [1, 1, 1]} : vector<10x18x128xbf16> to vector<8x16x128xbf16>
    %9 = vector.shape_cast %8 : vector<8x16x128xbf16> to vector<128x128xbf16>
    %c0_8 = arith.constant 0 : index
    %c0_9 = arith.constant 0 : index
    %c0_10 = arith.constant 0 : index
    %c0_11 = arith.constant 0 : index
    %10 = vector.load %arg6[%c0_8, %c0_9, %c0_10, %c0_11] : memref<3x3x128x128xbf16, #tpu.memory_space<vmem>>, vector<1x1x128x128xbf16>
    %11 = vector.shape_cast %10 : vector<1x1x128x128xbf16> to vector<128x128xbf16>
    %cst = arith.constant dense<0.000000e+00> : vector<128x128xf32>
    %12 = tpu.matmul %9, %11, %cst {dimension_numbers = #tpu.dot_dimension_numbers<[1], [0], [0], [1], [0, 0, 1, 1], [], []>} : vector<128x128xbf16>, vector<128x128xbf16>, vector<128x128xf32> -> vector<128x128xf32>
    %13 = vector.extract_strided_slice %7 {offsets = [0, 1, 0], sizes = [8, 16, 128], strides = [1, 1, 1]} : vector<10x18x128xbf16> to vector<8x16x128xbf16>
    %14 = vector.shape_cast %13 : vector<8x16x128xbf16> to vector<128x128xbf16>
    %c0_12 = arith.constant 0 : index
    %c1 = arith.constant 1 : index
    %c0_13 = arith.constant 0 : index
    %c0_14 = arith.constant 0 : index
    %15 = vector.load %arg6[%c0_12, %c1, %c0_13, %c0_14] : memref<3x3x128x128xbf16, #tpu.memory_space<vmem>>, vector<1x1x128x128xbf16>
    %16 = vector.shape_cast %15 : vector<1x1x128x128xbf16> to vector<128x128xbf16>
    %cst_15 = arith.constant dense<0.000000e+00> : vector<128x128xf32>
    %17 = tpu.matmul %14, %16, %cst_15 {dimension_numbers = #tpu.dot_dimension_numbers<[1], [0], [0], [1], [0, 0, 1, 1], [], []>} : vector<128x128xbf16>, vector<128x128xbf16>, vector<128x128xf32> -> vector<128x128xf32>
    %18 = arith.addf %12, %17 : vector<128x128xf32>
    %19 = vector.extract_strided_slice %7 {offsets = [0, 2, 0], sizes = [8, 16, 128], strides = [1, 1, 1]} : vector<10x18x128xbf16> to vector<8x16x128xbf16>
    %20 = vector.shape_cast %19 : vector<8x16x128xbf16> to vector<128x128xbf16>
    %c0_16 = arith.constant 0 : index
    %c2 = arith.constant 2 : index
    %c0_17 = arith.constant 0 : index
    %c0_18 = arith.constant 0 : index
    %21 = vector.load %arg6[%c0_16, %c2, %c0_17, %c0_18] : memref<3x3x128x128xbf16, #tpu.memory_space<vmem>>, vector<1x1x128x128xbf16>
    %22 = vector.shape_cast %21 : vector<1x1x128x128xbf16> to vector<128x128xbf16>
    %cst_19 = arith.constant dense<0.000000e+00> : vector<128x128xf32>
    %23 = tpu.matmul %20, %22, %cst_19 {dimension_numbers = #tpu.dot_dimension_numbers<[1], [0], [0], [1], [0, 0, 1, 1], [], []>} : vector<128x128xbf16>, vector<128x128xbf16>, vector<128x128xf32> -> vector<128x128xf32>
    %24 = arith.addf %18, %23 : vector<128x128xf32>
    %25 = vector.extract_strided_slice %7 {offsets = [1, 0, 0], sizes = [8, 16, 128], strides = [1, 1, 1]} : vector<10x18x128xbf16> to vector<8x16x128xbf16>
    %26 = vector.shape_cast %25 : vector<8x16x128xbf16> to vector<128x128xbf16>
    %c1_20 = arith.constant 1 : index
    %c0_21 = arith.constant 0 : index
    %c0_22 = arith.constant 0 : index
    %c0_23 = arith.constant 0 : index
    %27 = vector.load %arg6[%c1_20, %c0_21, %c0_22, %c0_23] : memref<3x3x128x128xbf16, #tpu.memory_space<vmem>>, vector<1x1x128x128xbf16>
    %28 = vector.shape_cast %27 : vector<1x1x128x128xbf16> to vector<128x128xbf16>
    %cst_24 = arith.constant dense<0.000000e+00> : vector<128x128xf32>
    %29 = tpu.matmul %26, %28, %cst_24 {dimension_numbers = #tpu.dot_dimension_numbers<[1], [0], [0], [1], [0, 0, 1, 1], [], []>} : vector<128x128xbf16>, vector<128x128xbf16>, vector<128x128xf32> -> vector<128x128xf32>
    %30 = arith.addf %24, %29 : vector<128x128xf32>
    %31 = vector.extract_strided_slice %7 {offsets = [1, 1, 0], sizes = [8, 16, 128], strides = [1, 1, 1]} : vector<10x18x128xbf16> to vector<8x16x128xbf16>
    %32 = vector.shape_cast %31 : vector<8x16x128xbf16> to vector<128x128xbf16>
    %c1_25 = arith.constant 1 : index
    %c1_26 = arith.constant 1 : index
    %c0_27 = arith.constant 0 : index
    %c0_28 = arith.constant 0 : index
    %33 = vector.load %arg6[%c1_25, %c1_26, %c0_27, %c0_28] : memref<3x3x128x128xbf16, #tpu.memory_space<vmem>>, vector<1x1x128x128xbf16>
    %34 = vector.shape_cast %33 : vector<1x1x128x128xbf16> to vector<128x128xbf16>
    %cst_29 = arith.constant dense<0.000000e+00> : vector<128x128xf32>
    %35 = tpu.matmul %32, %34, %cst_29 {dimension_numbers = #tpu.dot_dimension_numbers<[1], [0], [0], [1], [0, 0, 1, 1], [], []>} : vector<128x128xbf16>, vector<128x128xbf16>, vector<128x128xf32> -> vector<128x128xf32>
    %36 = arith.addf %30, %35 : vector<128x128xf32>
    %37 = vector.extract_strided_slice %7 {offsets = [1, 2, 0], sizes = [8, 16, 128], strides = [1, 1, 1]} : vector<10x18x128xbf16> to vector<8x16x128xbf16>
    %38 = vector.shape_cast %37 : vector<8x16x128xbf16> to vector<128x128xbf16>
    %c1_30 = arith.constant 1 : index
    %c2_31 = arith.constant 2 : index
    %c0_32 = arith.constant 0 : index
    %c0_33 = arith.constant 0 : index
    %39 = vector.load %arg6[%c1_30, %c2_31, %c0_32, %c0_33] : memref<3x3x128x128xbf16, #tpu.memory_space<vmem>>, vector<1x1x128x128xbf16>
    %40 = vector.shape_cast %39 : vector<1x1x128x128xbf16> to vector<128x128xbf16>
    %cst_34 = arith.constant dense<0.000000e+00> : vector<128x128xf32>
    %41 = tpu.matmul %38, %40, %cst_34 {dimension_numbers = #tpu.dot_dimension_numbers<[1], [0], [0], [1], [0, 0, 1, 1], [], []>} : vector<128x128xbf16>, vector<128x128xbf16>, vector<128x128xf32> -> vector<128x128xf32>
    %42 = arith.addf %36, %41 : vector<128x128xf32>
    %43 = vector.extract_strided_slice %7 {offsets = [2, 0, 0], sizes = [8, 16, 128], strides = [1, 1, 1]} : vector<10x18x128xbf16> to vector<8x16x128xbf16>
    %44 = vector.shape_cast %43 : vector<8x16x128xbf16> to vector<128x128xbf16>
    %c2_35 = arith.constant 2 : index
    %c0_36 = arith.constant 0 : index
    %c0_37 = arith.constant 0 : index
    %c0_38 = arith.constant 0 : index
    %45 = vector.load %arg6[%c2_35, %c0_36, %c0_37, %c0_38] : memref<3x3x128x128xbf16, #tpu.memory_space<vmem>>, vector<1x1x128x128xbf16>
    %46 = vector.shape_cast %45 : vector<1x1x128x128xbf16> to vector<128x128xbf16>
    %cst_39 = arith.constant dense<0.000000e+00> : vector<128x128xf32>
    %47 = tpu.matmul %44, %46, %cst_39 {dimension_numbers = #tpu.dot_dimension_numbers<[1], [0], [0], [1], [0, 0, 1, 1], [], []>} : vector<128x128xbf16>, vector<128x128xbf16>, vector<128x128xf32> -> vector<128x128xf32>
    %48 = arith.addf %42, %47 : vector<128x128xf32>
    %49 = vector.extract_strided_slice %7 {offsets = [2, 1, 0], sizes = [8, 16, 128], strides = [1, 1, 1]} : vector<10x18x128xbf16> to vector<8x16x128xbf16>
    %50 = vector.shape_cast %49 : vector<8x16x128xbf16> to vector<128x128xbf16>
    %c2_40 = arith.constant 2 : index
    %c1_41 = arith.constant 1 : index
    %c0_42 = arith.constant 0 : index
    %c0_43 = arith.constant 0 : index
    %51 = vector.load %arg6[%c2_40, %c1_41, %c0_42, %c0_43] : memref<3x3x128x128xbf16, #tpu.memory_space<vmem>>, vector<1x1x128x128xbf16>
    %52 = vector.shape_cast %51 : vector<1x1x128x128xbf16> to vector<128x128xbf16>
    %cst_44 = arith.constant dense<0.000000e+00> : vector<128x128xf32>
    %53 = tpu.matmul %50, %52, %cst_44 {dimension_numbers = #tpu.dot_dimension_numbers<[1], [0], [0], [1], [0, 0, 1, 1], [], []>} : vector<128x128xbf16>, vector<128x128xbf16>, vector<128x128xf32> -> vector<128x128xf32>
    %54 = arith.addf %48, %53 : vector<128x128xf32>
    %55 = vector.extract_strided_slice %7 {offsets = [2, 2, 0], sizes = [8, 16, 128], strides = [1, 1, 1]} : vector<10x18x128xbf16> to vector<8x16x128xbf16>
    %56 = vector.shape_cast %55 : vector<8x16x128xbf16> to vector<128x128xbf16>
    %c2_45 = arith.constant 2 : index
    %c2_46 = arith.constant 2 : index
    %c0_47 = arith.constant 0 : index
    %c0_48 = arith.constant 0 : index
    %57 = vector.load %arg6[%c2_45, %c2_46, %c0_47, %c0_48] : memref<3x3x128x128xbf16, #tpu.memory_space<vmem>>, vector<1x1x128x128xbf16>
    %58 = vector.shape_cast %57 : vector<1x1x128x128xbf16> to vector<128x128xbf16>
    %cst_49 = arith.constant dense<0.000000e+00> : vector<128x128xf32>
    %59 = tpu.matmul %56, %58, %cst_49 {dimension_numbers = #tpu.dot_dimension_numbers<[1], [0], [0], [1], [0, 0, 1, 1], [], []>} : vector<128x128xbf16>, vector<128x128xbf16>, vector<128x128xf32> -> vector<128x128xf32>
    %60 = arith.addf %54, %59 : vector<128x128xf32>
    %c0_50 = arith.constant 0 : index
    %c0_51 = arith.constant 0 : index
    %61 = vector.load %arg9[%c0_50, %c0_51] : memref<128x128xf32, #tpu.memory_space<vmem>>, vector<128x128xf32>
    %62 = arith.addf %61, %60 : vector<128x128xf32>
    %c0_52 = arith.constant 0 : index
    %c0_53 = arith.constant 0 : index
    %63 = vector.load %arg9[%c0_52, %c0_53] : memref<128x128xf32, #tpu.memory_space<vmem>>, vector<128x128xf32>
    tpu.vector_store %arg9[%c0_52, %c0_53], %62 {strides = array<i32>} : memref<128x128xf32, #tpu.memory_space<vmem>>, vector<128x128xf32>,
    %c1_i32 = arith.constant 1 : i32
    %64 = arith.cmpi eq, %arg3, %c1_i32 : i32
    %65 = arith.extui %64 : i1 to i32
    %c0_i32_54 = arith.constant 0 : i32
    %66 = arith.cmpi ne, %65, %c0_i32_54 : i32
    scf.if %66 {
      %c0_55 = arith.constant 0 : index
      %c0_56 = arith.constant 0 : index
      %67 = vector.load %arg9[%c0_55, %c0_56] : memref<128x128xf32, #tpu.memory_space<vmem>>, vector<128x128xf32>
      %c0_57 = arith.constant 0 : index
      %c0_58 = arith.constant 0 : index
      %68 = vector.load %arg7[%c0_57, %c0_58] : memref<1x128xf32, #tpu.memory_space<vmem>>, vector<1x128xf32>
      %69 = vector.broadcast %68 : vector<1x128xf32> to vector<128x128xf32>
      %70 = arith.addf %67, %69 : vector<128x128xf32>
      %cst_59 = arith.constant 0.000000e+00 : f32
      %71 = vector.broadcast %cst_59 : f32 to vector<128x128xf32>
      %72 = arith.maximumf %70, %71 : vector<128x128xf32>
      %73 = vector.shape_cast %72 : vector<128x128xf32> to vector<8x16x128xf32>
      %c0_60 = arith.constant 0 : index
      %c0_61 = arith.constant 0 : index
      %c0_62 = arith.constant 0 : index
      %c0_63 = arith.constant 0 : index
      %74 = vector.load %arg8[%c0_60, %c0_61, %c0_62, %c0_63] : memref<1x8x16x128xf32, #tpu.memory_space<vmem>>, vector<1x8x16x128xf32>
      %75 = vector.shape_cast %74 : vector<1x8x16x128xf32> to vector<8x16x128xf32>
      %76 = vector.shape_cast %73 : vector<8x16x128xf32> to vector<1x8x16x128xf32>
      tpu.vector_store %arg8[%c0_60, %c0_61, %c0_62, %c0_63], %76 {strides = array<i32>} : memref<1x8x16x128xf32, #tpu.memory_space<vmem>>, vector<1x8x16x128xf32>,
    } else {
    }
    return
  }
  func.func @transform_0(%arg0: i32, %arg1: i32, %arg2: i32, %arg3: i32) -> (i32, i32, i32, i32) {
    %c0_i32 = arith.constant 0 : i32
    %c0_i32_0 = arith.constant 0 : i32
    return %arg0, %arg1, %c0_i32, %arg3 : i32, i32, i32, i32
  }
  func.func @transform_1(%arg0: i32, %arg1: i32, %arg2: i32, %arg3: i32) -> (i32, i32, i32, i32) {
    %c1_i32 = arith.constant 1 : i32
    %0 = arith.addi %arg1, %c1_i32 : i32
    %c4_i32 = arith.constant 4 : i32
    %1 = arith.muli %0, %c4_i32 : i32
    %c0_i32 = arith.constant 0 : i32
    %c0_i32_0 = arith.constant 0 : i32
    return %arg0, %1, %c0_i32, %arg3 : i32, i32, i32, i32
  }
  func.func @transform_2(%arg0: i32, %arg1: i32, %arg2: i32, %arg3: i32) -> (i32, i32, i32, i32) {
    %c0_i32 = arith.constant 0 : i32
    %c0_i32_0 = arith.constant 0 : i32
    %c0_i32_1 = arith.constant 0 : i32
    return %c0_i32, %c0_i32_0, %arg3, %arg2 : i32, i32, i32, i32
  }
  func.func @transform_3(%arg0: i32, %arg1: i32, %arg2: i32, %arg3: i32) -> (i32, i32) {
    %c0_i32 = arith.constant 0 : i32
    %c0_i32_0 = arith.constant 0 : i32
    return %c0_i32, %arg2 : i32, i32
  }
  func.func @transform_4(%arg0: i32, %arg1: i32, %arg2: i32, %arg3: i32) -> (i32, i32, i32, i32) {
    %c0_i32 = arith.constant 0 : i32
    %c0_i32_0 = arith.constant 0 : i32
    return %arg0, %arg1, %c0_i32, %arg2 : i32, i32, i32, i32
  }
}

</mosaic_0001>

<llo_original>
// kernel: conv_bnr_forward.1
$region0: #{conv_bnr_forward.1}
  #allocation0 [shape = 'u32[]', space=smem, size = 0x4, offset = 0x4, fixed_abs, tag = 'smem constant byte address 0x4 - core index']
  #allocation1 [shape = 'u32[144,128]{1,0:T(1,128)}', space=vmem, size = 0x12000, scoped, tag = 'internal scratch']
  #allocation2 [shape = 'f32[128,128]{1,0:T(8,128)}', space=vmem, size = 0x10000, scoped, tag = 'scratch operand']
  %s0 = inlined_call_operand.vmem [shape: bf16[2,18,18,256], index: 0, kind: input, shape index: {}, may-alias: {0,1}]
  %s1 = inlined_call_operand.vmem [shape: bf16[2,18,18,256], index: 1, kind: input, shape index: {}, may-alias: {0,1}]
  %s2 = inlined_call_operand.vmem [shape: bf16[3,3,256,128], index: 2, kind: input, shape index: {}]
  %s3 = inlined_call_operand.vmem [shape: f32[1,128], index: 3, kind: input, shape index: {}]
  %s4 = inlined_call_operand.hbm [shape: f32[2,16,16,128], index: 4, kind: output, shape index: {}]
  %s5 = sld [smem:[#allocation0]]
  $region187: #{conv_bnr_forward.1} parent=0
    _
  %s7 = ssub.s32 1, %s5
  %s8 = scalar_select 0, %s7, %s5
  $region1: #{conv_bnr_forward.1} parent=0
    #allocation3 [shape = 'u8[98304]{0}', space=vmem, size = 0x18000, scoped, tag = 'input window, operand 0']
    #allocation4 [shape = 'u8[24576]{0}', space=vmem, size = 0x6000, scoped, tag = 'input window, operand 1']
    #allocation5 [shape = 'u8[589824]{0}', space=vmem, size = 0x90000, scoped, tag = 'input window, operand 2']
    #allocation6 [shape = 'u8[131072]{0}', space=vmem, size = 0x20000, scoped, tag = 'output window, operand 0']
    #allocation7 [shape = 's32[2]{0}', space=sflag, size = 0x8, scoped, tag = 'scoped memory for conv_bnr_forward.1']
    %9 = vsyncpa [#allocation7], 0
    %s10 = scalar_lea.sflag [#allocation7], 1
    %11 = vsyncpa %s10, 0
    loop: start=0, step=1, limit=10
    $region2: #{conv_bnr_forward.1} parent=1 // loop_pre_header
      _
    $region3: #{conv_bnr_forward.1} parent=1 // loop_header
      %s13 = sphi 0, %s17
      %p14 = scmp.ge.s32.totalorder %s13, 10
      %s20 = sphi 0, %s46
      %s21 = sphi 0, %s42
      %s22 = sphi 0, %s38
      %s23 = sphi 0, %s34
      %s24 = sphi 0, %s20
      %s25 = sphi 0, %s21
      %s26 = sphi 0, %s22
      %s27 = sphi 0, %s23
      %s28 = sphi 0, %s24
      %s29 = sphi 0, %s25
      %s30 = sphi 0, %s26
      %s31 = sphi 0, %s27
      %s53 = sphi 0, %s55
      %s56 = sphi 0, %s53
      %s57 = sphi 0, %s56
      %s73 = sphi 0, %s57
      %s87 = sphi 0, %s89
      %s90 = sphi 0, %s87
      %s91 = sphi 0, %s90
      %s107 = sphi 0, %s91
      %s115 = sphi 0, %s117
      %s118 = sphi 0, %s115
      %s119 = sphi 0, %s118
      %s135 = sphi 0, %s119
      %s141 = sphi 0, %s143
      %s144 = sphi 0, %s141
      %s145 = sphi 0, %s144
      %s161 = sphi 0, %s145
      %s171 = sphi 0, %s173
      %s174 = sphi 0, %s171
      %s175 = sphi 0, %s174
      %s191 = sphi 0, %s175
    $region4: #{conv_bnr_forward.1} parent=1 // loop_header_branch
      %16 = sbr.rel (%p14) target = $region8
    $region5: #{conv_bnr_forward.1} parent=1 // loop_body
      %s18 = ssub.s32 %s13, 1
      %s19 = ssub.s32 %s13, 2
      %s32 = sadd.s32 1, %s23
      %p33 = scmp.ge.s32.totalorder %s32, 2
      %s34 = scalar_select %p33, 0, %s32
      %s35 = sadd.s32 1, %s22
      %s36 = scalar_select %p33, %s35, %s22
      %p37 = scmp.ge.s32.totalorder %s36, 1
      %s38 = scalar_select %p37, 0, %s36
      %s39 = sadd.s32 1, %s21
      %s40 = scalar_select %p37, %s39, %s21
      %p41 = scmp.ge.s32.totalorder %s40, 2
      %s42 = scalar_select %p41, 0, %s40
      %s43 = sadd.s32 1, %s20
      %s44 = scalar_select %p41, %s43, %s20
      %p45 = scmp.ge.s32.totalorder %s44, 2
      %s46 = scalar_select %p45, 0, %s44
      %s47 = ssub.s32 %s20, %s46
      %s48 = ssub.s32 %s21, %s42
      %s49 = sor.u32 %s47, %s48
      %s50 = ssub.s32 %s23, %s34
      %s51 = sor.u32 %s49, %s50
      %p52 = scmp.eq.s32.totalorder %s51, 0
      %s54 = sadd.s32 %s53, 1
      %s55 = scalar_select %p52, %s53, %s54
      %p58 = pneg %p52
      %p59 = scmp.eq.s32.totalorder %s13, 7
      %p60 = por %p58, %p59
      %p61 = scmp.ne.s32.totalorder %s53, %s56
      %p62 = scmp.eq.s32.totalorder %s13, 0
      %p63 = por %p61, %p62
      %p64 = scmp.ne.s32.totalorder %s53, %s56
      %p65 = scmp.eq.s32.totalorder %s18, 7
      %p66 = por %p64, %p65
      %p67 = scmp.ne.s32.totalorder %s56, %s57
      %p68 = scmp.eq.s32.totalorder %s18, 0
      %p69 = por %p67, %p68
      %p70 = scmp.ne.s32.totalorder %s56, %s57
      %p71 = scmp.eq.s32.totalorder %s19, 7
      %p72 = por %p70, %p71
      %p74 = scmp.ne.s32.totalorder %s57, %s73
      %p75 = scmp.eq.s32.totalorder %s19, 0
      %p76 = por %p74, %p75
      %s77 = sadd.s32 %s21, 1
      %s78 = smul.u32 %s77, 4
      %s79 = sadd.s32 %s42, 1
      %s80 = smul.u32 %s79, 4
      %s81 = ssub.s32 %s20, %s46
      %s82 = ssub.s32 %s78, %s80
      %s83 = sor.u32 %s81, %s82
      %s84 = ssub.s32 %s23, %s34
      %s85 = sor.u32 %s83, %s84
      %p86 = scmp.eq.s32.totalorder %s85, 0
      %s88 = sadd.s32 %s87, 1
      %s89 = scalar_select %p86, %s87, %s88
      %p92 = pneg %p86
      %p93 = scmp.eq.s32.totalorder %s13, 7
      %p94 = por %p92, %p93
      %p95 = scmp.ne.s32.totalorder %s87, %s90
      %p96 = scmp.eq.s32.totalorder %s13, 0
      %p97 = por %p95, %p96
      %p98 = scmp.ne.s32.totalorder %s87, %s90
      %p99 = scmp.eq.s32.totalorder %s18, 7
      %p100 = por %p98, %p99
      %p101 = scmp.ne.s32.totalorder %s90, %s91
      %p102 = scmp.eq.s32.totalorder %s18, 0
      %p103 = por %p101, %p102
      %p104 = scmp.ne.s32.totalorder %s90, %s91
      %p105 = scmp.eq.s32.totalorder %s19, 7
      %p106 = por %p104, %p105
      %p108 = scmp.ne.s32.totalorder %s91, %s107
      %p109 = scmp.eq.s32.totalorder %s19, 0
      %p110 = por %p108, %p109
      %s111 = ssub.s32 %s23, %s34
      %s112 = ssub.s32 %s22, %s38
      %s113 = sor.u32 %s111, %s112
      %p114 = scmp.eq.s32.totalorder %s113, 0
      %s116 = sadd.s32 %s115, 1
      %s117 = scalar_select %p114, %s115, %s116
      %p120 = pneg %p114
      %p121 = scmp.eq.s32.totalorder %s13, 7
      %p122 = por %p120, %p121
      %p123 = scmp.ne.s32.totalorder %s115, %s118
      %p124 = scmp.eq.s32.totalorder %s13, 0
      %p125 = por %p123, %p124
      %p126 = scmp.ne.s32.totalorder %s115, %s118
      %p127 = scmp.eq.s32.totalorder %s18, 7
      %p128 = por %p126, %p127
      %p129 = scmp.ne.s32.totalorder %s118, %s119
      %p130 = scmp.eq.s32.totalorder %s18, 0
      %p131 = por %p129, %p130
      %p132 = scmp.ne.s32.totalorder %s118, %s119
      %p133 = scmp.eq.s32.totalorder %s19, 7
      %p134 = por %p132, %p133
      %p136 = scmp.ne.s32.totalorder %s119, %s135
      %p137 = scmp.eq.s32.totalorder %s19, 0
      %p138 = por %p136, %p137
      %s139 = ssub.s32 %s22, %s38
      %p140 = scmp.eq.s32.totalorder %s139, 0
      %s142 = sadd.s32 %s141, 1
      %s143 = scalar_select %p140, %s141, %s142
      %p146 = pneg %p140
      %p147 = scmp.eq.s32.totalorder %s13, 7
      %p148 = por %p146, %p147
      %p149 = scmp.ne.s32.totalorder %s141, %s144
      %p150 = scmp.eq.s32.totalorder %s13, 0
      %p151 = por %p149, %p150
      %p152 = scmp.ne.s32.totalorder %s141, %s144
      %p153 = scmp.eq.s32.totalorder %s18, 7
      %p154 = por %p152, %p153
      %p155 = scmp.ne.s32.totalorder %s144, %s145
      %p156 = scmp.eq.s32.totalorder %s18, 0
      %p157 = por %p155, %p156
      %p158 = scmp.ne.s32.totalorder %s144, %s145
      %p159 = scmp.eq.s32.totalorder %s19, 7
      %p160 = por %p158, %p159
      %p162 = scmp.ne.s32.totalorder %s145, %s161
      %p163 = scmp.eq.s32.totalorder %s19, 0
      %p164 = por %p162, %p163
      %s165 = ssub.s32 %s20, %s46
      %s166 = ssub.s32 %s21, %s42
      %s167 = sor.u32 %s165, %s166
      %s168 = ssub.s32 %s22, %s38
      %s169 = sor.u32 %s167, %s168
      %p170 = scmp.eq.s32.totalorder %s169, 0
      %s172 = sadd.s32 %s171, 1
      %s173 = scalar_select %p170, %s171, %s172
      %p176 = pneg %p170
      %p177 = scmp.eq.s32.totalorder %s13, 7
      %p178 = por %p176, %p177
      %p179 = scmp.ne.s32.totalorder %s171, %s174
      %p180 = scmp.eq.s32.totalorder %s13, 0
      %p181 = por %p179, %p180
      %p182 = scmp.ne.s32.totalorder %s171, %s174
      %p183 = scmp.eq.s32.totalorder %s18, 7
      %p184 = por %p182, %p183
      %p185 = scmp.ne.s32.totalorder %s174, %s175
      %p186 = scmp.eq.s32.totalorder %s18, 0
      %p187 = por %p185, %p186
      %p188 = scmp.ne.s32.totalorder %s174, %s175
      %p189 = scmp.eq.s32.totalorder %s19, 7
      %p190 = por %p188, %p189
      %p192 = scmp.ne.s32.totalorder %s175, %s191
      %p193 = scmp.eq.s32.totalorder %s19, 0
      %p194 = por %p192, %p193
      %p195 = scmp.le.s32.totalorder 1, %s13
      %p196 = scmp.lt.s32.totalorder %s13, 9
      %p197 = pnand %p195, %p196
      %p198 = pneg %p197
      // Predicated region
      $region9: #{conv_bnr_forward.1} parent=5 // pred_check
        _
      $region10: #{conv_bnr_forward.1} parent=5 // pred_check_branch
        %200 = sbr.rel (%p197) target = $region12
      $region11: #{conv_bnr_forward.1} parent=5 // pred_region
        %s201 = ssub.s32 %s13, 1
        // Predicated region
        $region13: #{conv_bnr_forward.1} parent=11 // pred_check
          %p202 = pneg %p157
        $region14: #{conv_bnr_forward.1} parent=11 // pred_check_branch
          %204 = sbr.rel (%p202) target = $region16
        $region15: #{conv_bnr_forward.1} parent=11 // pred_region
          %p205 = scmp.lt.s32.totalorder %s26, 0
          %s206 = scalar_select %p205, %s26, 0
          %s207 = scalar_lea.vmem %s3, %s206
        $region16: #{conv_bnr_forward.1} parent=11 // pred_fallthru
          _
      $region12: #{conv_bnr_forward.1} parent=5 // pred_fallthru
        _
      %p208 = scmp.lt.s32.totalorder %s13, 8
      // Predicated region
      $region17: #{conv_bnr_forward.1} parent=5 // pred_check
        %p209 = pneg %p208
      $region18: #{conv_bnr_forward.1} parent=5 // pred_check_branch
        %211 = sbr.rel (%p209) target = $region20
      $region19: #{conv_bnr_forward.1} parent=5 // pred_region
        // Predicated region
        $region21: #{conv_bnr_forward.1} parent=19 // pred_check
          %p212 = pneg %p63
        $region22: #{conv_bnr_forward.1} parent=19 // pred_check_branch
          %214 = sbr.rel (%p212) target = $region24
        $region23: #{conv_bnr_forward.1} parent=19 // pred_region
          %s215 = sand.u32 %s53, 1
          %s216 = sand.u32 %s53, 1
          %s217 = smul.addr %s216, 96
          %s218 = scalar_lea.vmem [#allocation3], %s217
          %s219 = smul.u32 8, %s21
          %s220 = ssub.s32 18, %s219
          %p221 = scmp.lt.s32.totalorder %s220, 8
          %s222 = scalar_select %p221, %s220, 8
          %s223 = smul.u32 64, %s222
          %s224 = smul.u32 %s223, 3
          %p225 = scmp.ne.s32.totalorder 0, %s224
          %s226 = smul.addr %s219, 6
          %s227 = sadd.s32 %s23, %s226
          %s228 = smul.addr %s20, 108
          %s229 = sadd.s32 %s227, %s228
          %s230 = smul.addr %s229, 4
          %s231 = scalar_lea.vmem %s0, %s230
          %s232 = smul.u32 %s222, 3
          // Predicated region
          $region25: #{conv_bnr_forward.1} parent=23 // pred_check
            %p233 = pneg %p225
          $region26: #{conv_bnr_forward.1} parent=23 // pred_check_branch
            %235 = sbr.rel (%p233) target = $region28
          $region27: #{conv_bnr_forward.1} parent=23 // pred_region
            // Predicated region
            $region29: #{conv_bnr_forward.1} parent=27 // pred_check
              _
            $region30: #{conv_bnr_forward.1} parent=27 // pred_check_branch
              %237 = sbr.rel target = $region32
            $region31: #{conv_bnr_forward.1} parent=27 // pred_region
              // Predicated region
              $region51: #{conv_bnr_forward.1} parent=31 // pred_check
                _
              $region52: #{conv_bnr_forward.1} parent=31 // pred_check_branch
                %333 = sbr.rel (0) target = $region54
              $region53: #{conv_bnr_forward.1} parent=31 // pred_region
                %s335 = sdiv.u32.pop %s232, 24
                %s336 = srem.u32.pop %s232, 24
                // While loop
                $region55: #{conv_bnr_forward.1} parent=53 // loop_pre_header
                  _
                $region56: #{conv_bnr_forward.1} parent=53 // loop_header
                  %s338 = sphi 0, %s340
                  %p339 = scmp.ge.s32.totalorder %s338, %s335
                  %s343 = sphi 0, %s396
                  %s344 = sphi %s231, %s399
                  %s345 = sphi %s218, %s400
                $region57: #{conv_bnr_forward.1} parent=53 // loop_header_branch
                  %342 = sbr.rel (%p339) target = $region61
                $region58: #{conv_bnr_forward.1} parent=53 // loop_body
                  %v346 = vld [vmem:[%s344] sm:$0xf]
                  %347 = vst [vmem:[%s345] sm:$0xf] %v346
                  %v348 = vld [vmem:[%s344 + $0x8] sm:$0xf]
                  %349 = vst [vmem:[%s345 + $0x4] sm:$0xf] %v348
                  %v350 = vld [vmem:[%s344 + $0x10] sm:$0xf]
                  %351 = vst [vmem:[%s345 + $0x8] sm:$0xf] %v350
                  %v352 = vld [vmem:[%s344 + $0x18] sm:$0xf]
                  %353 = vst [vmem:[%s345 + $0xc] sm:$0xf] %v352
                  %v354 = vld [vmem:[%s344 + $0x20] sm:$0xf]
                  %355 = vst [vmem:[%s345 + $0x10] sm:$0xf] %v354
                  %v356 = vld [vmem:[%s344 + $0x28] sm:$0xf]
                  %357 = vst [vmem:[%s345 + $0x14] sm:$0xf] %v356
                  %v358 = vld [vmem:[%s344 + $0x30] sm:$0xf]
                  %359 = vst [vmem:[%s345 + $0x18] sm:$0xf] %v358
                  %v360 = vld [vmem:[%s344 + $0x38] sm:$0xf]
                  %361 = vst [vmem:[%s345 + $0x1c] sm:$0xf] %v360
                  %v362 = vld [vmem:[%s344 + $0x40] sm:$0xf]
                  %363 = vst [vmem:[%s345 + $0x20] sm:$0xf] %v362
                  %v364 = vld [vmem:[%s344 + $0x48] sm:$0xf]
                  %365 = vst [vmem:[%s345 + $0x24] sm:$0xf] %v364
                  %v366 = vld [vmem:[%s344 + $0x50] sm:$0xf]
                  %367 = vst [vmem:[%s345 + $0x28] sm:$0xf] %v366
                  %v368 = vld [vmem:[%s344 + $0x58] sm:$0xf]
                  %369 = vst [vmem:[%s345 + $0x2c] sm:$0xf] %v368
                  %v370 = vld [vmem:[%s344 + $0x60] sm:$0xf]
                  %371 = vst [vmem:[%s345 + $0x30] sm:$0xf] %v370
                  %v372 = vld [vmem:[%s344 + $0x68] sm:$0xf]
                  %373 = vst [vmem:[%s345 + $0x34] sm:$0xf] %v372
                  %v374 = vld [vmem:[%s344 + $0x70] sm:$0xf]
                  %375 = vst [vmem:[%s345 + $0x38] sm:$0xf] %v374
                  %v376 = vld [vmem:[%s344 + $0x78] sm:$0xf]
                  %377 = vst [vmem:[%s345 + $0x3c] sm:$0xf] %v376
                  %v378 = vld [vmem:[%s344 + $0x80] sm:$0xf]
                  %379 = vst [vmem:[%s345 + $0x40] sm:$0xf] %v378
                  %v380 = vld [vmem:[%s344 + $0x88] sm:$0xf]
                  %381 = vst [vmem:[%s345 + $0x44] sm:$0xf] %v380
                  %v382 = vld [vmem:[%s344 + $0x90] sm:$0xf]
                  %383 = vst [vmem:[%s345 + $0x48] sm:$0xf] %v382
                  %v384 = vld [vmem:[%s344 + $0x98] sm:$0xf]
                  %385 = vst [vmem:[%s345 + $0x4c] sm:$0xf] %v384
                  %v386 = vld [vmem:[%s344 + $0xa0] sm:$0xf]
                  %387 = vst [vmem:[%s345 + $0x50] sm:$0xf] %v386
                  %v388 = vld [vmem:[%s344 + $0xa8] sm:$0xf]
                  %389 = vst [vmem:[%s345 + $0x54] sm:$0xf] %v388
                  %v390 = vld [vmem:[%s344 + $0xb0] sm:$0xf]
                  %391 = vst [vmem:[%s345 + $0x58] sm:$0xf] %v390
                  %v392 = vld [vmem:[%s344 + $0xb8] sm:$0xf]
                  %393 = vst [vmem:[%s345 + $0x5c] sm:$0xf] %v392
                  %s394 = sadd.s32 1, %s343
                  %p395 = scmp.ge.s32.totalorder %s394, %s335
                  %s396 = scalar_select %p395, 0, %s394
                  %s397 = smul.u32 %s396, 192
                  %s398 = smul.u32 %s396, 96
                  %s399 = scalar_lea.vmem %s231, %s397
                  %s400 = scalar_lea.vmem %s218, %s398 [#allocation3]
                $region59: #{conv_bnr_forward.1} parent=53 // loop_footer
                  %s340 = sadd.s32 %s338, 1
                $region60: #{conv_bnr_forward.1} parent=53 // loop_footer_branch
                  %337 = sbr.rel target = $region56
                $region61: #{conv_bnr_forward.1} parent=53 // loop_exit
                  _
                %s401 = sdiv.u32.pop %s232, 24
                %s402 = srem.u32.pop %s232, 24
                %s403 = smul.u32 %s401, 24
                %s404 = smul.u32 8, %s403
                %s405 = scalar_lea.vmem %s231, %s404
                %s406 = smul.u32 4, %s403
                %s407 = scalar_lea.vmem %s218, %s406 [#allocation3]
                // While loop
                $region62: #{conv_bnr_forward.1} parent=53 // loop_pre_header
                  _
                $region63: #{conv_bnr_forward.1} parent=53 // loop_header
                  %s409 = sphi 0, %s411
                  %p410 = scmp.ge.s32.totalorder %s409, %s402
                  %s414 = sphi 0, %s421
                  %s415 = sphi %s405, %s424
                  %s416 = sphi %s407, %s425
                $region64: #{conv_bnr_forward.1} parent=53 // loop_header_branch
                  %413 = sbr.rel (%p410) target = $region68
                $region65: #{conv_bnr_forward.1} parent=53 // loop_body
                  %v417 = vld [vmem:[%s415] sm:$0xf]
                  %418 = vst [vmem:[%s416] sm:$0xf] %v417
                  %s419 = sadd.s32 1, %s414
                  %p420 = scmp.ge.s32.totalorder %s419, %s402
                  %s421 = scalar_select %p420, 0, %s419
                  %s422 = smul.u32 %s421, 8
                  %s423 = smul.u32 %s421, 4
                  %s424 = scalar_lea.vmem %s405, %s422
                  %s425 = scalar_lea.vmem %s407, %s423 [#allocation3]
                $region66: #{conv_bnr_forward.1} parent=53 // loop_footer
                  %s411 = sadd.s32 %s409, 1
                $region67: #{conv_bnr_forward.1} parent=53 // loop_footer_branch
                  %408 = sbr.rel target = $region63
                $region68: #{conv_bnr_forward.1} parent=53 // loop_exit
                  _
              $region54: #{conv_bnr_forward.1} parent=31 // pred_fallthru
                _
            $region32: #{conv_bnr_forward.1} parent=27 // pred_fallthru
              _
            // Predicated region
            $region33: #{conv_bnr_forward.1} parent=27 // pred_check
              _
            $region34: #{conv_bnr_forward.1} parent=27 // pred_check_branch
              %239 = sbr.rel (0) target = $region36
            $region35: #{conv_bnr_forward.1} parent=27 // pred_region
              %s241 = sdiv.u32.pop %s232, 24
              %s242 = srem.u32.pop %s232, 24
              // While loop
              $region37: #{conv_bnr_forward.1} parent=35 // loop_pre_header
                _
              $region38: #{conv_bnr_forward.1} parent=35 // loop_header
                %s244 = sphi 0, %s246
                %p245 = scmp.ge.s32.totalorder %s244, %s241
                %s249 = sphi 0, %s302
                %s250 = sphi %s231, %s305
                %s251 = sphi %s218, %s306
              $region39: #{conv_bnr_forward.1} parent=35 // loop_header_branch
                %248 = sbr.rel (%p245) target = $region43
              $region40: #{conv_bnr_forward.1} parent=35 // loop_body
                %v252 = vld [vmem:[%s250] sm:$0xf]
                %253 = vst [vmem:[%s251] sm:$0xf] %v252
                %v254 = vld [vmem:[%s250 + $0x8] sm:$0xf]
                %255 = vst [vmem:[%s251 + $0x4] sm:$0xf] %v254
                %v256 = vld [vmem:[%s250 + $0x10] sm:$0xf]
                %257 = vst [vmem:[%s251 + $0x8] sm:$0xf] %v256
                %v258 = vld [vmem:[%s250 + $0x18] sm:$0xf]
                %259 = vst [vmem:[%s251 + $0xc] sm:$0xf] %v258
                %v260 = vld [vmem:[%s250 + $0x20] sm:$0xf]
                %261 = vst [vmem:[%s251 + $0x10] sm:$0xf] %v260
                %v262 = vld [vmem:[%s250 + $0x28] sm:$0xf]
                %263 = vst [vmem:[%s251 + $0x14] sm:$0xf] %v262
                %v264 = vld [vmem:[%s250 + $0x30] sm:$0xf]
                %265 = vst [vmem:[%s251 + $0x18] sm:$0xf] %v264
                %v266 = vld [vmem:[%s250 + $0x38] sm:$0xf]
                %267 = vst [vmem:[%s251 + $0x1c] sm:$0xf] %v266
                %v268 = vld [vmem:[%s250 + $0x40] sm:$0xf]
                %269 = vst [vmem:[%s251 + $0x20] sm:$0xf] %v268
                %v270 = vld [vmem:[%s250 + $0x48] sm:$0xf]
                %271 = vst [vmem:[%s251 + $0x24] sm:$0xf] %v270
                %v272 = vld [vmem:[%s250 + $0x50] sm:$0xf]
                %273 = vst [vmem:[%s251 + $0x28] sm:$0xf] %v272
                %v274 = vld [vmem:[%s250 + $0x58] sm:$0xf]
                %275 = vst [vmem:[%s251 + $0x2c] sm:$0xf] %v274
                %v276 = vld [vmem:[%s250 + $0x60] sm:$0xf]
                %277 = vst [vmem:[%s251 + $0x30] sm:$0xf] %v276
                %v278 = vld [vmem:[%s250 + $0x68] sm:$0xf]
                %279 = vst [vmem:[%s251 + $0x34] sm:$0xf] %v278
                %v280 = vld [vmem:[%s250 + $0x70] sm:$0xf]
                %281 = vst [vmem:[%s251 + $0x38] sm:$0xf] %v280
                %v282 = vld [vmem:[%s250 + $0x78] sm:$0xf]
                %283 = vst [vmem:[%s251 + $0x3c] sm:$0xf] %v282
                %v284 = vld [vmem:[%s250 + $0x80] sm:$0xf]
                %285 = vst [vmem:[%s251 + $0x40] sm:$0xf] %v284
                %v286 = vld [vmem:[%s250 + $0x88] sm:$0xf]
                %287 = vst [vmem:[%s251 + $0x44] sm:$0xf] %v286
                %v288 = vld [vmem:[%s250 + $0x90] sm:$0xf]
                %289 = vst [vmem:[%s251 + $0x48] sm:$0xf] %v288
                %v290 = vld [vmem:[%s250 + $0x98] sm:$0xf]
                %291 = vst [vmem:[%s251 + $0x4c] sm:$0xf] %v290
                %v292 = vld [vmem:[%s250 + $0xa0] sm:$0xf]
                %293 = vst [vmem:[%s251 + $0x50] sm:$0xf] %v292
                %v294 = vld [vmem:[%s250 + $0xa8] sm:$0xf]
                %295 = vst [vmem:[%s251 + $0x54] sm:$0xf] %v294
                %v296 = vld [vmem:[%s250 + $0xb0] sm:$0xf]
                %297 = vst [vmem:[%s251 + $0x58] sm:$0xf] %v296
                %v298 = vld [vmem:[%s250 + $0xb8] sm:$0xf]
                %299 = vst [vmem:[%s251 + $0x5c] sm:$0xf] %v298
                %s300 = sadd.s32 1, %s249
                %p301 = scmp.ge.s32.totalorder %s300, %s241
                %s302 = scalar_select %p301, 0, %s300
                %s303 = smul.u32 %s302, 192
                %s304 = smul.u32 %s302, 96
                %s305 = scalar_lea.vmem %s231, %s303
                %s306 = scalar_lea.vmem %s218, %s304 [#allocation3]
              $region41: #{conv_bnr_forward.1} parent=35 // loop_footer
                %s246 = sadd.s32 %s244, 1
              $region42: #{conv_bnr_forward.1} parent=35 // loop_footer_branch
                %243 = sbr.rel target = $region38
              $region43: #{conv_bnr_forward.1} parent=35 // loop_exit
                _
              %s307 = sdiv.u32.pop %s232, 24
              %s308 = srem.u32.pop %s232, 24
              %s309 = smul.u32 %s307, 24
              %s310 = smul.u32 8, %s309
              %s311 = scalar_lea.vmem %s231, %s310
              %s312 = smul.u32 4, %s309
              %s313 = scalar_lea.vmem %s218, %s312 [#allocation3]
              // While loop
              $region44: #{conv_bnr_forward.1} parent=35 // loop_pre_header
                _
              $region45: #{conv_bnr_forward.1} parent=35 // loop_header
                %s315 = sphi 0, %s317
                %p316 = scmp.ge.s32.totalorder %s315, %s308
                %s320 = sphi 0, %s327
                %s321 = sphi %s311, %s330
                %s322 = sphi %s313, %s331
              $region46: #{conv_bnr_forward.1} parent=35 // loop_header_branch
                %319 = sbr.rel (%p316) target = $region50
              $region47: #{conv_bnr_forward.1} parent=35 // loop_body
                %v323 = vld [vmem:[%s321] sm:$0xf]
                %324 = vst [vmem:[%s322] sm:$0xf] %v323
                %s325 = sadd.s32 1, %s320
                %p326 = scmp.ge.s32.totalorder %s325, %s308
                %s327 = scalar_select %p326, 0, %s325
                %s328 = smul.u32 %s327, 8
                %s329 = smul.u32 %s327, 4
                %s330 = scalar_lea.vmem %s311, %s328
                %s331 = scalar_lea.vmem %s313, %s329 [#allocation3]
              $region48: #{conv_bnr_forward.1} parent=35 // loop_footer
                %s317 = sadd.s32 %s315, 1
              $region49: #{conv_bnr_forward.1} parent=35 // loop_footer_branch
                %314 = sbr.rel target = $region45
              $region50: #{conv_bnr_forward.1} parent=35 // loop_exit
                _
            $region36: #{conv_bnr_forward.1} parent=27 // pred_fallthru
              _
          $region28: #{conv_bnr_forward.1} parent=23 // pred_fallthru
            _
          %426 = vnop
        $region24: #{conv_bnr_forward.1} parent=19 // pred_fallthru
          _
        // Predicated region
        $region69: #{conv_bnr_forward.1} parent=19 // pred_check
          %p427 = pneg %p97
        $region70: #{conv_bnr_forward.1} parent=19 // pred_check_branch
          %429 = sbr.rel (%p427) target = $region72
        $region71: #{conv_bnr_forward.1} parent=19 // pred_region
          %s430 = sand.u32 %s87, 1
          %s431 = sand.u32 %s87, 1
          %s432 = smul.addr %s431, 24
          %s433 = scalar_lea.vmem [#allocation4], %s432
          %s434 = sadd.s32 %s21, 1
          %s435 = smul.u32 %s434, 4
          %s436 = smul.u32 2, %s435
          %s437 = smul.addr %s436, 6
          %s438 = sadd.s32 %s23, %s437
          %s439 = smul.addr %s20, 108
          %s440 = sadd.s32 %s438, %s439
          %s441 = smul.addr %s440, 4
          %s442 = scalar_lea.vmem %s1, %s441
          // Predicated region
          $region73: #{conv_bnr_forward.1} parent=71 // pred_check
            _
          $region74: #{conv_bnr_forward.1} parent=71 // pred_check_branch
            %444 = sbr.rel (0) target = $region76
          $region75: #{conv_bnr_forward.1} parent=71 // pred_region
            // Predicated region
            $region77: #{conv_bnr_forward.1} parent=75 // pred_check
              _
            $region78: #{conv_bnr_forward.1} parent=75 // pred_check_branch
              %446 = sbr.rel target = $region80
            $region79: #{conv_bnr_forward.1} parent=75 // pred_region
              // Predicated region
              $region92: #{conv_bnr_forward.1} parent=79 // pred_check
                _
              $region93: #{conv_bnr_forward.1} parent=79 // pred_check_branch
                %471 = sbr.rel (0) target = $region95
              $region94: #{conv_bnr_forward.1} parent=79 // pred_region
                loop: start=0, step=1, limit=1
                $region96: #{conv_bnr_forward.1} parent=94 // loop_pre_header
                  _
                $region97: #{conv_bnr_forward.1} parent=94 // loop_header
                  %s473 = sphi 0, %s477
                  %p474 = scmp.ge.s32.totalorder %s473, 1
                  %s478 = sphi %s442, %s442
                  %s479 = sphi %s433, %s433
                $region98: #{conv_bnr_forward.1} parent=94 // loop_header_branch
                  %476 = sbr.rel (%p474) target = $region102
                $region99: #{conv_bnr_forward.1} parent=94 // loop_body
                  _
                $region100: #{conv_bnr_forward.1} parent=94 // loop_footer
                  %s477 = sadd.s32 1, %s473
                $region101: #{conv_bnr_forward.1} parent=94 // loop_footer_branch
                  %472 = sbr.rel target = $region97
                $region102: #{conv_bnr_forward.1} parent=94 // loop_exit
                  _
                loop: start=0, step=1, limit=1
                $region103: #{conv_bnr_forward.1} parent=94 // loop_pre_header
                  _
                $region104: #{conv_bnr_forward.1} parent=94 // loop_header
                  %s482 = sphi 0, %s486
                  %p483 = scmp.ge.s32.totalorder %s482, 1
                  %s487 = sphi %s442, %s442
                  %s488 = sphi %s433, %s433
                $region105: #{conv_bnr_forward.1} parent=94 // loop_header_branch
                  %485 = sbr.rel (%p483) target = $region109
                $region106: #{conv_bnr_forward.1} parent=94 // loop_body
                  %v489 = vld [vmem:[%s487] sm:$0xf]
                  %490 = vst [vmem:[%s488] sm:$0xf] %v489
                  %v491 = vld [vmem:[%s487 + $0x8] sm:$0xf]
                  %492 = vst [vmem:[%s488 + $0x4] sm:$0xf] %v491
                  %v493 = vld [vmem:[%s487 + $0x10] sm:$0xf]
                  %494 = vst [vmem:[%s488 + $0x8] sm:$0xf] %v493
                  %v495 = vld [vmem:[%s487 + $0x18] sm:$0xf]
                  %496 = vst [vmem:[%s488 + $0xc] sm:$0xf] %v495
                  %v497 = vld [vmem:[%s487 + $0x20] sm:$0xf]
                  %498 = vst [vmem:[%s488 + $0x10] sm:$0xf] %v497
                  %v499 = vld [vmem:[%s487 + $0x28] sm:$0xf]
                  %500 = vst [vmem:[%s488 + $0x14] sm:$0xf] %v499
                $region107: #{conv_bnr_forward.1} parent=94 // loop_footer
                  %s486 = sadd.s32 1, %s482
                $region108: #{conv_bnr_forward.1} parent=94 // loop_footer_branch
                  %481 = sbr.rel target = $region104
                $region109: #{conv_bnr_forward.1} parent=94 // loop_exit
                  _
              $region95: #{conv_bnr_forward.1} parent=79 // pred_fallthru
                _
            $region80: #{conv_bnr_forward.1} parent=75 // pred_fallthru
              _
            // Predicated region
            $region81: #{conv_bnr_forward.1} parent=75 // pred_check
              _
            $region82: #{conv_bnr_forward.1} parent=75 // pred_check_branch
              %448 = sbr.rel (0) target = $region84
            $region83: #{conv_bnr_forward.1} parent=75 // pred_region
              loop: start=0, step=1, limit=1
              $region85: #{conv_bnr_forward.1} parent=83 // loop_pre_header
                _
              $region86: #{conv_bnr_forward.1} parent=83 // loop_header
                %s451 = sphi 0, %s455
                %p452 = scmp.ge.s32.totalorder %s451, 1
                %s456 = sphi %s442, %s442
                %s457 = sphi %s433, %s433
              $region87: #{conv_bnr_forward.1} parent=83 // loop_header_branch
                %454 = sbr.rel (%p452) target = $region91
              $region88: #{conv_bnr_forward.1} parent=83 // loop_body
                %v458 = vld [vmem:[%s456] sm:$0xf]
                %459 = vst [vmem:[%s457] sm:$0xf] %v458
                %v460 = vld [vmem:[%s456 + $0x8] sm:$0xf]
                %461 = vst [vmem:[%s457 + $0x4] sm:$0xf] %v460
                %v462 = vld [vmem:[%s456 + $0x10] sm:$0xf]
                %463 = vst [vmem:[%s457 + $0x8] sm:$0xf] %v462
                %v464 = vld [vmem:[%s456 + $0x18] sm:$0xf]
                %465 = vst [vmem:[%s457 + $0xc] sm:$0xf] %v464
                %v466 = vld [vmem:[%s456 + $0x20] sm:$0xf]
                %467 = vst [vmem:[%s457 + $0x10] sm:$0xf] %v466
                %v468 = vld [vmem:[%s456 + $0x28] sm:$0xf]
                %469 = vst [vmem:[%s457 + $0x14] sm:$0xf] %v468
              $region89: #{conv_bnr_forward.1} parent=83 // loop_footer
                %s455 = sadd.s32 1, %s451
              $region90: #{conv_bnr_forward.1} parent=83 // loop_footer_branch
                %450 = sbr.rel target = $region86
              $region91: #{conv_bnr_forward.1} parent=83 // loop_exit
                _
            $region84: #{conv_bnr_forward.1} parent=75 // pred_fallthru
              _
          $region76: #{conv_bnr_forward.1} parent=71 // pred_fallthru
            _
          %501 = vnop
        $region72: #{conv_bnr_forward.1} parent=19 // pred_fallthru
          _
        // Predicated region
        $region110: #{conv_bnr_forward.1} parent=19 // pred_check
          %p502 = pneg %p125
        $region111: #{conv_bnr_forward.1} parent=19 // pred_check_branch
          %504 = sbr.rel (%p502) target = $region113
        $region112: #{conv_bnr_forward.1} parent=19 // pred_region
          %s505 = sand.u32 %s115, 1
          %s506 = sand.u32 %s115, 1
          %s507 = smul.addr %s506, 576
          %s508 = scalar_lea.vmem [#allocation5], %s507
          %s509 = smul.u32 16, %s23
          %s510 = sadd.s32 %s22, %s509
          %s511 = smul.addr %s510, 4
          %s512 = scalar_lea.vmem %s2, %s511
          // Predicated region
          $region114: #{conv_bnr_forward.1} parent=112 // pred_check
            _
          $region115: #{conv_bnr_forward.1} parent=112 // pred_check_branch
            %514 = sbr.rel (0) target = $region117
          $region116: #{conv_bnr_forward.1} parent=112 // pred_region
            // Predicated region
            $region118: #{conv_bnr_forward.1} parent=116 // pred_check
              _
            $region119: #{conv_bnr_forward.1} parent=116 // pred_check_branch
              %516 = sbr.rel target = $region121
            $region120: #{conv_bnr_forward.1} parent=116 // pred_region
              // Predicated region
              $region133: #{conv_bnr_forward.1} parent=120 // pred_check
                _
              $region134: #{conv_bnr_forward.1} parent=120 // pred_check_branch
                %817 = sbr.rel (0) target = $region136
              $region135: #{conv_bnr_forward.1} parent=120 // pred_region
                loop: start=0, step=1, limit=1
                $region137: #{conv_bnr_forward.1} parent=135 // loop_pre_header
                  _
                $region138: #{conv_bnr_forward.1} parent=135 // loop_header
                  %s819 = sphi 0, %s823
                  %p820 = scmp.ge.s32.totalorder %s819, 1
                  %s824 = sphi %s512, %s512
                  %s825 = sphi %s508, %s508
                $region139: #{conv_bnr_forward.1} parent=135 // loop_header_branch
                  %822 = sbr.rel (%p820) target = $region143
                $region140: #{conv_bnr_forward.1} parent=135 // loop_body
                  _
                $region141: #{conv_bnr_forward.1} parent=135 // loop_footer
                  %s823 = sadd.s32 1, %s819
                $region142: #{conv_bnr_forward.1} parent=135 // loop_footer_branch
                  %818 = sbr.rel target = $region138
                $region143: #{conv_bnr_forward.1} parent=135 // loop_exit
                  _
                loop: start=0, step=1, limit=1
                $region144: #{conv_bnr_forward.1} parent=135 // loop_pre_header
                  _
                $region145: #{conv_bnr_forward.1} parent=135 // loop_header
                  %s828 = sphi 0, %s832
                  %p829 = scmp.ge.s32.totalorder %s828, 1
                  %s833 = sphi %s512, %s512
                  %s834 = sphi %s508, %s508
                $region146: #{conv_bnr_forward.1} parent=135 // loop_header_branch
                  %831 = sbr.rel (%p829) target = $region150
                $region147: #{conv_bnr_forward.1} parent=135 // loop_body
                  %v835 = vld [vmem:[%s833] sm:$0xf]
                  %836 = vst [vmem:[%s834] sm:$0xf] %v835
                  %v837 = vld [vmem:[%s833 + $0x4] sm:$0xf]
                  %838 = vst [vmem:[%s834 + $0x4] sm:$0xf] %v837
                  %v839 = vld [vmem:[%s833 + $0x8] sm:$0xf]
                  %840 = vst [vmem:[%s834 + $0x8] sm:$0xf] %v839
                  %v841 = vld [vmem:[%s833 + $0xc] sm:$0xf]
                  %842 = vst [vmem:[%s834 + $0xc] sm:$0xf] %v841
                  %v843 = vld [vmem:[%s833 + $0x10] sm:$0xf]
                  %844 = vst [vmem:[%s834 + $0x10] sm:$0xf] %v843
                  %v845 = vld [vmem:[%s833 + $0x14] sm:$0xf]
                  %846 = vst [vmem:[%s834 + $0x14] sm:$0xf] %v845
                  %v847 = vld [vmem:[%s833 + $0x18] sm:$0xf]
                  %848 = vst [vmem:[%s834 + $0x18] sm:$0xf] %v847
                  %v849 = vld [vmem:[%s833 + $0x1c] sm:$0xf]
                  %850 = vst [vmem:[%s834 + $0x1c] sm:$0xf] %v849
                  %v851 = vld [vmem:[%s833 + $0x20] sm:$0xf]
                  %852 = vst [vmem:[%s834 + $0x20] sm:$0xf] %v851
                  %v853 = vld [vmem:[%s833 + $0x24] sm:$0xf]
                  %854 = vst [vmem:[%s834 + $0x24] sm:$0xf] %v853
                  %v855 = vld [vmem:[%s833 + $0x28] sm:$0xf]
                  %856 = vst [vmem:[%s834 + $0x28] sm:$0xf] %v855
                  %v857 = vld [vmem:[%s833 + $0x2c] sm:$0xf]
                  %858 = vst [vmem:[%s834 + $0x2c] sm:$0xf] %v857
                  %v859 = vld [vmem:[%s833 + $0x30] sm:$0xf]
                  %860 = vst [vmem:[%s834 + $0x30] sm:$0xf] %v859
                  %v861 = vld [vmem:[%s833 + $0x34] sm:$0xf]
                  %862 = vst [vmem:[%s834 + $0x34] sm:$0xf] %v861
                  %v863 = vld [vmem:[%s833 + $0x38] sm:$0xf]
                  %864 = vst [vmem:[%s834 + $0x38] sm:$0xf] %v863
                  %v865 = vld [vmem:[%s833 + $0x3c] sm:$0xf]
                  %866 = vst [vmem:[%s834 + $0x3c] sm:$0xf] %v865
                  %v867 = vld [vmem:[%s833 + $0x80] sm:$0xf]
                  %868 = vst [vmem:[%s834 + $0x40] sm:$0xf] %v867
                  %v869 = vld [vmem:[%s833 + $0x84] sm:$0xf]
                  %870 = vst [vmem:[%s834 + $0x44] sm:$0xf] %v869
                  %v871 = vld [vmem:[%s833 + $0x88] sm:$0xf]
                  %872 = vst [vmem:[%s834 + $0x48] sm:$0xf] %v871
                  %v873 = vld [vmem:[%s833 + $0x8c] sm:$0xf]
                  %874 = vst [vmem:[%s834 + $0x4c] sm:$0xf] %v873
                  %v875 = vld [vmem:[%s833 + $0x90] sm:$0xf]
                  %876 = vst [vmem:[%s834 + $0x50] sm:$0xf] %v875
                  %v877 = vld [vmem:[%s833 + $0x94] sm:$0xf]
                  %878 = vst [vmem:[%s834 + $0x54] sm:$0xf] %v877
                  %v879 = vld [vmem:[%s833 + $0x98] sm:$0xf]
                  %880 = vst [vmem:[%s834 + $0x58] sm:$0xf] %v879
                  %v881 = vld [vmem:[%s833 + $0x9c] sm:$0xf]
                  %882 = vst [vmem:[%s834 + $0x5c] sm:$0xf] %v881
                  %v883 = vld [vmem:[%s833 + $0xa0] sm:$0xf]
                  %884 = vst [vmem:[%s834 + $0x60] sm:$0xf] %v883
                  %v885 = vld [vmem:[%s833 + $0xa4] sm:$0xf]
                  %886 = vst [vmem:[%s834 + $0x64] sm:$0xf] %v885
                  %v887 = vld [vmem:[%s833 + $0xa8] sm:$0xf]
                  %888 = vst [vmem:[%s834 + $0x68] sm:$0xf] %v887
                  %v889 = vld [vmem:[%s833 + $0xac] sm:$0xf]
                  %890 = vst [vmem:[%s834 + $0x6c] sm:$0xf] %v889
                  %v891 = vld [vmem:[%s833 + $0xb0] sm:$0xf]
                  %892 = vst [vmem:[%s834 + $0x70] sm:$0xf] %v891
                  %v893 = vld [vmem:[%s833 + $0xb4] sm:$0xf]
                  %894 = vst [vmem:[%s834 + $0x74] sm:$0xf] %v893
                  %v895 = vld [vmem:[%s833 + $0xb8] sm:$0xf]
                  %896 = vst [vmem:[%s834 + $0x78] sm:$0xf] %v895
                  %v897 = vld [vmem:[%s833 + $0xbc] sm:$0xf]
                  %898 = vst [vmem:[%s834 + $0x7c] sm:$0xf] %v897
                  %v899 = vld [vmem:[%s833 + $0x100] sm:$0xf]
                  %900 = vst [vmem:[%s834 + $0x80] sm:$0xf] %v899
                  %v901 = vld [vmem:[%s833 + $0x104] sm:$0xf]
                  %902 = vst [vmem:[%s834 + $0x84] sm:$0xf] %v901
                  %v903 = vld [vmem:[%s833 + $0x108] sm:$0xf]
                  %904 = vst [vmem:[%s834 + $0x88] sm:$0xf] %v903
                  %v905 = vld [vmem:[%s833 + $0x10c] sm:$0xf]
                  %906 = vst [vmem:[%s834 + $0x8c] sm:$0xf] %v905
                  %v907 = vld [vmem:[%s833 + $0x110] sm:$0xf]
                  %908 = vst [vmem:[%s834 + $0x90] sm:$0xf] %v907
                  %v909 = vld [vmem:[%s833 + $0x114] sm:$0xf]
                  %910 = vst [vmem:[%s834 + $0x94] sm:$0xf] %v909
                  %v911 = vld [vmem:[%s833 + $0x118] sm:$0xf]
                  %912 = vst [vmem:[%s834 + $0x98] sm:$0xf] %v911
                  %v913 = vld [vmem:[%s833 + $0x11c] sm:$0xf]
                  %914 = vst [vmem:[%s834 + $0x9c] sm:$0xf] %v913
                  %v915 = vld [vmem:[%s833 + $0x120] sm:$0xf]
                  %916 = vst [vmem:[%s834 + $0xa0] sm:$0xf] %v915
                  %v917 = vld [vmem:[%s833 + $0x124] sm:$0xf]
                  %918 = vst [vmem:[%s834 + $0xa4] sm:$0xf] %v917
                  %v919 = vld [vmem:[%s833 + $0x128] sm:$0xf]
                  %920 = vst [vmem:[%s834 + $0xa8] sm:$0xf] %v919
                  %v921 = vld [vmem:[%s833 + $0x12c] sm:$0xf]
                  %922 = vst [vmem:[%s834 + $0xac] sm:$0xf] %v921
                  %v923 = vld [vmem:[%s833 + $0x130] sm:$0xf]
                  %924 = vst [vmem:[%s834 + $0xb0] sm:$0xf] %v923
                  %v925 = vld [vmem:[%s833 + $0x134] sm:$0xf]
                  %926 = vst [vmem:[%s834 + $0xb4] sm:$0xf] %v925
                  %v927 = vld [vmem:[%s833 + $0x138] sm:$0xf]
                  %928 = vst [vmem:[%s834 + $0xb8] sm:$0xf] %v927
                  %v929 = vld [vmem:[%s833 + $0x13c] sm:$0xf]
                  %930 = vst [vmem:[%s834 + $0xbc] sm:$0xf] %v929
                  %v931 = vld [vmem:[%s833 + $0x180] sm:$0xf]
                  %932 = vst [vmem:[%s834 + $0xc0] sm:$0xf] %v931
                  %v933 = vld [vmem:[%s833 + $0x184] sm:$0xf]
                  %934 = vst [vmem:[%s834 + $0xc4] sm:$0xf] %v933
                  %v935 = vld [vmem:[%s833 + $0x188] sm:$0xf]
                  %936 = vst [vmem:[%s834 + $0xc8] sm:$0xf] %v935
                  %v937 = vld [vmem:[%s833 + $0x18c] sm:$0xf]
                  %938 = vst [vmem:[%s834 + $0xcc] sm:$0xf] %v937
                  %v939 = vld [vmem:[%s833 + $0x190] sm:$0xf]
                  %940 = vst [vmem:[%s834 + $0xd0] sm:$0xf] %v939
                  %v941 = vld [vmem:[%s833 + $0x194] sm:$0xf]
                  %942 = vst [vmem:[%s834 + $0xd4] sm:$0xf] %v941
                  %v943 = vld [vmem:[%s833 + $0x198] sm:$0xf]
                  %944 = vst [vmem:[%s834 + $0xd8] sm:$0xf] %v943
                  %v945 = vld [vmem:[%s833 + $0x19c] sm:$0xf]
                  %946 = vst [vmem:[%s834 + $0xdc] sm:$0xf] %v945
                  %v947 = vld [vmem:[%s833 + $0x1a0] sm:$0xf]
                  %948 = vst [vmem:[%s834 + $0xe0] sm:$0xf] %v947
                  %v949 = vld [vmem:[%s833 + $0x1a4] sm:$0xf]
                  %950 = vst [vmem:[%s834 + $0xe4] sm:$0xf] %v949
                  %v951 = vld [vmem:[%s833 + $0x1a8] sm:$0xf]
                  %952 = vst [vmem:[%s834 + $0xe8] sm:$0xf] %v951
                  %v953 = vld [vmem:[%s833 + $0x1ac] sm:$0xf]
                  %954 = vst [vmem:[%s834 + $0xec] sm:$0xf] %v953
                  %v955 = vld [vmem:[%s833 + $0x1b0] sm:$0xf]
                  %956 = vst [vmem:[%s834 + $0xf0] sm:$0xf] %v955
                  %v957 = vld [vmem:[%s833 + $0x1b4] sm:$0xf]
                  %958 = vst [vmem:[%s834 + $0xf4] sm:$0xf] %v957
                  %v959 = vld [vmem:[%s833 + $0x1b8] sm:$0xf]
                  %960 = vst [vmem:[%s834 + $0xf8] sm:$0xf] %v959
                  %v961 = vld [vmem:[%s833 + $0x1bc] sm:$0xf]
                  %962 = vst [vmem:[%s834 + $0xfc] sm:$0xf] %v961
                  %v963 = vld [vmem:[%s833 + $0x200] sm:$0xf]
                  %964 = vst [vmem:[%s834 + $0x100] sm:$0xf] %v963
                  %v965 = vld [vmem:[%s833 + $0x204] sm:$0xf]
                  %966 = vst [vmem:[%s834 + $0x104] sm:$0xf] %v965
                  %v967 = vld [vmem:[%s833 + $0x208] sm:$0xf]
                  %968 = vst [vmem:[%s834 + $0x108] sm:$0xf] %v967
                  %v969 = vld [vmem:[%s833 + $0x20c] sm:$0xf]
                  %970 = vst [vmem:[%s834 + $0x10c] sm:$0xf] %v969
                  %v971 = vld [vmem:[%s833 + $0x210] sm:$0xf]
                  %972 = vst [vmem:[%s834 + $0x110] sm:$0xf] %v971
                  %v973 = vld [vmem:[%s833 + $0x214] sm:$0xf]
                  %974 = vst [vmem:[%s834 + $0x114] sm:$0xf] %v973
                  %v975 = vld [vmem:[%s833 + $0x218] sm:$0xf]
                  %976 = vst [vmem:[%s834 + $0x118] sm:$0xf] %v975
                  %v977 = vld [vmem:[%s833 + $0x21c] sm:$0xf]
                  %978 = vst [vmem:[%s834 + $0x11c] sm:$0xf] %v977
                  %v979 = vld [vmem:[%s833 + $0x220] sm:$0xf]
                  %980 = vst [vmem:[%s834 + $0x120] sm:$0xf] %v979
                  %v981 = vld [vmem:[%s833 + $0x224] sm:$0xf]
                  %982 = vst [vmem:[%s834 + $0x124] sm:$0xf] %v981
                  %v983 = vld [vmem:[%s833 + $0x228] sm:$0xf]
                  %984 = vst [vmem:[%s834 + $0x128] sm:$0xf] %v983
                  %v985 = vld [vmem:[%s833 + $0x22c] sm:$0xf]
                  %986 = vst [vmem:[%s834 + $0x12c] sm:$0xf] %v985
                  %v987 = vld [vmem:[%s833 + $0x230] sm:$0xf]
                  %988 = vst [vmem:[%s834 + $0x130] sm:$0xf] %v987
                  %v989 = vld [vmem:[%s833 + $0x234] sm:$0xf]
                  %990 = vst [vmem:[%s834 + $0x134] sm:$0xf] %v989
                  %v991 = vld [vmem:[%s833 + $0x238] sm:$0xf]
                  %992 = vst [vmem:[%s834 + $0x138] sm:$0xf] %v991
                  %v993 = vld [vmem:[%s833 + $0x23c] sm:$0xf]
                  %994 = vst [vmem:[%s834 + $0x13c] sm:$0xf] %v993
                  %v995 = vld [vmem:[%s833 + $0x280] sm:$0xf]
                  %996 = vst [vmem:[%s834 + $0x140] sm:$0xf] %v995
                  %v997 = vld [vmem:[%s833 + $0x284] sm:$0xf]
                  %998 = vst [vmem:[%s834 + $0x144] sm:$0xf] %v997
                  %v999 = vld [vmem:[%s833 + $0x288] sm:$0xf]
                  %1000 = vst [vmem:[%s834 + $0x148] sm:$0xf] %v999
                  %v1001 = vld [vmem:[%s833 + $0x28c] sm:$0xf]
                  %1002 = vst [vmem:[%s834 + $0x14c] sm:$0xf] %v1001
                  %v1003 = vld [vmem:[%s833 + $0x290] sm:$0xf]
                  %1004 = vst [vmem:[%s834 + $0x150] sm:$0xf] %v1003
                  %v1005 = vld [vmem:[%s833 + $0x294] sm:$0xf]
                  %1006 = vst [vmem:[%s834 + $0x154] sm:$0xf] %v1005
                  %v1007 = vld [vmem:[%s833 + $0x298] sm:$0xf]
                  %1008 = vst [vmem:[%s834 + $0x158] sm:$0xf] %v1007
                  %v1009 = vld [vmem:[%s833 + $0x29c] sm:$0xf]
                  %1010 = vst [vmem:[%s834 + $0x15c] sm:$0xf] %v1009
                  %v1011 = vld [vmem:[%s833 + $0x2a0] sm:$0xf]
                  %1012 = vst [vmem:[%s834 + $0x160] sm:$0xf] %v1011
                  %v1013 = vld [vmem:[%s833 + $0x2a4] sm:$0xf]
                  %1014 = vst [vmem:[%s834 + $0x164] sm:$0xf] %v1013
                  %v1015 = vld [vmem:[%s833 + $0x2a8] sm:$0xf]
                  %1016 = vst [vmem:[%s834 + $0x168] sm:$0xf] %v1015
                  %v1017 = vld [vmem:[%s833 + $0x2ac] sm:$0xf]
                  %1018 = vst [vmem:[%s834 + $0x16c] sm:$0xf] %v1017
                  %v1019 = vld [vmem:[%s833 + $0x2b0] sm:$0xf]
                  %1020 = vst [vmem:[%s834 + $0x170] sm:$0xf] %v1019
                  %v1021 = vld [vmem:[%s833 + $0x2b4] sm:$0xf]
                  %1022 = vst [vmem:[%s834 + $0x174] sm:$0xf] %v1021
                  %v1023 = vld [vmem:[%s833 + $0x2b8] sm:$0xf]
                  %1024 = vst [vmem:[%s834 + $0x178] sm:$0xf] %v1023
                  %v1025 = vld [vmem:[%s833 + $0x2bc] sm:$0xf]
                  %1026 = vst [vmem:[%s834 + $0x17c] sm:$0xf] %v1025
                  %v1027 = vld [vmem:[%s833 + $0x300] sm:$0xf]
                  %1028 = vst [vmem:[%s834 + $0x180] sm:$0xf] %v1027
                  %v1029 = vld [vmem:[%s833 + $0x304] sm:$0xf]
                  %1030 = vst [vmem:[%s834 + $0x184] sm:$0xf] %v1029
                  %v1031 = vld [vmem:[%s833 + $0x308] sm:$0xf]
                  %1032 = vst [vmem:[%s834 + $0x188] sm:$0xf] %v1031
                  %v1033 = vld [vmem:[%s833 + $0x30c] sm:$0xf]
                  %1034 = vst [vmem:[%s834 + $0x18c] sm:$0xf] %v1033
                  %v1035 = vld [vmem:[%s833 + $0x310] sm:$0xf]
                  %1036 = vst [vmem:[%s834 + $0x190] sm:$0xf] %v1035
                  %v1037 = vld [vmem:[%s833 + $0x314] sm:$0xf]
                  %1038 = vst [vmem:[%s834 + $0x194] sm:$0xf] %v1037
                  %v1039 = vld [vmem:[%s833 + $0x318] sm:$0xf]
                  %1040 = vst [vmem:[%s834 + $0x198] sm:$0xf] %v1039
                  %v1041 = vld [vmem:[%s833 + $0x31c] sm:$0xf]
                  %1042 = vst [vmem:[%s834 + $0x19c] sm:$0xf] %v1041
                  %v1043 = vld [vmem:[%s833 + $0x320] sm:$0xf]
                  %1044 = vst [vmem:[%s834 + $0x1a0] sm:$0xf] %v1043
                  %v1045 = vld [vmem:[%s833 + $0x324] sm:$0xf]
                  %1046 = vst [vmem:[%s834 + $0x1a4] sm:$0xf] %v1045
                  %v1047 = vld [vmem:[%s833 + $0x328] sm:$0xf]
                  %1048 = vst [vmem:[%s834 + $0x1a8] sm:$0xf] %v1047
                  %v1049 = vld [vmem:[%s833 + $0x32c] sm:$0xf]
                  %1050 = vst [vmem:[%s834 + $0x1ac] sm:$0xf] %v1049
                  %v1051 = vld [vmem:[%s833 + $0x330] sm:$0xf]
                  %1052 = vst [vmem:[%s834 + $0x1b0] sm:$0xf] %v1051
                  %v1053 = vld [vmem:[%s833 + $0x334] sm:$0xf]
                  %1054 = vst [vmem:[%s834 + $0x1b4] sm:$0xf] %v1053
                  %v1055 = vld [vmem:[%s833 + $0x338] sm:$0xf]
                  %1056 = vst [vmem:[%s834 + $0x1b8] sm:$0xf] %v1055
                  %v1057 = vld [vmem:[%s833 + $0x33c] sm:$0xf]
                  %1058 = vst [vmem:[%s834 + $0x1bc] sm:$0xf] %v1057
                  %v1059 = vld [vmem:[%s833 + $0x380] sm:$0xf]
                  %1060 = vst [vmem:[%s834 + $0x1c0] sm:$0xf] %v1059
                  %v1061 = vld [vmem:[%s833 + $0x384] sm:$0xf]
                  %1062 = vst [vmem:[%s834 + $0x1c4] sm:$0xf] %v1061
                  %v1063 = vld [vmem:[%s833 + $0x388] sm:$0xf]
                  %1064 = vst [vmem:[%s834 + $0x1c8] sm:$0xf] %v1063
                  %v1065 = vld [vmem:[%s833 + $0x38c] sm:$0xf]
                  %1066 = vst [vmem:[%s834 + $0x1cc] sm:$0xf] %v1065
                  %v1067 = vld [vmem:[%s833 + $0x390] sm:$0xf]
                  %1068 = vst [vmem:[%s834 + $0x1d0] sm:$0xf] %v1067
                  %v1069 = vld [vmem:[%s833 + $0x394] sm:$0xf]
                  %1070 = vst [vmem:[%s834 + $0x1d4] sm:$0xf] %v1069
                  %v1071 = vld [vmem:[%s833 + $0x398] sm:$0xf]
                  %1072 = vst [vmem:[%s834 + $0x1d8] sm:$0xf] %v1071
                  %v1073 = vld [vmem:[%s833 + $0x39c] sm:$0xf]
                  %1074 = vst [vmem:[%s834 + $0x1dc] sm:$0xf] %v1073
                  %v1075 = vld [vmem:[%s833 + $0x3a0] sm:$0xf]
                  %1076 = vst [vmem:[%s834 + $0x1e0] sm:$0xf] %v1075
                  %v1077 = vld [vmem:[%s833 + $0x3a4] sm:$0xf]
                  %1078 = vst [vmem:[%s834 + $0x1e4] sm:$0xf] %v1077
                  %v1079 = vld [vmem:[%s833 + $0x3a8] sm:$0xf]
                  %1080 = vst [vmem:[%s834 + $0x1e8] sm:$0xf] %v1079
                  %v1081 = vld [vmem:[%s833 + $0x3ac] sm:$0xf]
                  %1082 = vst [vmem:[%s834 + $0x1ec] sm:$0xf] %v1081
                  %v1083 = vld [vmem:[%s833 + $0x3b0] sm:$0xf]
                  %1084 = vst [vmem:[%s834 + $0x1f0] sm:$0xf] %v1083
                  %v1085 = vld [vmem:[%s833 + $0x3b4] sm:$0xf]
                  %1086 = vst [vmem:[%s834 + $0x1f4] sm:$0xf] %v1085
                  %v1087 = vld [vmem:[%s833 + $0x3b8] sm:$0xf]
                  %1088 = vst [vmem:[%s834 + $0x1f8] sm:$0xf] %v1087
                  %v1089 = vld [vmem:[%s833 + $0x3bc] sm:$0xf]
                  %1090 = vst [vmem:[%s834 + $0x1fc] sm:$0xf] %v1089
                  %v1091 = vld [vmem:[%s833 + $0x400] sm:$0xf]
                  %1092 = vst [vmem:[%s834 + $0x200] sm:$0xf] %v1091
                  %v1093 = vld [vmem:[%s833 + $0x404] sm:$0xf]
                  %1094 = vst [vmem:[%s834 + $0x204] sm:$0xf] %v1093
                  %v1095 = vld [vmem:[%s833 + $0x408] sm:$0xf]
                  %1096 = vst [vmem:[%s834 + $0x208] sm:$0xf] %v1095
                  %v1097 = vld [vmem:[%s833 + $0x40c] sm:$0xf]
                  %1098 = vst [vmem:[%s834 + $0x20c] sm:$0xf] %v1097
                  %v1099 = vld [vmem:[%s833 + $0x410] sm:$0xf]
                  %1100 = vst [vmem:[%s834 + $0x210] sm:$0xf] %v1099
                  %v1101 = vld [vmem:[%s833 + $0x414] sm:$0xf]
                  %1102 = vst [vmem:[%s834 + $0x214] sm:$0xf] %v1101
                  %v1103 = vld [vmem:[%s833 + $0x418] sm:$0xf]
                  %1104 = vst [vmem:[%s834 + $0x218] sm:$0xf] %v1103
                  %v1105 = vld [vmem:[%s833 + $0x41c] sm:$0xf]
                  %1106 = vst [vmem:[%s834 + $0x21c] sm:$0xf] %v1105
                  %v1107 = vld [vmem:[%s833 + $0x420] sm:$0xf]
                  %1108 = vst [vmem:[%s834 + $0x220] sm:$0xf] %v1107
                  %v1109 = vld [vmem:[%s833 + $0x424] sm:$0xf]
                  %1110 = vst [vmem:[%s834 + $0x224] sm:$0xf] %v1109
                  %v1111 = vld [vmem:[%s833 + $0x428] sm:$0xf]
                  %1112 = vst [vmem:[%s834 + $0x228] sm:$0xf] %v1111
                  %v1113 = vld [vmem:[%s833 + $0x42c] sm:$0xf]
                  %1114 = vst [vmem:[%s834 + $0x22c] sm:$0xf] %v1113
                  %v1115 = vld [vmem:[%s833 + $0x430] sm:$0xf]
                  %1116 = vst [vmem:[%s834 + $0x230] sm:$0xf] %v1115
                  %v1117 = vld [vmem:[%s833 + $0x434] sm:$0xf]
                  %1118 = vst [vmem:[%s834 + $0x234] sm:$0xf] %v1117
                  %v1119 = vld [vmem:[%s833 + $0x438] sm:$0xf]
                  %1120 = vst [vmem:[%s834 + $0x238] sm:$0xf] %v1119
                  %v1121 = vld [vmem:[%s833 + $0x43c] sm:$0xf]
                  %1122 = vst [vmem:[%s834 + $0x23c] sm:$0xf] %v1121
                $region148: #{conv_bnr_forward.1} parent=135 // loop_footer
                  %s832 = sadd.s32 1, %s828
                $region149: #{conv_bnr_forward.1} parent=135 // loop_footer_branch
                  %827 = sbr.rel target = $region145
                $region150: #{conv_bnr_forward.1} parent=135 // loop_exit
                  _
              $region136: #{conv_bnr_forward.1} parent=120 // pred_fallthru
                _
            $region121: #{conv_bnr_forward.1} parent=116 // pred_fallthru
              _
            // Predicated region
            $region122: #{conv_bnr_forward.1} parent=116 // pred_check
              _
            $region123: #{conv_bnr_forward.1} parent=116 // pred_check_branch
              %518 = sbr.rel (0) target = $region125
            $region124: #{conv_bnr_forward.1} parent=116 // pred_region
              loop: start=0, step=1, limit=1
              $region126: #{conv_bnr_forward.1} parent=124 // loop_pre_header
                _
              $region127: #{conv_bnr_forward.1} parent=124 // loop_header
                %s521 = sphi 0, %s525
                %p522 = scmp.ge.s32.totalorder %s521, 1
                %s526 = sphi %s512, %s512
                %s527 = sphi %s508, %s508
              $region128: #{conv_bnr_forward.1} parent=124 // loop_header_branch
                %524 = sbr.rel (%p522) target = $region132
              $region129: #{conv_bnr_forward.1} parent=124 // loop_body
                %v528 = vld [vmem:[%s526] sm:$0xf]
                %529 = vst [vmem:[%s527] sm:$0xf] %v528
                %v530 = vld [vmem:[%s526 + $0x4] sm:$0xf]
                %531 = vst [vmem:[%s527 + $0x4] sm:$0xf] %v530
                %v532 = vld [vmem:[%s526 + $0x8] sm:$0xf]
                %533 = vst [vmem:[%s527 + $0x8] sm:$0xf] %v532
                %v534 = vld [vmem:[%s526 + $0xc] sm:$0xf]
                %535 = vst [vmem:[%s527 + $0xc] sm:$0xf] %v534
                %v536 = vld [vmem:[%s526 + $0x10] sm:$0xf]
                %537 = vst [vmem:[%s527 + $0x10] sm:$0xf] %v536
                %v538 = vld [vmem:[%s526 + $0x14] sm:$0xf]
                %539 = vst [vmem:[%s527 + $0x14] sm:$0xf] %v538
                %v540 = vld [vmem:[%s526 + $0x18] sm:$0xf]
                %541 = vst [vmem:[%s527 + $0x18] sm:$0xf] %v540
                %v542 = vld [vmem:[%s526 + $0x1c] sm:$0xf]
                %543 = vst [vmem:[%s527 + $0x1c] sm:$0xf] %v542
                %v544 = vld [vmem:[%s526 + $0x20] sm:$0xf]
                %545 = vst [vmem:[%s527 + $0x20] sm:$0xf] %v544
                %v546 = vld [vmem:[%s526 + $0x24] sm:$0xf]
                %547 = vst [vmem:[%s527 + $0x24] sm:$0xf] %v546
                %v548 = vld [vmem:[%s526 + $0x28] sm:$0xf]
                %549 = vst [vmem:[%s527 + $0x28] sm:$0xf] %v548
                %v550 = vld [vmem:[%s526 + $0x2c] sm:$0xf]
                %551 = vst [vmem:[%s527 + $0x2c] sm:$0xf] %v550
                %v552 = vld [vmem:[%s526 + $0x30] sm:$0xf]
                %553 = vst [vmem:[%s527 + $0x30] sm:$0xf] %v552
                %v554 = vld [vmem:[%s526 + $0x34] sm:$0xf]
                %555 = vst [vmem:[%s527 + $0x34] sm:$0xf] %v554
                %v556 = vld [vmem:[%s526 + $0x38] sm:$0xf]
                %557 = vst [vmem:[%s527 + $0x38] sm:$0xf] %v556
                %v558 = vld [vmem:[%s526 + $0x3c] sm:$0xf]
                %559 = vst [vmem:[%s527 + $0x3c] sm:$0xf] %v558
                %v560 = vld [vmem:[%s526 + $0x80] sm:$0xf]
                %561 = vst [vmem:[%s527 + $0x40] sm:$0xf] %v560
                %v562 = vld [vmem:[%s526 + $0x84] sm:$0xf]
                %563 = vst [vmem:[%s527 + $0x44] sm:$0xf] %v562
                %v564 = vld [vmem:[%s526 + $0x88] sm:$0xf]
                %565 = vst [vmem:[%s527 + $0x48] sm:$0xf] %v564
                %v566 = vld [vmem:[%s526 + $0x8c] sm:$0xf]
                %567 = vst [vmem:[%s527 + $0x4c] sm:$0xf] %v566
                %v568 = vld [vmem:[%s526 + $0x90] sm:$0xf]
                %569 = vst [vmem:[%s527 + $0x50] sm:$0xf] %v568
                %v570 = vld [vmem:[%s526 + $0x94] sm:$0xf]
                %571 = vst [vmem:[%s527 + $0x54] sm:$0xf] %v570
                %v572 = vld [vmem:[%s526 + $0x98] sm:$0xf]
                %573 = vst [vmem:[%s527 + $0x58] sm:$0xf] %v572
                %v574 = vld [vmem:[%s526 + $0x9c] sm:$0xf]
                %575 = vst [vmem:[%s527 + $0x5c] sm:$0xf] %v574
                %v576 = vld [vmem:[%s526 + $0xa0] sm:$0xf]
                %577 = vst [vmem:[%s527 + $0x60] sm:$0xf] %v576
                %v578 = vld [vmem:[%s526 + $0xa4] sm:$0xf]
                %579 = vst [vmem:[%s527 + $0x64] sm:$0xf] %v578
                %v580 = vld [vmem:[%s526 + $0xa8] sm:$0xf]
                %581 = vst [vmem:[%s527 + $0x68] sm:$0xf] %v580
                %v582 = vld [vmem:[%s526 + $0xac] sm:$0xf]
                %583 = vst [vmem:[%s527 + $0x6c] sm:$0xf] %v582
                %v584 = vld [vmem:[%s526 + $0xb0] sm:$0xf]
                %585 = vst [vmem:[%s527 + $0x70] sm:$0xf] %v584
                %v586 = vld [vmem:[%s526 + $0xb4] sm:$0xf]
                %587 = vst [vmem:[%s527 + $0x74] sm:$0xf] %v586
                %v588 = vld [vmem:[%s526 + $0xb8] sm:$0xf]
                %589 = vst [vmem:[%s527 + $0x78] sm:$0xf] %v588
                %v590 = vld [vmem:[%s526 + $0xbc] sm:$0xf]
                %591 = vst [vmem:[%s527 + $0x7c] sm:$0xf] %v590
                %v592 = vld [vmem:[%s526 + $0x100] sm:$0xf]
                %593 = vst [vmem:[%s527 + $0x80] sm:$0xf] %v592
                %v594 = vld [vmem:[%s526 + $0x104] sm:$0xf]
                %595 = vst [vmem:[%s527 + $0x84] sm:$0xf] %v594
                %v596 = vld [vmem:[%s526 + $0x108] sm:$0xf]
                %597 = vst [vmem:[%s527 + $0x88] sm:$0xf] %v596
                %v598 = vld [vmem:[%s526 + $0x10c] sm:$0xf]
                %599 = vst [vmem:[%s527 + $0x8c] sm:$0xf] %v598
                %v600 = vld [vmem:[%s526 + $0x110] sm:$0xf]
                %601 = vst [vmem:[%s527 + $0x90] sm:$0xf] %v600
                %v602 = vld [vmem:[%s526 + $0x114] sm:$0xf]
                %603 = vst [vmem:[%s527 + $0x94] sm:$0xf] %v602
                %v604 = vld [vmem:[%s526 + $0x118] sm:$0xf]
                %605 = vst [vmem:[%s527 + $0x98] sm:$0xf] %v604
                %v606 = vld [vmem:[%s526 + $0x11c] sm:$0xf]
                %607 = vst [vmem:[%s527 + $0x9c] sm:$0xf] %v606
                %v608 = vld [vmem:[%s526 + $0x120] sm:$0xf]
                %609 = vst [vmem:[%s527 + $0xa0] sm:$0xf] %v608
                %v610 = vld [vmem:[%s526 + $0x124] sm:$0xf]
                %611 = vst [vmem:[%s527 + $0xa4] sm:$0xf] %v610
                %v612 = vld [vmem:[%s526 + $0x128] sm:$0xf]
                %613 = vst [vmem:[%s527 + $0xa8] sm:$0xf] %v612
                %v614 = vld [vmem:[%s526 + $0x12c] sm:$0xf]
                %615 = vst [vmem:[%s527 + $0xac] sm:$0xf] %v614
                %v616 = vld [vmem:[%s526 + $0x130] sm:$0xf]
                %617 = vst [vmem:[%s527 + $0xb0] sm:$0xf] %v616
                %v618 = vld [vmem:[%s526 + $0x134] sm:$0xf]
                %619 = vst [vmem:[%s527 + $0xb4] sm:$0xf] %v618
                %v620 = vld [vmem:[%s526 + $0x138] sm:$0xf]
                %621 = vst [vmem:[%s527 + $0xb8] sm:$0xf] %v620
                %v622 = vld [vmem:[%s526 + $0x13c] sm:$0xf]
                %623 = vst [vmem:[%s527 + $0xbc] sm:$0xf] %v622
                %v624 = vld [vmem:[%s526 + $0x180] sm:$0xf]
                %625 = vst [vmem:[%s527 + $0xc0] sm:$0xf] %v624
                %v626 = vld [vmem:[%s526 + $0x184] sm:$0xf]
                %627 = vst [vmem:[%s527 + $0xc4] sm:$0xf] %v626
                %v628 = vld [vmem:[%s526 + $0x188] sm:$0xf]
                %629 = vst [vmem:[%s527 + $0xc8] sm:$0xf] %v628
                %v630 = vld [vmem:[%s526 + $0x18c] sm:$0xf]
                %631 = vst [vmem:[%s527 + $0xcc] sm:$0xf] %v630
                %v632 = vld [vmem:[%s526 + $0x190] sm:$0xf]
                %633 = vst [vmem:[%s527 + $0xd0] sm:$0xf] %v632
                %v634 = vld [vmem:[%s526 + $0x194] sm:$0xf]
                %635 = vst [vmem:[%s527 + $0xd4] sm:$0xf] %v634
                %v636 = vld [vmem:[%s526 + $0x198] sm:$0xf]
                %637 = vst [vmem:[%s527 + $0xd8] sm:$0xf] %v636
                %v638 = vld [vmem:[%s526 + $0x19c] sm:$0xf]
                %639 = vst [vmem:[%s527 + $0xdc] sm:$0xf] %v638
                %v640 = vld [vmem:[%s526 + $0x1a0] sm:$0xf]
                %641 = vst [vmem:[%s527 + $0xe0] sm:$0xf] %v640
                %v642 = vld [vmem:[%s526 + $0x1a4] sm:$0xf]
                %643 = vst [vmem:[%s527 + $0xe4] sm:$0xf] %v642
                %v644 = vld [vmem:[%s526 + $0x1a8] sm:$0xf]
                %645 = vst [vmem:[%s527 + $0xe8] sm:$0xf] %v644
                %v646 = vld [vmem:[%s526 + $0x1ac] sm:$0xf]
                %647 = vst [vmem:[%s527 + $0xec] sm:$0xf] %v646
                %v648 = vld [vmem:[%s526 + $0x1b0] sm:$0xf]
                %649 = vst [vmem:[%s527 + $0xf0] sm:$0xf] %v648
                %v650 = vld [vmem:[%s526 + $0x1b4] sm:$0xf]
                %651 = vst [vmem:[%s527 + $0xf4] sm:$0xf] %v650
                %v652 = vld [vmem:[%s526 + $0x1b8] sm:$0xf]
                %653 = vst [vmem:[%s527 + $0xf8] sm:$0xf] %v652
                %v654 = vld [vmem:[%s526 + $0x1bc] sm:$0xf]
                %655 = vst [vmem:[%s527 + $0xfc] sm:$0xf] %v654
                %v656 = vld [vmem:[%s526 + $0x200] sm:$0xf]
                %657 = vst [vmem:[%s527 + $0x100] sm:$0xf] %v656
                %v658 = vld [vmem:[%s526 + $0x204] sm:$0xf]
                %659 = vst [vmem:[%s527 + $0x104] sm:$0xf] %v658
                %v660 = vld [vmem:[%s526 + $0x208] sm:$0xf]
                %661 = vst [vmem:[%s527 + $0x108] sm:$0xf] %v660
                %v662 = vld [vmem:[%s526 + $0x20c] sm:$0xf]
                %663 = vst [vmem:[%s527 + $0x10c] sm:$0xf] %v662
                %v664 = vld [vmem:[%s526 + $0x210] sm:$0xf]
                %665 = vst [vmem:[%s527 + $0x110] sm:$0xf] %v664
                %v666 = vld [vmem:[%s526 + $0x214] sm:$0xf]
                %667 = vst [vmem:[%s527 + $0x114] sm:$0xf] %v666
                %v668 = vld [vmem:[%s526 + $0x218] sm:$0xf]
                %669 = vst [vmem:[%s527 + $0x118] sm:$0xf] %v668
                %v670 = vld [vmem:[%s526 + $0x21c] sm:$0xf]
                %671 = vst [vmem:[%s527 + $0x11c] sm:$0xf] %v670
                %v672 = vld [vmem:[%s526 + $0x220] sm:$0xf]
                %673 = vst [vmem:[%s527 + $0x120] sm:$0xf] %v672
                %v674 = vld [vmem:[%s526 + $0x224] sm:$0xf]
                %675 = vst [vmem:[%s527 + $0x124] sm:$0xf] %v674
                %v676 = vld [vmem:[%s526 + $0x228] sm:$0xf]
                %677 = vst [vmem:[%s527 + $0x128] sm:$0xf] %v676
                %v678 = vld [vmem:[%s526 + $0x22c] sm:$0xf]
                %679 = vst [vmem:[%s527 + $0x12c] sm:$0xf] %v678
                %v680 = vld [vmem:[%s526 + $0x230] sm:$0xf]
                %681 = vst [vmem:[%s527 + $0x130] sm:$0xf] %v680
                %v682 = vld [vmem:[%s526 + $0x234] sm:$0xf]
                %683 = vst [vmem:[%s527 + $0x134] sm:$0xf] %v682
                %v684 = vld [vmem:[%s526 + $0x238] sm:$0xf]
                %685 = vst [vmem:[%s527 + $0x138] sm:$0xf] %v684
                %v686 = vld [vmem:[%s526 + $0x23c] sm:$0xf]
                %687 = vst [vmem:[%s527 + $0x13c] sm:$0xf] %v686
                %v688 = vld [vmem:[%s526 + $0x280] sm:$0xf]
                %689 = vst [vmem:[%s527 + $0x140] sm:$0xf] %v688
                %v690 = vld [vmem:[%s526 + $0x284] sm:$0xf]
                %691 = vst [vmem:[%s527 + $0x144] sm:$0xf] %v690
                %v692 = vld [vmem:[%s526 + $0x288] sm:$0xf]
                %693 = vst [vmem:[%s527 + $0x148] sm:$0xf] %v692
                %v694 = vld [vmem:[%s526 + $0x28c] sm:$0xf]
                %695 = vst [vmem:[%s527 + $0x14c] sm:$0xf] %v694
                %v696 = vld [vmem:[%s526 + $0x290] sm:$0xf]
                %697 = vst [vmem:[%s527 + $0x150] sm:$0xf] %v696
                %v698 = vld [vmem:[%s526 + $0x294] sm:$0xf]
                %699 = vst [vmem:[%s527 + $0x154] sm:$0xf] %v698
                %v700 = vld [vmem:[%s526 + $0x298] sm:$0xf]
                %701 = vst [vmem:[%s527 + $0x158] sm:$0xf] %v700
                %v702 = vld [vmem:[%s526 + $0x29c] sm:$0xf]
                %703 = vst [vmem:[%s527 + $0x15c] sm:$0xf] %v702
                %v704 = vld [vmem:[%s526 + $0x2a0] sm:$0xf]
                %705 = vst [vmem:[%s527 + $0x160] sm:$0xf] %v704
                %v706 = vld [vmem:[%s526 + $0x2a4] sm:$0xf]
                %707 = vst [vmem:[%s527 + $0x164] sm:$0xf] %v706
                %v708 = vld [vmem:[%s526 + $0x2a8] sm:$0xf]
                %709 = vst [vmem:[%s527 + $0x168] sm:$0xf] %v708
                %v710 = vld [vmem:[%s526 + $0x2ac] sm:$0xf]
                %711 = vst [vmem:[%s527 + $0x16c] sm:$0xf] %v710
                %v712 = vld [vmem:[%s526 + $0x2b0] sm:$0xf]
                %713 = vst [vmem:[%s527 + $0x170] sm:$0xf] %v712
                %v714 = vld [vmem:[%s526 + $0x2b4] sm:$0xf]
                %715 = vst [vmem:[%s527 + $0x174] sm:$0xf] %v714
                %v716 = vld [vmem:[%s526 + $0x2b8] sm:$0xf]
                %717 = vst [vmem:[%s527 + $0x178] sm:$0xf] %v716
                %v718 = vld [vmem:[%s526 + $0x2bc] sm:$0xf]
                %719 = vst [vmem:[%s527 + $0x17c] sm:$0xf] %v718
                %v720 = vld [vmem:[%s526 + $0x300] sm:$0xf]
                %721 = vst [vmem:[%s527 + $0x180] sm:$0xf] %v720
                %v722 = vld [vmem:[%s526 + $0x304] sm:$0xf]
                %723 = vst [vmem:[%s527 + $0x184] sm:$0xf] %v722
                %v724 = vld [vmem:[%s526 + $0x308] sm:$0xf]
                %725 = vst [vmem:[%s527 + $0x188] sm:$0xf] %v724
                %v726 = vld [vmem:[%s526 + $0x30c] sm:$0xf]
                %727 = vst [vmem:[%s527 + $0x18c] sm:$0xf] %v726
                %v728 = vld [vmem:[%s526 + $0x310] sm:$0xf]
                %729 = vst [vmem:[%s527 + $0x190] sm:$0xf] %v728
                %v730 = vld [vmem:[%s526 + $0x314] sm:$0xf]
                %731 = vst [vmem:[%s527 + $0x194] sm:$0xf] %v730
                %v732 = vld [vmem:[%s526 + $0x318] sm:$0xf]
                %733 = vst [vmem:[%s527 + $0x198] sm:$0xf] %v732
                %v734 = vld [vmem:[%s526 + $0x31c] sm:$0xf]
                %735 = vst [vmem:[%s527 + $0x19c] sm:$0xf] %v734
                %v736 = vld [vmem:[%s526 + $0x320] sm:$0xf]
                %737 = vst [vmem:[%s527 + $0x1a0] sm:$0xf] %v736
                %v738 = vld [vmem:[%s526 + $0x324] sm:$0xf]
                %739 = vst [vmem:[%s527 + $0x1a4] sm:$0xf] %v738
                %v740 = vld [vmem:[%s526 + $0x328] sm:$0xf]
                %741 = vst [vmem:[%s527 + $0x1a8] sm:$0xf] %v740
                %v742 = vld [vmem:[%s526 + $0x32c] sm:$0xf]
                %743 = vst [vmem:[%s527 + $0x1ac] sm:$0xf] %v742
                %v744 = vld [vmem:[%s526 + $0x330] sm:$0xf]
                %745 = vst [vmem:[%s527 + $0x1b0] sm:$0xf] %v744
                %v746 = vld [vmem:[%s526 + $0x334] sm:$0xf]
                %747 = vst [vmem:[%s527 + $0x1b4] sm:$0xf] %v746
                %v748 = vld [vmem:[%s526 + $0x338] sm:$0xf]
                %749 = vst [vmem:[%s527 + $0x1b8] sm:$0xf] %v748
                %v750 = vld [vmem:[%s526 + $0x33c] sm:$0xf]
                %751 = vst [vmem:[%s527 + $0x1bc] sm:$0xf] %v750
                %v752 = vld [vmem:[%s526 + $0x380] sm:$0xf]
                %753 = vst [vmem:[%s527 + $0x1c0] sm:$0xf] %v752
                %v754 = vld [vmem:[%s526 + $0x384] sm:$0xf]
                %755 = vst [vmem:[%s527 + $0x1c4] sm:$0xf] %v754
                %v756 = vld [vmem:[%s526 + $0x388] sm:$0xf]
                %757 = vst [vmem:[%s527 + $0x1c8] sm:$0xf] %v756
                %v758 = vld [vmem:[%s526 + $0x38c] sm:$0xf]
                %759 = vst [vmem:[%s527 + $0x1cc] sm:$0xf] %v758
                %v760 = vld [vmem:[%s526 + $0x390] sm:$0xf]
                %761 = vst [vmem:[%s527 + $0x1d0] sm:$0xf] %v760
                %v762 = vld [vmem:[%s526 + $0x394] sm:$0xf]
                %763 = vst [vmem:[%s527 + $0x1d4] sm:$0xf] %v762
                %v764 = vld [vmem:[%s526 + $0x398] sm:$0xf]
                %765 = vst [vmem:[%s527 + $0x1d8] sm:$0xf] %v764
                %v766 = vld [vmem:[%s526 + $0x39c] sm:$0xf]
                %767 = vst [vmem:[%s527 + $0x1dc] sm:$0xf] %v766
                %v768 = vld [vmem:[%s526 + $0x3a0] sm:$0xf]
                %769 = vst [vmem:[%s527 + $0x1e0] sm:$0xf] %v768
                %v770 = vld [vmem:[%s526 + $0x3a4] sm:$0xf]
                %771 = vst [vmem:[%s527 + $0x1e4] sm:$0xf] %v770
                %v772 = vld [vmem:[%s526 + $0x3a8] sm:$0xf]
                %773 = vst [vmem:[%s527 + $0x1e8] sm:$0xf] %v772
                %v774 = vld [vmem:[%s526 + $0x3ac] sm:$0xf]
                %775 = vst [vmem:[%s527 + $0x1ec] sm:$0xf] %v774
                %v776 = vld [vmem:[%s526 + $0x3b0] sm:$0xf]
                %777 = vst [vmem:[%s527 + $0x1f0] sm:$0xf] %v776
                %v778 = vld [vmem:[%s526 + $0x3b4] sm:$0xf]
                %779 = vst [vmem:[%s527 + $0x1f4] sm:$0xf] %v778
                %v780 = vld [vmem:[%s526 + $0x3b8] sm:$0xf]
                %781 = vst [vmem:[%s527 + $0x1f8] sm:$0xf] %v780
                %v782 = vld [vmem:[%s526 + $0x3bc] sm:$0xf]
                %783 = vst [vmem:[%s527 + $0x1fc] sm:$0xf] %v782
                %v784 = vld [vmem:[%s526 + $0x400] sm:$0xf]
                %785 = vst [vmem:[%s527 + $0x200] sm:$0xf] %v784
                %v786 = vld [vmem:[%s526 + $0x404] sm:$0xf]
                %787 = vst [vmem:[%s527 + $0x204] sm:$0xf] %v786
                %v788 = vld [vmem:[%s526 + $0x408] sm:$0xf]
                %789 = vst [vmem:[%s527 + $0x208] sm:$0xf] %v788
                %v790 = vld [vmem:[%s526 + $0x40c] sm:$0xf]
                %791 = vst [vmem:[%s527 + $0x20c] sm:$0xf] %v790
                %v792 = vld [vmem:[%s526 + $0x410] sm:$0xf]
                %793 = vst [vmem:[%s527 + $0x210] sm:$0xf] %v792
                %v794 = vld [vmem:[%s526 + $0x414] sm:$0xf]
                %795 = vst [vmem:[%s527 + $0x214] sm:$0xf] %v794
                %v796 = vld [vmem:[%s526 + $0x418] sm:$0xf]
                %797 = vst [vmem:[%s527 + $0x218] sm:$0xf] %v796
                %v798 = vld [vmem:[%s526 + $0x41c] sm:$0xf]
                %799 = vst [vmem:[%s527 + $0x21c] sm:$0xf] %v798
                %v800 = vld [vmem:[%s526 + $0x420] sm:$0xf]
                %801 = vst [vmem:[%s527 + $0x220] sm:$0xf] %v800
                %v802 = vld [vmem:[%s526 + $0x424] sm:$0xf]
                %803 = vst [vmem:[%s527 + $0x224] sm:$0xf] %v802
                %v804 = vld [vmem:[%s526 + $0x428] sm:$0xf]
                %805 = vst [vmem:[%s527 + $0x228] sm:$0xf] %v804
                %v806 = vld [vmem:[%s526 + $0x42c] sm:$0xf]
                %807 = vst [vmem:[%s527 + $0x22c] sm:$0xf] %v806
                %v808 = vld [vmem:[%s526 + $0x430] sm:$0xf]
                %809 = vst [vmem:[%s527 + $0x230] sm:$0xf] %v808
                %v810 = vld [vmem:[%s526 + $0x434] sm:$0xf]
                %811 = vst [vmem:[%s527 + $0x234] sm:$0xf] %v810
                %v812 = vld [vmem:[%s526 + $0x438] sm:$0xf]
                %813 = vst [vmem:[%s527 + $0x238] sm:$0xf] %v812
                %v814 = vld [vmem:[%s526 + $0x43c] sm:$0xf]
                %815 = vst [vmem:[%s527 + $0x23c] sm:$0xf] %v814
              $region130: #{conv_bnr_forward.1} parent=124 // loop_footer
                %s525 = sadd.s32 1, %s521
              $region131: #{conv_bnr_forward.1} parent=124 // loop_footer_branch
                %520 = sbr.rel target = $region127
              $region132: #{conv_bnr_forward.1} parent=124 // loop_exit
                _
            $region125: #{conv_bnr_forward.1} parent=116 // pred_fallthru
              _
          $region117: #{conv_bnr_forward.1} parent=112 // pred_fallthru
            _
          %1123 = vnop
        $region113: #{conv_bnr_forward.1} parent=19 // pred_fallthru
          _
      $region20: #{conv_bnr_forward.1} parent=5 // pred_fallthru
        _
      %p1124 = scmp.le.s32.totalorder 1, %s13
      %p1125 = scmp.lt.s32.totalorder %s13, 9
      %p1126 = pnand %p1124, %p1125
      %p1127 = pneg %p1126
      // Predicated region
      $region151: #{conv_bnr_forward.1} parent=5 // pred_check
        _
      $region152: #{conv_bnr_forward.1} parent=5 // pred_check_branch
        %1129 = sbr.rel (%p1126) target = $region154
      $region153: #{conv_bnr_forward.1} parent=5 // pred_region
        %s1130 = ssub.s32 %s13, 1
        %s1131 = sand.u32 %s56, 1
        %s1132 = sand.u32 %s56, 1
        %s1133 = smul.addr %s1132, 96
        %s1134 = scalar_lea.vmem [#allocation3], %s1133
        // Predicated region
        $region155: #{conv_bnr_forward.1} parent=153 // pred_check
          %p1135 = pneg %p69
        $region156: #{conv_bnr_forward.1} parent=153 // pred_check_branch
          %1137 = sbr.rel (%p1135) target = $region158
        $region157: #{conv_bnr_forward.1} parent=153 // pred_region
          _
        $region158: #{conv_bnr_forward.1} parent=153 // pred_fallthru
          _
        %s1138 = sand.u32 %s90, 1
        %s1139 = sand.u32 %s90, 1
        %s1140 = smul.addr %s1139, 24
        %s1141 = scalar_lea.vmem [#allocation4], %s1140
        // Predicated region
        $region159: #{conv_bnr_forward.1} parent=153 // pred_check
          %p1142 = pneg %p103
        $region160: #{conv_bnr_forward.1} parent=153 // pred_check_branch
          %1144 = sbr.rel (%p1142) target = $region162
        $region161: #{conv_bnr_forward.1} parent=153 // pred_region
          _
        $region162: #{conv_bnr_forward.1} parent=153 // pred_fallthru
          _
        %s1145 = sand.u32 %s118, 1
        %s1146 = sand.u32 %s118, 1
        %s1147 = smul.addr %s1146, 576
        %s1148 = scalar_lea.vmem [#allocation5], %s1147
        // Predicated region
        $region163: #{conv_bnr_forward.1} parent=153 // pred_check
          %p1149 = pneg %p131
        $region164: #{conv_bnr_forward.1} parent=153 // pred_check_branch
          %1151 = sbr.rel (%p1149) target = $region166
        $region165: #{conv_bnr_forward.1} parent=153 // pred_region
          _
        $region166: #{conv_bnr_forward.1} parent=153 // pred_fallthru
          _
        %s1152 = sand.u32 %s56, 1
        %s1153 = sand.u32 %s56, 1
        %s1154 = smul.addr %s1153, 96
        %s1155 = scalar_lea.vmem [#allocation3], %s1154
        %p1156 = pneg %p69
        %p1157 = pneg %p66
        %s1158 = sand.u32 %s90, 1
        %s1159 = sand.u32 %s90, 1
        %s1160 = smul.addr %s1159, 24
        %s1161 = scalar_lea.vmem [#allocation4], %s1160
        %p1162 = pneg %p103
        %p1163 = pneg %p100
        %s1164 = sand.u32 %s118, 1
        %s1165 = sand.u32 %s118, 1
        %s1166 = smul.addr %s1165, 576
        %s1167 = scalar_lea.vmem [#allocation5], %s1166
        %p1168 = pneg %p131
        %p1169 = pneg %p128
        %p1170 = scmp.lt.s32.totalorder %s26, 0
        %s1171 = scalar_select %p1170, %s26, 0
        %s1172 = scalar_lea.vmem %s3, %s1171
        %p1173 = pneg %p157
        %p1174 = pneg %p154
        %p1175 = pneg %p187
        %p1176 = pneg %p184
        %s1177 = sand.u32 %s174, 1
        %s1178 = scalar_lea.sflag [#allocation7], %s1177
        %s1179 = sand.u32 %s174, 1
        %s1180 = smul.addr %s1179, 128
        %s1181 = scalar_lea.vmem [#allocation6], %s1180
        %s1182 = smul.u32 8, %s25
        %s1183 = ssub.s32 18, %s1182
        %p1184 = scmp.lt.s32.totalorder %s1183, 8
        %s1185 = scalar_select %p1184, %s1183, 8
        %s1186 = smul.u32 64, %s1185
        %s1187 = smul.u32 %s1186, 3
        %s1188 = sadd.s32 %s25, 1
        %s1189 = smul.u32 %s1188, 4
        %s1190 = smul.u32 2, %s1189
        %s1191 = smul.u32 16, %s27
        %p1192 = scmp.lt.s32.totalorder %s26, 0
        %s1193 = scalar_select %p1192, %s26, 0
        %s1194 = scalar_lea.vmem %s3, %s1193
        %s1195 = smul.u32 8, %s25
        %p1197 = scmp.eq.s32.totalorder %s27, 0
        // Predicated region
        $region167: #{conv_bnr_forward.1} parent=153 // pred_check
          %p1198 = pneg %p1197
        $region168: #{conv_bnr_forward.1} parent=153 // pred_check_branch
          %1200 = sbr.rel (%p1198) target = $region170
        $region169: #{conv_bnr_forward.1} parent=153 // pred_region
          %1201 = vst [vmem:[#allocation2] sm:$0xff] 0.0
          %1202 = vst [vmem:[#allocation2 + $0x8] sm:$0xff] 0.0
          %1203 = vst [vmem:[#allocation2 + $0x10] sm:$0xff] 0.0
          %1204 = vst [vmem:[#allocation2 + $0x18] sm:$0xff] 0.0
          %1205 = vst [vmem:[#allocation2 + $0x20] sm:$0xff] 0.0
          %1206 = vst [vmem:[#allocation2 + $0x28] sm:$0xff] 0.0
          %1207 = vst [vmem:[#allocation2 + $0x30] sm:$0xff] 0.0
          %1208 = vst [vmem:[#allocation2 + $0x38] sm:$0xff] 0.0
          %1209 = vst [vmem:[#allocation2 + $0x40] sm:$0xff] 0.0
          %1210 = vst [vmem:[#allocation2 + $0x48] sm:$0xff] 0.0
          %1211 = vst [vmem:[#allocation2 + $0x50] sm:$0xff] 0.0
          %1212 = vst [vmem:[#allocation2 + $0x58] sm:$0xff] 0.0
          %1213 = vst [vmem:[#allocation2 + $0x60] sm:$0xff] 0.0
          %1214 = vst [vmem:[#allocation2 + $0x68] sm:$0xff] 0.0
          %1215 = vst [vmem:[#allocation2 + $0x70] sm:$0xff] 0.0
          %1216 = vst [vmem:[#allocation2 + $0x78] sm:$0xff] 0.0
        $region170: #{conv_bnr_forward.1} parent=153 // pred_fallthru
          _
        %v1217 = vld [vmem:[%s1134] sm:$0xf]
        %v1218 = vld [vmem:[%s1134 + $0x4] sm:$0xf]
        %v1219 = vld [vmem:[%s1134 + $0x8] sm:$0x1]
        %v1220 = vld [vmem:[%s1134 + $0xc] sm:$0xf]
        %v1221 = vld [vmem:[%s1134 + $0x10] sm:$0xf]
        %v1222 = vld [vmem:[%s1134 + $0x14] sm:$0x1]
        %v1223 = vld [vmem:[%s1134 + $0x18] sm:$0xf]
        %v1224 = vld [vmem:[%s1134 + $0x1c] sm:$0xf]
        %v1225 = vld [vmem:[%s1134 + $0x20] sm:$0x1]
        %v1226 = vld [vmem:[%s1134 + $0x24] sm:$0xf]
        %v1227 = vld [vmem:[%s1134 + $0x28] sm:$0xf]
        %v1228 = vld [vmem:[%s1134 + $0x2c] sm:$0x1]
        %v1229 = vld [vmem:[%s1134 + $0x30] sm:$0xf]
        %v1230 = vld [vmem:[%s1134 + $0x34] sm:$0xf]
        %v1231 = vld [vmem:[%s1134 + $0x38] sm:$0x1]
        %v1232 = vld [vmem:[%s1134 + $0x3c] sm:$0xf]
        %v1233 = vld [vmem:[%s1134 + $0x40] sm:$0xf]
        %v1234 = vld [vmem:[%s1134 + $0x44] sm:$0x1]
        %v1235 = vld [vmem:[%s1134 + $0x48] sm:$0xf]
        %v1236 = vld [vmem:[%s1134 + $0x4c] sm:$0xf]
        %v1237 = vld [vmem:[%s1134 + $0x50] sm:$0x1]
        %v1238 = vld [vmem:[%s1134 + $0x54] sm:$0xf]
        %v1239 = vld [vmem:[%s1134 + $0x58] sm:$0xf]
        %v1240 = vld [vmem:[%s1134 + $0x5c] sm:$0x1]
        %v1241 = vld [vmem:[%s1141] sm:$0xf]
        %v1242 = vld [vmem:[%s1141 + $0x4] sm:$0xf]
        %v1243 = vld [vmem:[%s1141 + $0x8] sm:$0x1]
        %v1244 = vld [vmem:[%s1141 + $0xc] sm:$0xf]
        %v1245 = vld [vmem:[%s1141 + $0x10] sm:$0xf]
        %v1246 = vld [vmem:[%s1141 + $0x14] sm:$0x1]
        %v1247 = vld [vmem:[%s1148] sm:$0xf]
        %v1248 = vld [vmem:[%s1148 + $0x4] sm:$0xf]
        %v1249 = vld [vmem:[%s1148 + $0x8] sm:$0xf]
        %v1250 = vld [vmem:[%s1148 + $0xc] sm:$0xf]
        %v1251 = vld [vmem:[%s1148 + $0x10] sm:$0xf]
        %v1252 = vld [vmem:[%s1148 + $0x14] sm:$0xf]
        %v1253 = vld [vmem:[%s1148 + $0x18] sm:$0xf]
        %v1254 = vld [vmem:[%s1148 + $0x1c] sm:$0xf]
        %v1255 = vld [vmem:[%s1148 + $0x20] sm:$0xf]
        %v1256 = vld [vmem:[%s1148 + $0x24] sm:$0xf]
        %v1257 = vld [vmem:[%s1148 + $0x28] sm:$0xf]
        %v1258 = vld [vmem:[%s1148 + $0x2c] sm:$0xf]
        %v1259 = vld [vmem:[%s1148 + $0x30] sm:$0xf]
        %v1260 = vld [vmem:[%s1148 + $0x34] sm:$0xf]
        %v1261 = vld [vmem:[%s1148 + $0x38] sm:$0xf]
        %v1262 = vld [vmem:[%s1148 + $0x3c] sm:$0xf]
        %vm1263 = vsmask.f32 3328
        %vm1264 = vsmask.f32 7440
        %vm1265 = vmor %vm1263, %vm1264
        %v1267 = vshrl.u32 %v1217, 16
        %v1269 = vrot.slane %v1267, 4
        %v1270 = vshll.u32 %v1217, 16
        %v1272 = vrot.slane %v1270, 5
        %v1273 = vor.u32 %v1269, %v1272
        %v1274 = vrot.slane %v1273, 4
        %v1276 = vshll.u32 %v1218, 16
        %v1278 = vrot.slane %v1276, 5
        %v1279 = vsel %vm1265, %v1274, %v1278
        %v1280 = vshrl.u32 %v1218, 16
        %v1282 = vrot.slane %v1280, 4
        %v1283 = vor.u32 %v1282, %v1278
        %v1284 = vrot.slane %v1283, 4
        %v1286 = vshll.u32 %v1219, 16
        %v1288 = vrot.slane %v1286, 5
        %v1289 = vsel %vm1265, %v1284, %v1288
        %v1291 = vshrl.u32 %v1220, 16
        %v1293 = vrot.slane %v1291, 4
        %v1294 = vshll.u32 %v1220, 16
        %v1296 = vrot.slane %v1294, 5
        %v1297 = vor.u32 %v1293, %v1296
        %v1298 = vrot.slane %v1297, 4
        %v1300 = vshll.u32 %v1221, 16
        %v1302 = vrot.slane %v1300, 5
        %v1303 = vsel %vm1265, %v1298, %v1302
        %v1304 = vshrl.u32 %v1221, 16
        %v1306 = vrot.slane %v1304, 4
        %v1307 = vor.u32 %v1306, %v1302
        %v1308 = vrot.slane %v1307, 4
        %v1310 = vshll.u32 %v1222, 16
        %v1312 = vrot.slane %v1310, 5
        %v1313 = vsel %vm1265, %v1308, %v1312
        %v1315 = vshrl.u32 %v1223, 16
        %v1317 = vrot.slane %v1315, 4
        %v1318 = vshll.u32 %v1223, 16
        %v1320 = vrot.slane %v1318, 5
        %v1321 = vor.u32 %v1317, %v1320
        %v1322 = vrot.slane %v1321, 4
        %v1324 = vshll.u32 %v1224, 16
        %v1326 = vrot.slane %v1324, 5
        %v1327 = vsel %vm1265, %v1322, %v1326
        %v1328 = vshrl.u32 %v1224, 16
        %v1330 = vrot.slane %v1328, 4
        %v1331 = vor.u32 %v1330, %v1326
        %v1332 = vrot.slane %v1331, 4
        %v1334 = vshll.u32 %v1225, 16
        %v1336 = vrot.slane %v1334, 5
        %v1337 = vsel %vm1265, %v1332, %v1336
        %v1339 = vshrl.u32 %v1226, 16
        %v1341 = vrot.slane %v1339, 4
        %v1342 = vshll.u32 %v1226, 16
        %v1344 = vrot.slane %v1342, 5
        %v1345 = vor.u32 %v1341, %v1344
        %v1346 = vrot.slane %v1345, 4
        %v1348 = vshll.u32 %v1227, 16
        %v1350 = vrot.slane %v1348, 5
        %v1351 = vsel %vm1265, %v1346, %v1350
        %v1352 = vshrl.u32 %v1227, 16
        %v1354 = vrot.slane %v1352, 4
        %v1355 = vor.u32 %v1354, %v1350
        %v1356 = vrot.slane %v1355, 4
        %v1358 = vshll.u32 %v1228, 16
        %v1360 = vrot.slane %v1358, 5
        %v1361 = vsel %vm1265, %v1356, %v1360
        %v1363 = vshrl.u32 %v1229, 16
        %v1365 = vrot.slane %v1363, 4
        %v1366 = vshll.u32 %v1229, 16
        %v1368 = vrot.slane %v1366, 5
        %v1369 = vor.u32 %v1365, %v1368
        %v1370 = vrot.slane %v1369, 4
        %v1372 = vshll.u32 %v1230, 16
        %v1374 = vrot.slane %v1372, 5
        %v1375 = vsel %vm1265, %v1370, %v1374
        %v1376 = vshrl.u32 %v1230, 16
        %v1378 = vrot.slane %v1376, 4
        %v1379 = vor.u32 %v1378, %v1374
        %v1380 = vrot.slane %v1379, 4
        %v1382 = vshll.u32 %v1231, 16
        %v1384 = vrot.slane %v1382, 5
        %v1385 = vsel %vm1265, %v1380, %v1384
        %v1387 = vshrl.u32 %v1232, 16
        %v1389 = vrot.slane %v1387, 4
        %v1390 = vshll.u32 %v1232, 16
        %v1392 = vrot.slane %v1390, 5
        %v1393 = vor.u32 %v1389, %v1392
        %v1394 = vrot.slane %v1393, 4
        %v1396 = vshll.u32 %v1233, 16
        %v1398 = vrot.slane %v1396, 5
        %v1399 = vsel %vm1265, %v1394, %v1398
        %v1400 = vshrl.u32 %v1233, 16
        %v1402 = vrot.slane %v1400, 4
        %v1403 = vor.u32 %v1402, %v1398
        %v1404 = vrot.slane %v1403, 4
        %v1406 = vshll.u32 %v1234, 16
        %v1408 = vrot.slane %v1406, 5
        %v1409 = vsel %vm1265, %v1404, %v1408
        %v1411 = vshrl.u32 %v1235, 16
        %v1413 = vrot.slane %v1411, 4
        %v1414 = vshll.u32 %v1235, 16
        %v1416 = vrot.slane %v1414, 5
        %v1417 = vor.u32 %v1413, %v1416
        %v1418 = vrot.slane %v1417, 4
        %v1420 = vshll.u32 %v1236, 16
        %v1422 = vrot.slane %v1420, 5
        %v1423 = vsel %vm1265, %v1418, %v1422
        %v1424 = vshrl.u32 %v1236, 16
        %v1426 = vrot.slane %v1424, 4
        %v1427 = vor.u32 %v1426, %v1422
        %v1428 = vrot.slane %v1427, 4
        %v1430 = vshll.u32 %v1237, 16
        %v1432 = vrot.slane %v1430, 5
        %v1433 = vsel %vm1265, %v1428, %v1432
        %v1435 = vshrl.u32 %v1238, 16
        %v1437 = vrot.slane %v1435, 4
        %v1438 = vshll.u32 %v1238, 16
        %v1440 = vrot.slane %v1438, 5
        %v1441 = vor.u32 %v1437, %v1440
        %v1442 = vrot.slane %v1441, 4
        %v1444 = vshll.u32 %v1239, 16
        %v1446 = vrot.slane %v1444, 5
        %v1447 = vsel %vm1265, %v1442, %v1446
        %v1448 = vshrl.u32 %v1239, 16
        %v1450 = vrot.slane %v1448, 4
        %v1451 = vor.u32 %v1450, %v1446
        %v1452 = vrot.slane %v1451, 4
        %v1454 = vshll.u32 %v1240, 16
        %v1456 = vrot.slane %v1454, 5
        %v1457 = vsel %vm1265, %v1452, %v1456
        %s1458 = scalar_lea.vmem %s1148, 64 [#allocation5]
        %v1459 = vld [vmem:[%s1458] sm:$0xf]
        %v1460 = vld [vmem:[%s1458 + $0x4] sm:$0xf]
        %v1461 = vld [vmem:[%s1458 + $0x8] sm:$0xf]
        %v1462 = vld [vmem:[%s1458 + $0xc] sm:$0xf]
        %v1463 = vld [vmem:[%s1458 + $0x10] sm:$0xf]
        %v1464 = vld [vmem:[%s1458 + $0x14] sm:$0xf]
        %v1465 = vld [vmem:[%s1458 + $0x18] sm:$0xf]
        %v1466 = vld [vmem:[%s1458 + $0x1c] sm:$0xf]
        %v1467 = vld [vmem:[%s1458 + $0x20] sm:$0xf]
        %v1468 = vld [vmem:[%s1458 + $0x24] sm:$0xf]
        %v1469 = vld [vmem:[%s1458 + $0x28] sm:$0xf]
        %v1470 = vld [vmem:[%s1458 + $0x2c] sm:$0xf]
        %v1471 = vld [vmem:[%s1458 + $0x30] sm:$0xf]
        %v1472 = vld [vmem:[%s1458 + $0x34] sm:$0xf]
        %v1473 = vld [vmem:[%s1458 + $0x38] sm:$0xf]
        %v1474 = vld [vmem:[%s1458 + $0x3c] sm:$0xf]
        %v1475 = vunpack.c.l.b16 %v1279
        %v1476 = vunpack.c.l.b16 %v1289
        %v1477 = vunpack.c.l.b16 %v1303
        %v1478 = vunpack.c.l.b16 %v1313
        %v1479 = vunpack.c.l.b16 %v1327
        %v1480 = vunpack.c.l.b16 %v1337
        %v1481 = vunpack.c.l.b16 %v1351
        %v1482 = vunpack.c.l.b16 %v1361
        %v1483 = vunpack.c.l.b16 %v1375
        %v1484 = vunpack.c.l.b16 %v1385
        %v1485 = vunpack.c.l.b16 %v1399
        %v1486 = vunpack.c.l.b16 %v1409
        %v1487 = vunpack.c.l.b16 %v1423
        %v1488 = vunpack.c.l.b16 %v1433
        %v1489 = vunpack.c.l.b16 %v1447
        %v1490 = vunpack.c.l.b16 %v1457
        %v1491 = vpack.c.b16 %v1476, %v1475
        %v1492 = vpack.c.b16 %v1478, %v1477
        %v1493 = vpack.c.b16 %v1480, %v1479
        %v1494 = vpack.c.b16 %v1482, %v1481
        %v1495 = vpack.c.b16 %v1484, %v1483
        %v1496 = vpack.c.b16 %v1486, %v1485
        %v1497 = vpack.c.b16 %v1488, %v1487
        %v1498 = vpack.c.b16 %v1490, %v1489
        %v1523 = vunpack.c.l.b16 %v1459
        %v1524 = vunpack.c.l.b16 %v1460
        %v1525 = vunpack.c.l.b16 %v1461
        %v1526 = vunpack.c.l.b16 %v1462
        %v1527 = vunpack.c.l.b16 %v1463
        %v1528 = vunpack.c.l.b16 %v1464
        %v1529 = vunpack.c.l.b16 %v1465
        %v1530 = vunpack.c.l.b16 %v1466
        %v1531 = vunpack.c.l.b16 %v1467
        %v1532 = vunpack.c.l.b16 %v1468
        %v1533 = vunpack.c.l.b16 %v1469
        %v1534 = vunpack.c.l.b16 %v1470
        %v1535 = vunpack.c.l.b16 %v1471
        %v1536 = vunpack.c.l.b16 %v1472
        %v1537 = vunpack.c.l.b16 %v1473
        %v1538 = vunpack.c.l.b16 %v1474
        %v1539 = vpack.c.b16 %v1524, %v1523
        %v1540 = vpack.c.b16 %v1526, %v1525
        %v1541 = vpack.c.b16 %v1528, %v1527
        %v1542 = vpack.c.b16 %v1530, %v1529
        %v1543 = vpack.c.b16 %v1532, %v1531
        %v1544 = vpack.c.b16 %v1534, %v1533
        %v1545 = vpack.c.b16 %v1536, %v1535
        %v1546 = vpack.c.b16 %v1538, %v1537
        %1555 = vmatprep.subr.bf16.mxu0 0
        %1556 = vmatpush1.bf16.msra.mxu0 %v1539
        %1557 = vmatprep.subr.bf16.mxu0 0
        %1558 = vmatpush1.bf16.msra.mxu0 %v1540
        %1559 = vmatprep.subr.bf16.mxu0 0
        %1560 = vmatpush1.bf16.msra.mxu0 %v1541
        %1561 = vmatprep.subr.bf16.mxu0 0
        %1562 = vmatpush1.bf16.msra.mxu0 %v1542
        %1563 = vmatprep.subr.bf16.mxu0 0
        %1564 = vmatpush1.bf16.msra.mxu0 %v1543
        %1565 = vmatprep.subr.bf16.mxu0 0
        %1566 = vmatpush1.bf16.msra.mxu0 %v1544
        %1567 = vmatprep.subr.bf16.mxu0 0
        %1568 = vmatpush1.bf16.msra.mxu0 %v1545
        %1569 = vmatprep.subr.bf16.mxu0 0
        %1570 = vmatpush1.bf16.msra.mxu0 %v1546
        %1571 = vmatprep.subr.bf16.mxu0 0
        %1572 = vmatpush1.bf16.msra.mxu0 0
        %1573 = vmatprep.subr.bf16.mxu0 0
        %1574 = vmatpush1.bf16.msra.mxu0 0
        %1575 = vmatprep.subr.bf16.mxu0 0
        %1576 = vmatpush1.bf16.msra.mxu0 0
        %1577 = vmatprep.subr.bf16.mxu0 0
        %1578 = vmatpush1.bf16.msra.mxu0 0
        %1579 = vmatprep.subr.bf16.mxu0 0
        %1580 = vmatpush1.bf16.msra.mxu0 0
        %1581 = vmatprep.subr.bf16.mxu0 0
        %1582 = vmatpush1.bf16.msra.mxu0 0
        %1583 = vmatprep.subr.bf16.mxu0 0
        %1584 = vmatpush1.bf16.msra.mxu0 0
        %1585 = vmatprep.subr.bf16.mxu0 0
        %1586 = vmatpush1.bf16.msra.mxu0 0
        %1587 = vmatprep.mubr.bf16.mxu0 0
        %1588 = vmatmul.mubr.bf16.gmra.mrb[0].mxu0 %v1491
        %v1589 = vpop.f32.mrb[0].mxu0
        %v1590 = vadd.f32 0.0, %v1589
        %v1591 = vpop.f32.mrb[0].mxu0
        %v1592 = vpop.f32.mrb[0].mxu0
        %v1593 = vadd.f32 0.0, %v1592
        %v1594 = vpop.f32.mrb[0].mxu0
        %1595 = vmatprep.mubr.bf16.mxu0 0
        %1596 = vmatmul.mubr.bf16.gmra.mrb[0].mxu0 %v1492
        %v1597 = vpop.f32.mrb[0].mxu0
        %v1598 = vadd.f32 0.0, %v1597
        %v1599 = vpop.f32.mrb[0].mxu0
        %v1600 = vpop.f32.mrb[0].mxu0
        %v1601 = vadd.f32 0.0, %v1600
        %v1602 = vpop.f32.mrb[0].mxu0
        %1603 = vmatprep.mubr.bf16.mxu0 0
        %1604 = vmatmul.mubr.bf16.gmra.mrb[0].mxu0 %v1493
        %v1605 = vpop.f32.mrb[0].mxu0
        %v1606 = vadd.f32 0.0, %v1605
        %v1607 = vpop.f32.mrb[0].mxu0
        %v1608 = vpop.f32.mrb[0].mxu0
        %v1609 = vadd.f32 0.0, %v1608
        %v1610 = vpop.f32.mrb[0].mxu0
        %1611 = vmatprep.mubr.bf16.mxu0 0
        %1612 = vmatmul.mubr.bf16.gmra.mrb[0].mxu0 %v1494
        %v1613 = vpop.f32.mrb[0].mxu0
        %v1614 = vadd.f32 0.0, %v1613
        %v1615 = vpop.f32.mrb[0].mxu0
        %v1616 = vpop.f32.mrb[0].mxu0
        %v1617 = vadd.f32 0.0, %v1616
        %v1618 = vpop.f32.mrb[0].mxu0
        %1619 = vmatprep.mubr.bf16.mxu0 0
        %1620 = vmatmul.mubr.bf16.gmra.mrb[0].mxu0 %v1495
        %v1621 = vpop.f32.mrb[0].mxu0
        %v1622 = vadd.f32 0.0, %v1621
        %v1623 = vpop.f32.mrb[0].mxu0
        %v1624 = vpop.f32.mrb[0].mxu0
        %v1625 = vadd.f32 0.0, %v1624
        %v1626 = vpop.f32.mrb[0].mxu0
        %1627 = vmatprep.mubr.bf16.mxu0 0
        %1628 = vmatmul.mubr.bf16.gmra.mrb[0].mxu0 %v1496
        %v1629 = vpop.f32.mrb[0].mxu0
        %v1630 = vadd.f32 0.0, %v1629
        %v1631 = vpop.f32.mrb[0].mxu0
        %v1632 = vpop.f32.mrb[0].mxu0
        %v1633 = vadd.f32 0.0, %v1632
        %v1634 = vpop.f32.mrb[0].mxu0
        %1635 = vmatprep.mubr.bf16.mxu0 0
        %1636 = vmatmul.mubr.bf16.gmra.mrb[0].mxu0 %v1497
        %v1637 = vpop.f32.mrb[0].mxu0
        %v1638 = vadd.f32 0.0, %v1637
        %v1639 = vpop.f32.mrb[0].mxu0
        %v1640 = vpop.f32.mrb[0].mxu0
        %v1641 = vadd.f32 0.0, %v1640
        %v1642 = vpop.f32.mrb[0].mxu0
        %1643 = vmatprep.mubr.bf16.mxu0 0
        %1644 = vmatmul.mubr.bf16.gmra.mrb[0].mxu0 %v1498
        %v1645 = vpop.f32.mrb[0].mxu0
        %v1646 = vadd.f32 0.0, %v1645
        %v1647 = vpop.f32.mrb[0].mxu0
        %v1648 = vpop.f32.mrb[0].mxu0
        %v1649 = vadd.f32 0.0, %v1648
        %v1650 = vpop.f32.mrb[0].mxu0
        %1651 = vdwg.mxu0
        %v1668 = vunpack.c.l.b16 %v1217
        %v1669 = vunpack.c.l.b16 %v1218
        %v1670 = vunpack.c.l.b16 %v1220
        %v1671 = vunpack.c.l.b16 %v1221
        %v1672 = vunpack.c.l.b16 %v1223
        %v1673 = vunpack.c.l.b16 %v1224
        %v1674 = vunpack.c.l.b16 %v1226
        %v1675 = vunpack.c.l.b16 %v1227
        %v1676 = vunpack.c.l.b16 %v1229
        %v1677 = vunpack.c.l.b16 %v1230
        %v1678 = vunpack.c.l.b16 %v1232
        %v1679 = vunpack.c.l.b16 %v1233
        %v1680 = vunpack.c.l.b16 %v1235
        %v1681 = vunpack.c.l.b16 %v1236
        %v1682 = vunpack.c.l.b16 %v1238
        %v1683 = vunpack.c.l.b16 %v1239
        %v1684 = vpack.c.b16 %v1669, %v1668
        %v1685 = vpack.c.b16 %v1671, %v1670
        %v1686 = vpack.c.b16 %v1673, %v1672
        %v1687 = vpack.c.b16 %v1675, %v1674
        %v1688 = vpack.c.b16 %v1677, %v1676
        %v1689 = vpack.c.b16 %v1679, %v1678
        %v1690 = vpack.c.b16 %v1681, %v1680
        %v1691 = vpack.c.b16 %v1683, %v1682
        %v1716 = vunpack.c.l.b16 %v1247
        %v1717 = vunpack.c.l.b16 %v1248
        %v1718 = vunpack.c.l.b16 %v1249
        %v1719 = vunpack.c.l.b16 %v1250
        %v1720 = vunpack.c.l.b16 %v1251
        %v1721 = vunpack.c.l.b16 %v1252
        %v1722 = vunpack.c.l.b16 %v1253
        %v1723 = vunpack.c.l.b16 %v1254
        %v1724 = vunpack.c.l.b16 %v1255
        %v1725 = vunpack.c.l.b16 %v1256
        %v1726 = vunpack.c.l.b16 %v1257
        %v1727 = vunpack.c.l.b16 %v1258
        %v1728 = vunpack.c.l.b16 %v1259
        %v1729 = vunpack.c.l.b16 %v1260
        %v1730 = vunpack.c.l.b16 %v1261
        %v1731 = vunpack.c.l.b16 %v1262
        %v1732 = vpack.c.b16 %v1717, %v1716
        %v1733 = vpack.c.b16 %v1719, %v1718
        %v1734 = vpack.c.b16 %v1721, %v1720
        %v1735 = vpack.c.b16 %v1723, %v1722
        %v1736 = vpack.c.b16 %v1725, %v1724
        %v1737 = vpack.c.b16 %v1727, %v1726
        %v1738 = vpack.c.b16 %v1729, %v1728
        %v1739 = vpack.c.b16 %v1731, %v1730
        %1748 = vmatprep.subr.bf16.mxu0 0
        %1749 = vmatpush1.bf16.msra.mxu0 %v1732
        %1750 = vmatprep.subr.bf16.mxu0 0
        %1751 = vmatpush1.bf16.msra.mxu0 %v1733
        %1752 = vmatprep.subr.bf16.mxu0 0
        %1753 = vmatpush1.bf16.msra.mxu0 %v1734
        %1754 = vmatprep.subr.bf16.mxu0 0
        %1755 = vmatpush1.bf16.msra.mxu0 %v1735
        %1756 = vmatprep.subr.bf16.mxu0 0
        %1757 = vmatpush1.bf16.msra.mxu0 %v1736
        %1758 = vmatprep.subr.bf16.mxu0 0
        %1759 = vmatpush1.bf16.msra.mxu0 %v1737
        %1760 = vmatprep.subr.bf16.mxu0 0
        %1761 = vmatpush1.bf16.msra.mxu0 %v1738
        %1762 = vmatprep.subr.bf16.mxu0 0
        %1763 = vmatpush1.bf16.msra.mxu0 %v1739
        %1764 = vmatprep.subr.bf16.mxu0 0
        %1765 = vmatpush1.bf16.msra.mxu0 0
        %1766 = vmatprep.subr.bf16.mxu0 0
        %1767 = vmatpush1.bf16.msra.mxu0 0
        %1768 = vmatprep.subr.bf16.mxu0 0
        %1769 = vmatpush1.bf16.msra.mxu0 0
        %1770 = vmatprep.subr.bf16.mxu0 0
        %1771 = vmatpush1.bf16.msra.mxu0 0
        %1772 = vmatprep.subr.bf16.mxu0 0
        %1773 = vmatpush1.bf16.msra.mxu0 0
        %1774 = vmatprep.subr.bf16.mxu0 0
        %1775 = vmatpush1.bf16.msra.mxu0 0
        %1776 = vmatprep.subr.bf16.mxu0 0
        %1777 = vmatpush1.bf16.msra.mxu0 0
        %1778 = vmatprep.subr.bf16.mxu0 0
        %1779 = vmatpush1.bf16.msra.mxu0 0
        %1780 = vmatprep.mubr.bf16.mxu0 0
        %1781 = vmatmul.mubr.bf16.gmra.mrb[0].mxu0 %v1684
        %v1782 = vpop.f32.mrb[0].mxu0
        %v1783 = vadd.f32 %v1590, %v1782
        %v1784 = vpop.f32.mrb[0].mxu0
        %v1785 = vpop.f32.mrb[0].mxu0
        %v1786 = vadd.f32 %v1593, %v1785
        %v1787 = vpop.f32.mrb[0].mxu0
        %1788 = vmatprep.mubr.bf16.mxu0 0
        %1789 = vmatmul.mubr.bf16.gmra.mrb[0].mxu0 %v1685
        %v1790 = vpop.f32.mrb[0].mxu0
        %v1791 = vadd.f32 %v1598, %v1790
        %v1792 = vpop.f32.mrb[0].mxu0
        %v1793 = vpop.f32.mrb[0].mxu0
        %v1794 = vadd.f32 %v1601, %v1793
        %v1795 = vpop.f32.mrb[0].mxu0
        %1796 = vmatprep.mubr.bf16.mxu0 0
        %1797 = vmatmul.mubr.bf16.gmra.mrb[0].mxu0 %v1686
        %v1798 = vpop.f32.mrb[0].mxu0
        %v1799 = vadd.f32 %v1606, %v1798
        %v1800 = vpop.f32.mrb[0].mxu0
        %v1801 = vpop.f32.mrb[0].mxu0
        %v1802 = vadd.f32 %v1609, %v1801
        %v1803 = vpop.f32.mrb[0].mxu0
        %1804 = vmatprep.mubr.bf16.mxu0 0
        %1805 = vmatmul.mubr.bf16.gmra.mrb[0].mxu0 %v1687
        %v1806 = vpop.f32.mrb[0].mxu0
        %v1807 = vadd.f32 %v1614, %v1806
        %v1808 = vpop.f32.mrb[0].mxu0
        %v1809 = vpop.f32.mrb[0].mxu0
        %v1810 = vadd.f32 %v1617, %v1809
        %v1811 = vpop.f32.mrb[0].mxu0
        %1812 = vmatprep.mubr.bf16.mxu0 0
        %1813 = vmatmul.mubr.bf16.gmra.mrb[0].mxu0 %v1688
        %v1814 = vpop.f32.mrb[0].mxu0
        %v1815 = vadd.f32 %v1622, %v1814
        %v1816 = vpop.f32.mrb[0].mxu0
        %v1817 = vpop.f32.mrb[0].mxu0
        %v1818 = vadd.f32 %v1625, %v1817
        %v1819 = vpop.f32.mrb[0].mxu0
        %1820 = vmatprep.mubr.bf16.mxu0 0
        %1821 = vmatmul.mubr.bf16.gmra.mrb[0].mxu0 %v1689
        %v1822 = vpop.f32.mrb[0].mxu0
        %v1823 = vadd.f32 %v1630, %v1822
        %v1824 = vpop.f32.mrb[0].mxu0
        %v1825 = vpop.f32.mrb[0].mxu0
        %v1826 = vadd.f32 %v1633, %v1825
        %v1827 = vpop.f32.mrb[0].mxu0
        %1828 = vmatprep.mubr.bf16.mxu0 0
        %1829 = vmatmul.mubr.bf16.gmra.mrb[0].mxu0 %v1690
        %v1830 = vpop.f32.mrb[0].mxu0
        %v1831 = vadd.f32 %v1638, %v1830
        %v1832 = vpop.f32.mrb[0].mxu0
        %v1833 = vpop.f32.mrb[0].mxu0
        %v1834 = vadd.f32 %v1641, %v1833
        %v1835 = vpop.f32.mrb[0].mxu0
        %1836 = vmatprep.mubr.bf16.mxu0 0
        %1837 = vmatmul.mubr.bf16.gmra.mrb[0].mxu0 %v1691
        %v1838 = vpop.f32.mrb[0].mxu0
        %v1839 = vadd.f32 %v1646, %v1838
        %v1840 = vpop.f32.mrb[0].mxu0
        %v1841 = vpop.f32.mrb[0].mxu0
        %v1842 = vadd.f32 %v1649, %v1841
        %v1843 = vpop.f32.mrb[0].mxu0
        %1844 = vdwg.mxu0
        %vm1853 = vcmask 1042432
        %vm1854 = vcmask 1046532
        %vm1855 = vmor %vm1853, %vm1854
        %v1856 = vrot.slane %v1217, 5
        %v1857 = vrot.slane %v1856, 4
        %v1858 = vrot.slane %v1218, 5
        %v1859 = vsel %vm1855, %v1857, %v1858
        %v1860 = vrot.slane %v1858, 4
        %v1861 = vrot.slane %v1219, 5
        %v1862 = vsel %vm1855, %v1860, %v1861
        %v1863 = vrot.slane %v1220, 5
        %v1864 = vrot.slane %v1863, 4
        %v1865 = vrot.slane %v1221, 5
        %v1866 = vsel %vm1855, %v1864, %v1865
        %v1867 = vrot.slane %v1865, 4
        %v1868 = vrot.slane %v1222, 5
        %v1869 = vsel %vm1855, %v1867, %v1868
        %v1870 = vrot.slane %v1223, 5
        %v1871 = vrot.slane %v1870, 4
        %v1872 = vrot.slane %v1224, 5
        %v1873 = vsel %vm1855, %v1871, %v1872
        %v1874 = vrot.slane %v1872, 4
        %v1875 = vrot.slane %v1225, 5
        %v1876 = vsel %vm1855, %v1874, %v1875
        %v1877 = vrot.slane %v1226, 5
        %v1878 = vrot.slane %v1877, 4
        %v1879 = vrot.slane %v1227, 5
        %v1880 = vsel %vm1855, %v1878, %v1879
        %v1881 = vrot.slane %v1879, 4
        %v1882 = vrot.slane %v1228, 5
        %v1883 = vsel %vm1855, %v1881, %v1882
        %v1884 = vrot.slane %v1229, 5
        %v1885 = vrot.slane %v1884, 4
        %v1886 = vrot.slane %v1230, 5
        %v1887 = vsel %vm1855, %v1885, %v1886
        %v1888 = vrot.slane %v1886, 4
        %v1889 = vrot.slane %v1231, 5
        %v1890 = vsel %vm1855, %v1888, %v1889
        %v1891 = vrot.slane %v1232, 5
        %v1892 = vrot.slane %v1891, 4
        %v1893 = vrot.slane %v1233, 5
        %v1894 = vsel %vm1855, %v1892, %v1893
        %v1895 = vrot.slane %v1893, 4
        %v1896 = vrot.slane %v1234, 5
        %v1897 = vsel %vm1855, %v1895, %v1896
        %v1898 = vrot.slane %v1235, 5
        %v1899 = vrot.slane %v1898, 4
        %v1900 = vrot.slane %v1236, 5
        %v1901 = vsel %vm1855, %v1899, %v1900
        %v1902 = vrot.slane %v1900, 4
        %v1903 = vrot.slane %v1237, 5
        %v1904 = vsel %vm1855, %v1902, %v1903
        %v1905 = vrot.slane %v1238, 5
        %v1906 = vrot.slane %v1905, 4
        %v1907 = vrot.slane %v1239, 5
        %v1908 = vsel %vm1855, %v1906, %v1907
        %v1909 = vrot.slane %v1907, 4
        %v1910 = vrot.slane %v1240, 5
        %v1911 = vsel %vm1855, %v1909, %v1910
        %s1912 = scalar_lea.vmem %s1148, 128 [#allocation5]
        %v1913 = vld [vmem:[%s1912] sm:$0xf]
        %v1914 = vld [vmem:[%s1912 + $0x4] sm:$0xf]
        %v1915 = vld [vmem:[%s1912 + $0x8] sm:$0xf]
        %v1916 = vld [vmem:[%s1912 + $0xc] sm:$0xf]
        %v1917 = vld [vmem:[%s1912 + $0x10] sm:$0xf]
        %v1918 = vld [vmem:[%s1912 + $0x14] sm:$0xf]
        %v1919 = vld [vmem:[%s1912 + $0x18] sm:$0xf]
        %v1920 = vld [vmem:[%s1912 + $0x1c] sm:$0xf]
        %v1921 = vld [vmem:[%s1912 + $0x20] sm:$0xf]
        %v1922 = vld [vmem:[%s1912 + $0x24] sm:$0xf]
        %v1923 = vld [vmem:[%s1912 + $0x28] sm:$0xf]
        %v1924 = vld [vmem:[%s1912 + $0x2c] sm:$0xf]
        %v1925 = vld [vmem:[%s1912 + $0x30] sm:$0xf]
        %v1926 = vld [vmem:[%s1912 + $0x34] sm:$0xf]
        %v1927 = vld [vmem:[%s1912 + $0x38] sm:$0xf]
        %v1928 = vld [vmem:[%s1912 + $0x3c] sm:$0xf]
        %v1929 = vunpack.c.l.b16 %v1859
        %v1930 = vunpack.c.l.b16 %v1862
        %v1931 = vunpack.c.l.b16 %v1866
        %v1932 = vunpack.c.l.b16 %v1869
        %v1933 = vunpack.c.l.b16 %v1873
        %v1934 = vunpack.c.l.b16 %v1876
        %v1935 = vunpack.c.l.b16 %v1880
        %v1936 = vunpack.c.l.b16 %v1883
        %v1937 = vunpack.c.l.b16 %v1887
        %v1938 = vunpack.c.l.b16 %v1890
        %v1939 = vunpack.c.l.b16 %v1894
        %v1940 = vunpack.c.l.b16 %v1897
        %v1941 = vunpack.c.l.b16 %v1901
        %v1942 = vunpack.c.l.b16 %v1904
        %v1943 = vunpack.c.l.b16 %v1908
        %v1944 = vunpack.c.l.b16 %v1911
        %v1945 = vpack.c.b16 %v1930, %v1929
        %v1946 = vpack.c.b16 %v1932, %v1931
        %v1947 = vpack.c.b16 %v1934, %v1933
        %v1948 = vpack.c.b16 %v1936, %v1935
        %v1949 = vpack.c.b16 %v1938, %v1937
        %v1950 = vpack.c.b16 %v1940, %v1939
        %v1951 = vpack.c.b16 %v1942, %v1941
        %v1952 = vpack.c.b16 %v1944, %v1943
        %v1977 = vunpack.c.l.b16 %v1913
        %v1978 = vunpack.c.l.b16 %v1914
        %v1979 = vunpack.c.l.b16 %v1915
        %v1980 = vunpack.c.l.b16 %v1916
        %v1981 = vunpack.c.l.b16 %v1917
        %v1982 = vunpack.c.l.b16 %v1918
        %v1983 = vunpack.c.l.b16 %v1919
        %v1984 = vunpack.c.l.b16 %v1920
        %v1985 = vunpack.c.l.b16 %v1921
        %v1986 = vunpack.c.l.b16 %v1922
        %v1987 = vunpack.c.l.b16 %v1923
        %v1988 = vunpack.c.l.b16 %v1924
        %v1989 = vunpack.c.l.b16 %v1925
        %v1990 = vunpack.c.l.b16 %v1926
        %v1991 = vunpack.c.l.b16 %v1927
        %v1992 = vunpack.c.l.b16 %v1928
        %v1993 = vpack.c.b16 %v1978, %v1977
        %v1994 = vpack.c.b16 %v1980, %v1979
        %v1995 = vpack.c.b16 %v1982, %v1981
        %v1996 = vpack.c.b16 %v1984, %v1983
        %v1997 = vpack.c.b16 %v1986, %v1985
        %v1998 = vpack.c.b16 %v1988, %v1987
        %v1999 = vpack.c.b16 %v1990, %v1989
        %v2000 = vpack.c.b16 %v1992, %v1991
        %2009 = vmatprep.subr.bf16.mxu0 0
        %2010 = vmatpush1.bf16.msra.mxu0 %v1993
        %2011 = vmatprep.subr.bf16.mxu0 0
        %2012 = vmatpush1.bf16.msra.mxu0 %v1994
        %2013 = vmatprep.subr.bf16.mxu0 0
        %2014 = vmatpush1.bf16.msra.mxu0 %v1995
        %2015 = vmatprep.subr.bf16.mxu0 0
        %2016 = vmatpush1.bf16.msra.mxu0 %v1996
        %2017 = vmatprep.subr.bf16.mxu0 0
        %2018 = vmatpush1.bf16.msra.mxu0 %v1997
        %2019 = vmatprep.subr.bf16.mxu0 0
        %2020 = vmatpush1.bf16.msra.mxu0 %v1998
        %2021 = vmatprep.subr.bf16.mxu0 0
        %2022 = vmatpush1.bf16.msra.mxu0 %v1999
        %2023 = vmatprep.subr.bf16.mxu0 0
        %2024 = vmatpush1.bf16.msra.mxu0 %v2000
        %2025 = vmatprep.subr.bf16.mxu0 0
        %2026 = vmatpush1.bf16.msra.mxu0 0
        %2027 = vmatprep.subr.bf16.mxu0 0
        %2028 = vmatpush1.bf16.msra.mxu0 0
        %2029 = vmatprep.subr.bf16.mxu0 0
        %2030 = vmatpush1.bf16.msra.mxu0 0
        %2031 = vmatprep.subr.bf16.mxu0 0
        %2032 = vmatpush1.bf16.msra.mxu0 0
        %2033 = vmatprep.subr.bf16.mxu0 0
        %2034 = vmatpush1.bf16.msra.mxu0 0
        %2035 = vmatprep.subr.bf16.mxu0 0
        %2036 = vmatpush1.bf16.msra.mxu0 0
        %2037 = vmatprep.subr.bf16.mxu0 0
        %2038 = vmatpush1.bf16.msra.mxu0 0
        %2039 = vmatprep.subr.bf16.mxu0 0
        %2040 = vmatpush1.bf16.msra.mxu0 0
        %2041 = vmatprep.mubr.bf16.mxu0 0
        %2042 = vmatmul.mubr.bf16.gmra.mrb[0].mxu0 %v1945
        %v2043 = vpop.f32.mrb[0].mxu0
        %v2044 = vadd.f32 0.0, %v2043
        %v2045 = vpop.f32.mrb[0].mxu0
        %v2046 = vpop.f32.mrb[0].mxu0
        %v2047 = vadd.f32 0.0, %v2046
        %v2048 = vpop.f32.mrb[0].mxu0
        %2049 = vmatprep.mubr.bf16.mxu0 0
        %2050 = vmatmul.mubr.bf16.gmra.mrb[0].mxu0 %v1946
        %v2051 = vpop.f32.mrb[0].mxu0
        %v2052 = vadd.f32 0.0, %v2051
        %v2053 = vpop.f32.mrb[0].mxu0
        %v2054 = vpop.f32.mrb[0].mxu0
        %v2055 = vadd.f32 0.0, %v2054
        %v2056 = vpop.f32.mrb[0].mxu0
        %2057 = vmatprep.mubr.bf16.mxu0 0
        %2058 = vmatmul.mubr.bf16.gmra.mrb[0].mxu0 %v1947
        %v2059 = vpop.f32.mrb[0].mxu0
        %v2060 = vadd.f32 0.0, %v2059
        %v2061 = vpop.f32.mrb[0].mxu0
        %v2062 = vpop.f32.mrb[0].mxu0
        %v2063 = vadd.f32 0.0, %v2062
        %v2064 = vpop.f32.mrb[0].mxu0
        %2065 = vmatprep.mubr.bf16.mxu0 0
        %2066 = vmatmul.mubr.bf16.gmra.mrb[0].mxu0 %v1948
        %v2067 = vpop.f32.mrb[0].mxu0
        %v2068 = vadd.f32 0.0, %v2067
        %v2069 = vpop.f32.mrb[0].mxu0
        %v2070 = vpop.f32.mrb[0].mxu0
        %v2071 = vadd.f32 0.0, %v2070
        %v2072 = vpop.f32.mrb[0].mxu0
        %2073 = vmatprep.mubr.bf16.mxu0 0
        %2074 = vmatmul.mubr.bf16.gmra.mrb[0].mxu0 %v1949
        %v2075 = vpop.f32.mrb[0].mxu0
        %v2076 = vadd.f32 0.0, %v2075
        %v2077 = vpop.f32.mrb[0].mxu0
        %v2078 = vpop.f32.mrb[0].mxu0
        %v2079 = vadd.f32 0.0, %v2078
        %v2080 = vpop.f32.mrb[0].mxu0
        %2081 = vmatprep.mubr.bf16.mxu0 0
        %2082 = vmatmul.mubr.bf16.gmra.mrb[0].mxu0 %v1950
        %v2083 = vpop.f32.mrb[0].mxu0
        %v2084 = vadd.f32 0.0, %v2083
        %v2085 = vpop.f32.mrb[0].mxu0
        %v2086 = vpop.f32.mrb[0].mxu0
        %v2087 = vadd.f32 0.0, %v2086
        %v2088 = vpop.f32.mrb[0].mxu0
        %2089 = vmatprep.mubr.bf16.mxu0 0
        %2090 = vmatmul.mubr.bf16.gmra.mrb[0].mxu0 %v1951
        %v2091 = vpop.f32.mrb[0].mxu0
        %v2092 = vadd.f32 0.0, %v2091
        %v2093 = vpop.f32.mrb[0].mxu0
        %v2094 = vpop.f32.mrb[0].mxu0
        %v2095 = vadd.f32 0.0, %v2094
        %v2096 = vpop.f32.mrb[0].mxu0
        %2097 = vmatprep.mubr.bf16.mxu0 0
        %2098 = vmatmul.mubr.bf16.gmra.mrb[0].mxu0 %v1952
        %v2099 = vpop.f32.mrb[0].mxu0
        %v2100 = vadd.f32 0.0, %v2099
        %v2101 = vpop.f32.mrb[0].mxu0
        %v2102 = vpop.f32.mrb[0].mxu0
        %v2103 = vadd.f32 0.0, %v2102
        %v2104 = vpop.f32.mrb[0].mxu0
        %2105 = vdwg.mxu0
        %v2106 = vadd.f32 %v1783, %v2044
        %v2107 = vadd.f32 %v1786, %v2047
        %v2108 = vadd.f32 %v1791, %v2052
        %v2109 = vadd.f32 %v1794, %v2055
        %v2110 = vadd.f32 %v1799, %v2060
        %v2111 = vadd.f32 %v1802, %v2063
        %v2112 = vadd.f32 %v1807, %v2068
        %v2113 = vadd.f32 %v1810, %v2071
        %v2114 = vadd.f32 %v1815, %v2076
        %v2115 = vadd.f32 %v1818, %v2079
        %v2116 = vadd.f32 %v1823, %v2084
        %v2117 = vadd.f32 %v1826, %v2087
        %v2118 = vadd.f32 %v1831, %v2092
        %v2119 = vadd.f32 %v1834, %v2095
        %v2120 = vadd.f32 %v1839, %v2100
        %v2121 = vadd.f32 %v1842, %v2103
        %s2122 = scalar_lea.vmem %s1148, 192 [#allocation5]
        %v2123 = vld [vmem:[%s2122] sm:$0xf]
        %v2124 = vld [vmem:[%s2122 + $0x4] sm:$0xf]
        %v2125 = vld [vmem:[%s2122 + $0x8] sm:$0xf]
        %v2126 = vld [vmem:[%s2122 + $0xc] sm:$0xf]
        %v2127 = vld [vmem:[%s2122 + $0x10] sm:$0xf]
        %v2128 = vld [vmem:[%s2122 + $0x14] sm:$0xf]
        %v2129 = vld [vmem:[%s2122 + $0x18] sm:$0xf]
        %v2130 = vld [vmem:[%s2122 + $0x1c] sm:$0xf]
        %v2131 = vld [vmem:[%s2122 + $0x20] sm:$0xf]
        %v2132 = vld [vmem:[%s2122 + $0x24] sm:$0xf]
        %v2133 = vld [vmem:[%s2122 + $0x28] sm:$0xf]
        %v2134 = vld [vmem:[%s2122 + $0x2c] sm:$0xf]
        %v2135 = vld [vmem:[%s2122 + $0x30] sm:$0xf]
        %v2136 = vld [vmem:[%s2122 + $0x34] sm:$0xf]
        %v2137 = vld [vmem:[%s2122 + $0x38] sm:$0xf]
        %v2138 = vld [vmem:[%s2122 + $0x3c] sm:$0xf]
        %v2141 = vunpack.c.l.b16 %v1241
        %v2142 = vunpack.c.l.b16 %v1242
        %v2143 = vpack.c.b16 %v2142, %v2141
        %v2161 = vunpack.c.l.b16 %v2123
        %v2162 = vunpack.c.l.b16 %v2124
        %v2163 = vunpack.c.l.b16 %v2125
        %v2164 = vunpack.c.l.b16 %v2126
        %v2165 = vunpack.c.l.b16 %v2127
        %v2166 = vunpack.c.l.b16 %v2128
        %v2167 = vunpack.c.l.b16 %v2129
        %v2168 = vunpack.c.l.b16 %v2130
        %v2169 = vunpack.c.l.b16 %v2131
        %v2170 = vunpack.c.l.b16 %v2132
        %v2171 = vunpack.c.l.b16 %v2133
        %v2172 = vunpack.c.l.b16 %v2134
        %v2173 = vunpack.c.l.b16 %v2135
        %v2174 = vunpack.c.l.b16 %v2136
        %v2175 = vunpack.c.l.b16 %v2137
        %v2176 = vunpack.c.l.b16 %v2138
        %v2177 = vpack.c.b16 %v2162, %v2161
        %v2178 = vpack.c.b16 %v2164, %v2163
        %v2179 = vpack.c.b16 %v2166, %v2165
        %v2180 = vpack.c.b16 %v2168, %v2167
        %v2181 = vpack.c.b16 %v2170, %v2169
        %v2182 = vpack.c.b16 %v2172, %v2171
        %v2183 = vpack.c.b16 %v2174, %v2173
        %v2184 = vpack.c.b16 %v2176, %v2175
        %2193 = vmatprep.subr.bf16.mxu0 0
        %2194 = vmatpush1.bf16.msra.mxu0 %v2177
        %2195 = vmatprep.subr.bf16.mxu0 0
        %2196 = vmatpush1.bf16.msra.mxu0 %v2178
        %2197 = vmatprep.subr.bf16.mxu0 0
        %2198 = vmatpush1.bf16.msra.mxu0 %v2179
        %2199 = vmatprep.subr.bf16.mxu0 0
        %2200 = vmatpush1.bf16.msra.mxu0 %v2180
        %2201 = vmatprep.subr.bf16.mxu0 0
        %2202 = vmatpush1.bf16.msra.mxu0 %v2181
        %2203 = vmatprep.subr.bf16.mxu0 0
        %2204 = vmatpush1.bf16.msra.mxu0 %v2182
        %2205 = vmatprep.subr.bf16.mxu0 0
        %2206 = vmatpush1.bf16.msra.mxu0 %v2183
        %2207 = vmatprep.subr.bf16.mxu0 0
        %2208 = vmatpush1.bf16.msra.mxu0 %v2184
        %2209 = vmatprep.subr.bf16.mxu0 0
        %2210 = vmatpush1.bf16.msra.mxu0 0
        %2211 = vmatprep.subr.bf16.mxu0 0
        %2212 = vmatpush1.bf16.msra.mxu0 0
        %2213 = vmatprep.subr.bf16.mxu0 0
        %2214 = vmatpush1.bf16.msra.mxu0 0
        %2215 = vmatprep.subr.bf16.mxu0 0
        %2216 = vmatpush1.bf16.msra.mxu0 0
        %2217 = vmatprep.subr.bf16.mxu0 0
        %2218 = vmatpush1.bf16.msra.mxu0 0
        %2219 = vmatprep.subr.bf16.mxu0 0
        %2220 = vmatpush1.bf16.msra.mxu0 0
        %2221 = vmatprep.subr.bf16.mxu0 0
        %2222 = vmatpush1.bf16.msra.mxu0 0
        %2223 = vmatprep.subr.bf16.mxu0 0
        %2224 = vmatpush1.bf16.msra.mxu0 0
        %2225 = vmatprep.mubr.bf16.mxu0 0
        %2226 = vmatmul.mubr.bf16.gmra.mrb[0].mxu0 %v1685
        %v2227 = vpop.f32.mrb[0].mxu0
        %v2228 = vadd.f32 0.0, %v2227
        %v2229 = vpop.f32.mrb[0].mxu0
        %v2230 = vpop.f32.mrb[0].mxu0
        %v2231 = vadd.f32 0.0, %v2230
        %v2232 = vpop.f32.mrb[0].mxu0
        %2233 = vmatprep.mubr.bf16.mxu0 0
        %2234 = vmatmul.mubr.bf16.gmra.mrb[0].mxu0 %v1686
        %v2235 = vpop.f32.mrb[0].mxu0
        %v2236 = vadd.f32 0.0, %v2235
        %v2237 = vpop.f32.mrb[0].mxu0
        %v2238 = vpop.f32.mrb[0].mxu0
        %v2239 = vadd.f32 0.0, %v2238
        %v2240 = vpop.f32.mrb[0].mxu0
        %2241 = vmatprep.mubr.bf16.mxu0 0
        %2242 = vmatmul.mubr.bf16.gmra.mrb[0].mxu0 %v1687
        %v2243 = vpop.f32.mrb[0].mxu0
        %v2244 = vadd.f32 0.0, %v2243
        %v2245 = vpop.f32.mrb[0].mxu0
        %v2246 = vpop.f32.mrb[0].mxu0
        %v2247 = vadd.f32 0.0, %v2246
        %v2248 = vpop.f32.mrb[0].mxu0
        %2249 = vmatprep.mubr.bf16.mxu0 0
        %2250 = vmatmul.mubr.bf16.gmra.mrb[0].mxu0 %v1688
        %v2251 = vpop.f32.mrb[0].mxu0
        %v2252 = vadd.f32 0.0, %v2251
        %v2253 = vpop.f32.mrb[0].mxu0
        %v2254 = vpop.f32.mrb[0].mxu0
        %v2255 = vadd.f32 0.0, %v2254
        %v2256 = vpop.f32.mrb[0].mxu0
        %2257 = vmatprep.mubr.bf16.mxu0 0
        %2258 = vmatmul.mubr.bf16.gmra.mrb[0].mxu0 %v1689
        %v2259 = vpop.f32.mrb[0].mxu0
        %v2260 = vadd.f32 0.0, %v2259
        %v2261 = vpop.f32.mrb[0].mxu0
        %v2262 = vpop.f32.mrb[0].mxu0
        %v2263 = vadd.f32 0.0, %v2262
        %v2264 = vpop.f32.mrb[0].mxu0
        %2265 = vmatprep.mubr.bf16.mxu0 0
        %2266 = vmatmul.mubr.bf16.gmra.mrb[0].mxu0 %v1690
        %v2267 = vpop.f32.mrb[0].mxu0
        %v2268 = vadd.f32 0.0, %v2267
        %v2269 = vpop.f32.mrb[0].mxu0
        %v2270 = vpop.f32.mrb[0].mxu0
        %v2271 = vadd.f32 0.0, %v2270
        %v2272 = vpop.f32.mrb[0].mxu0
        %2273 = vmatprep.mubr.bf16.mxu0 0
        %2274 = vmatmul.mubr.bf16.gmra.mrb[0].mxu0 %v1691
        %v2275 = vpop.f32.mrb[0].mxu0
        %v2276 = vadd.f32 0.0, %v2275
        %v2277 = vpop.f32.mrb[0].mxu0
        %v2278 = vpop.f32.mrb[0].mxu0
        %v2279 = vadd.f32 0.0, %v2278
        %v2280 = vpop.f32.mrb[0].mxu0
        %2281 = vmatprep.mubr.bf16.mxu0 0
        %2282 = vmatmul.mubr.bf16.gmra.mrb[0].mxu0 %v2143
        %v2283 = vpop.f32.mrb[0].mxu0
        %v2284 = vadd.f32 0.0, %v2283
        %v2285 = vpop.f32.mrb[0].mxu0
        %v2286 = vpop.f32.mrb[0].mxu0
        %v2287 = vadd.f32 0.0, %v2286
        %v2288 = vpop.f32.mrb[0].mxu0
        %2289 = vdwg.mxu0
        %v2290 = vadd.f32 %v2106, %v2228
        %v2291 = vadd.f32 %v2107, %v2231
        %v2292 = vadd.f32 %v2108, %v2236
        %v2293 = vadd.f32 %v2109, %v2239
        %v2294 = vadd.f32 %v2110, %v2244
        %v2295 = vadd.f32 %v2111, %v2247
        %v2296 = vadd.f32 %v2112, %v2252
        %v2297 = vadd.f32 %v2113, %v2255
        %v2298 = vadd.f32 %v2114, %v2260
        %v2299 = vadd.f32 %v2115, %v2263
        %v2300 = vadd.f32 %v2116, %v2268
        %v2301 = vadd.f32 %v2117, %v2271
        %v2302 = vadd.f32 %v2118, %v2276
        %v2303 = vadd.f32 %v2119, %v2279
        %v2304 = vadd.f32 %v2120, %v2284
        %v2305 = vadd.f32 %v2121, %v2287
        %v2307 = vshrl.u32 %v1241, 16
        %v2309 = vrot.slane %v2307, 4
        %v2310 = vshll.u32 %v1241, 16
        %v2312 = vrot.slane %v2310, 5
        %v2313 = vor.u32 %v2309, %v2312
        %v2314 = vrot.slane %v2313, 4
        %v2316 = vshll.u32 %v1242, 16
        %v2318 = vrot.slane %v2316, 5
        %v2319 = vsel %vm1265, %v2314, %v2318
        %v2320 = vshrl.u32 %v1242, 16
        %v2322 = vrot.slane %v2320, 4
        %v2323 = vor.u32 %v2322, %v2318
        %v2324 = vrot.slane %v2323, 4
        %v2326 = vshll.u32 %v1243, 16
        %v2328 = vrot.slane %v2326, 5
        %v2329 = vsel %vm1265, %v2324, %v2328
        %s2330 = scalar_lea.vmem %s1148, 256 [#allocation5]
        %v2331 = vld [vmem:[%s2330] sm:$0xf]
        %v2332 = vld [vmem:[%s2330 + $0x4] sm:$0xf]
        %v2333 = vld [vmem:[%s2330 + $0x8] sm:$0xf]
        %v2334 = vld [vmem:[%s2330 + $0xc] sm:$0xf]
        %v2335 = vld [vmem:[%s2330 + $0x10] sm:$0xf]
        %v2336 = vld [vmem:[%s2330 + $0x14] sm:$0xf]
        %v2337 = vld [vmem:[%s2330 + $0x18] sm:$0xf]
        %v2338 = vld [vmem:[%s2330 + $0x1c] sm:$0xf]
        %v2339 = vld [vmem:[%s2330 + $0x20] sm:$0xf]
        %v2340 = vld [vmem:[%s2330 + $0x24] sm:$0xf]
        %v2341 = vld [vmem:[%s2330 + $0x28] sm:$0xf]
        %v2342 = vld [vmem:[%s2330 + $0x2c] sm:$0xf]
        %v2343 = vld [vmem:[%s2330 + $0x30] sm:$0xf]
        %v2344 = vld [vmem:[%s2330 + $0x34] sm:$0xf]
        %v2345 = vld [vmem:[%s2330 + $0x38] sm:$0xf]
        %v2346 = vld [vmem:[%s2330 + $0x3c] sm:$0xf]
        %v2347 = vunpack.c.l.b16 %v2319
        %v2348 = vunpack.c.l.b16 %v2329
        %v2349 = vpack.c.b16 %v2348, %v2347
        %v2367 = vunpack.c.l.b16 %v2331
        %v2368 = vunpack.c.l.b16 %v2332
        %v2369 = vunpack.c.l.b16 %v2333
        %v2370 = vunpack.c.l.b16 %v2334
        %v2371 = vunpack.c.l.b16 %v2335
        %v2372 = vunpack.c.l.b16 %v2336
        %v2373 = vunpack.c.l.b16 %v2337
        %v2374 = vunpack.c.l.b16 %v2338
        %v2375 = vunpack.c.l.b16 %v2339
        %v2376 = vunpack.c.l.b16 %v2340
        %v2377 = vunpack.c.l.b16 %v2341
        %v2378 = vunpack.c.l.b16 %v2342
        %v2379 = vunpack.c.l.b16 %v2343
        %v2380 = vunpack.c.l.b16 %v2344
        %v2381 = vunpack.c.l.b16 %v2345
        %v2382 = vunpack.c.l.b16 %v2346
        %v2383 = vpack.c.b16 %v2368, %v2367
        %v2384 = vpack.c.b16 %v2370, %v2369
        %v2385 = vpack.c.b16 %v2372, %v2371
        %v2386 = vpack.c.b16 %v2374, %v2373
        %v2387 = vpack.c.b16 %v2376, %v2375
        %v2388 = vpack.c.b16 %v2378, %v2377
        %v2389 = vpack.c.b16 %v2380, %v2379
        %v2390 = vpack.c.b16 %v2382, %v2381
        %2399 = vmatprep.subr.bf16.mxu0 0
        %2400 = vmatpush1.bf16.msra.mxu0 %v2383
        %2401 = vmatprep.subr.bf16.mxu0 0
        %2402 = vmatpush1.bf16.msra.mxu0 %v2384
        %2403 = vmatprep.subr.bf16.mxu0 0
        %2404 = vmatpush1.bf16.msra.mxu0 %v2385
        %2405 = vmatprep.subr.bf16.mxu0 0
        %2406 = vmatpush1.bf16.msra.mxu0 %v2386
        %2407 = vmatprep.subr.bf16.mxu0 0
        %2408 = vmatpush1.bf16.msra.mxu0 %v2387
        %2409 = vmatprep.subr.bf16.mxu0 0
        %2410 = vmatpush1.bf16.msra.mxu0 %v2388
        %2411 = vmatprep.subr.bf16.mxu0 0
        %2412 = vmatpush1.bf16.msra.mxu0 %v2389
        %2413 = vmatprep.subr.bf16.mxu0 0
        %2414 = vmatpush1.bf16.msra.mxu0 %v2390
        %2415 = vmatprep.subr.bf16.mxu0 0
        %2416 = vmatpush1.bf16.msra.mxu0 0
        %2417 = vmatprep.subr.bf16.mxu0 0
        %2418 = vmatpush1.bf16.msra.mxu0 0
        %2419 = vmatprep.subr.bf16.mxu0 0
        %2420 = vmatpush1.bf16.msra.mxu0 0
        %2421 = vmatprep.subr.bf16.mxu0 0
        %2422 = vmatpush1.bf16.msra.mxu0 0
        %2423 = vmatprep.subr.bf16.mxu0 0
        %2424 = vmatpush1.bf16.msra.mxu0 0
        %2425 = vmatprep.subr.bf16.mxu0 0
        %2426 = vmatpush1.bf16.msra.mxu0 0
        %2427 = vmatprep.subr.bf16.mxu0 0
        %2428 = vmatpush1.bf16.msra.mxu0 0
        %2429 = vmatprep.subr.bf16.mxu0 0
        %2430 = vmatpush1.bf16.msra.mxu0 0
        %2431 = vmatprep.mubr.bf16.mxu0 0
        %2432 = vmatmul.mubr.bf16.gmra.mrb[0].mxu0 %v1492
        %v2433 = vpop.f32.mrb[0].mxu0
        %v2434 = vadd.f32 0.0, %v2433
        %v2435 = vpop.f32.mrb[0].mxu0
        %v2436 = vpop.f32.mrb[0].mxu0
        %v2437 = vadd.f32 0.0, %v2436
        %v2438 = vpop.f32.mrb[0].mxu0
        %2439 = vmatprep.mubr.bf16.mxu0 0
        %2440 = vmatmul.mubr.bf16.gmra.mrb[0].mxu0 %v1493
        %v2441 = vpop.f32.mrb[0].mxu0
        %v2442 = vadd.f32 0.0, %v2441
        %v2443 = vpop.f32.mrb[0].mxu0
        %v2444 = vpop.f32.mrb[0].mxu0
        %v2445 = vadd.f32 0.0, %v2444
        %v2446 = vpop.f32.mrb[0].mxu0
        %2447 = vmatprep.mubr.bf16.mxu0 0
        %2448 = vmatmul.mubr.bf16.gmra.mrb[0].mxu0 %v1494
        %v2449 = vpop.f32.mrb[0].mxu0
        %v2450 = vadd.f32 0.0, %v2449
        %v2451 = vpop.f32.mrb[0].mxu0
        %v2452 = vpop.f32.mrb[0].mxu0
        %v2453 = vadd.f32 0.0, %v2452
        %v2454 = vpop.f32.mrb[0].mxu0
        %2455 = vmatprep.mubr.bf16.mxu0 0
        %2456 = vmatmul.mubr.bf16.gmra.mrb[0].mxu0 %v1495
        %v2457 = vpop.f32.mrb[0].mxu0
        %v2458 = vadd.f32 0.0, %v2457
        %v2459 = vpop.f32.mrb[0].mxu0
        %v2460 = vpop.f32.mrb[0].mxu0
        %v2461 = vadd.f32 0.0, %v2460
        %v2462 = vpop.f32.mrb[0].mxu0
        %2463 = vmatprep.mubr.bf16.mxu0 0
        %2464 = vmatmul.mubr.bf16.gmra.mrb[0].mxu0 %v1496
        %v2465 = vpop.f32.mrb[0].mxu0
        %v2466 = vadd.f32 0.0, %v2465
        %v2467 = vpop.f32.mrb[0].mxu0
        %v2468 = vpop.f32.mrb[0].mxu0
        %v2469 = vadd.f32 0.0, %v2468
        %v2470 = vpop.f32.mrb[0].mxu0
        %2471 = vmatprep.mubr.bf16.mxu0 0
        %2472 = vmatmul.mubr.bf16.gmra.mrb[0].mxu0 %v1497
        %v2473 = vpop.f32.mrb[0].mxu0
        %v2474 = vadd.f32 0.0, %v2473
        %v2475 = vpop.f32.mrb[0].mxu0
        %v2476 = vpop.f32.mrb[0].mxu0
        %v2477 = vadd.f32 0.0, %v2476
        %v2478 = vpop.f32.mrb[0].mxu0
        %2479 = vmatprep.mubr.bf16.mxu0 0
        %2480 = vmatmul.mubr.bf16.gmra.mrb[0].mxu0 %v1498
        %v2481 = vpop.f32.mrb[0].mxu0
        %v2482 = vadd.f32 0.0, %v2481
        %v2483 = vpop.f32.mrb[0].mxu0
        %v2484 = vpop.f32.mrb[0].mxu0
        %v2485 = vadd.f32 0.0, %v2484
        %v2486 = vpop.f32.mrb[0].mxu0
        %2487 = vmatprep.mubr.bf16.mxu0 0
        %2488 = vmatmul.mubr.bf16.gmra.mrb[0].mxu0 %v2349
        %v2489 = vpop.f32.mrb[0].mxu0
        %v2490 = vadd.f32 0.0, %v2489
        %v2491 = vpop.f32.mrb[0].mxu0
        %v2492 = vpop.f32.mrb[0].mxu0
        %v2493 = vadd.f32 0.0, %v2492
        %v2494 = vpop.f32.mrb[0].mxu0
        %2495 = vdwg.mxu0
        %v2496 = vadd.f32 %v2290, %v2434
        %v2497 = vadd.f32 %v2291, %v2437
        %v2498 = vadd.f32 %v2292, %v2442
        %v2499 = vadd.f32 %v2293, %v2445
        %v2500 = vadd.f32 %v2294, %v2450
        %v2501 = vadd.f32 %v2295, %v2453
        %v2502 = vadd.f32 %v2296, %v2458
        %v2503 = vadd.f32 %v2297, %v2461
        %v2504 = vadd.f32 %v2298, %v2466
        %v2505 = vadd.f32 %v2299, %v2469
        %v2506 = vadd.f32 %v2300, %v2474
        %v2507 = vadd.f32 %v2301, %v2477
        %v2508 = vadd.f32 %v2302, %v2482
        %v2509 = vadd.f32 %v2303, %v2485
        %v2510 = vadd.f32 %v2304, %v2490
        %v2511 = vadd.f32 %v2305, %v2493
        %v2513 = vrot.slane %v1241, 5
        %v2514 = vrot.slane %v2513, 4
        %v2515 = vrot.slane %v1242, 5
        %v2516 = vsel %vm1855, %v2514, %v2515
        %v2517 = vrot.slane %v2515, 4
        %v2518 = vrot.slane %v1243, 5
        %v2519 = vsel %vm1855, %v2517, %v2518
        %s2520 = scalar_lea.vmem %s1148, 320 [#allocation5]
        %v2521 = vld [vmem:[%s2520] sm:$0xf]
        %v2522 = vld [vmem:[%s2520 + $0x4] sm:$0xf]
        %v2523 = vld [vmem:[%s2520 + $0x8] sm:$0xf]
        %v2524 = vld [vmem:[%s2520 + $0xc] sm:$0xf]
        %v2525 = vld [vmem:[%s2520 + $0x10] sm:$0xf]
        %v2526 = vld [vmem:[%s2520 + $0x14] sm:$0xf]
        %v2527 = vld [vmem:[%s2520 + $0x18] sm:$0xf]
        %v2528 = vld [vmem:[%s2520 + $0x1c] sm:$0xf]
        %v2529 = vld [vmem:[%s2520 + $0x20] sm:$0xf]
        %v2530 = vld [vmem:[%s2520 + $0x24] sm:$0xf]
        %v2531 = vld [vmem:[%s2520 + $0x28] sm:$0xf]
        %v2532 = vld [vmem:[%s2520 + $0x2c] sm:$0xf]
        %v2533 = vld [vmem:[%s2520 + $0x30] sm:$0xf]
        %v2534 = vld [vmem:[%s2520 + $0x34] sm:$0xf]
        %v2535 = vld [vmem:[%s2520 + $0x38] sm:$0xf]
        %v2536 = vld [vmem:[%s2520 + $0x3c] sm:$0xf]
        %v2537 = vunpack.c.l.b16 %v2516
        %v2538 = vunpack.c.l.b16 %v2519
        %v2539 = vpack.c.b16 %v2538, %v2537
        %v2557 = vunpack.c.l.b16 %v2521
        %v2558 = vunpack.c.l.b16 %v2522
        %v2559 = vunpack.c.l.b16 %v2523
        %v2560 = vunpack.c.l.b16 %v2524
        %v2561 = vunpack.c.l.b16 %v2525
        %v2562 = vunpack.c.l.b16 %v2526
        %v2563 = vunpack.c.l.b16 %v2527
        %v2564 = vunpack.c.l.b16 %v2528
        %v2565 = vunpack.c.l.b16 %v2529
        %v2566 = vunpack.c.l.b16 %v2530
        %v2567 = vunpack.c.l.b16 %v2531
        %v2568 = vunpack.c.l.b16 %v2532
        %v2569 = vunpack.c.l.b16 %v2533
        %v2570 = vunpack.c.l.b16 %v2534
        %v2571 = vunpack.c.l.b16 %v2535
        %v2572 = vunpack.c.l.b16 %v2536
        %v2573 = vpack.c.b16 %v2558, %v2557
        %v2574 = vpack.c.b16 %v2560, %v2559
        %v2575 = vpack.c.b16 %v2562, %v2561
        %v2576 = vpack.c.b16 %v2564, %v2563
        %v2577 = vpack.c.b16 %v2566, %v2565
        %v2578 = vpack.c.b16 %v2568, %v2567
        %v2579 = vpack.c.b16 %v2570, %v2569
        %v2580 = vpack.c.b16 %v2572, %v2571
        %2589 = vmatprep.subr.bf16.mxu0 0
        %2590 = vmatpush1.bf16.msra.mxu0 %v2573
        %2591 = vmatprep.subr.bf16.mxu0 0
        %2592 = vmatpush1.bf16.msra.mxu0 %v2574
        %2593 = vmatprep.subr.bf16.mxu0 0
        %2594 = vmatpush1.bf16.msra.mxu0 %v2575
        %2595 = vmatprep.subr.bf16.mxu0 0
        %2596 = vmatpush1.bf16.msra.mxu0 %v2576
        %2597 = vmatprep.subr.bf16.mxu0 0
        %2598 = vmatpush1.bf16.msra.mxu0 %v2577
        %2599 = vmatprep.subr.bf16.mxu0 0
        %2600 = vmatpush1.bf16.msra.mxu0 %v2578
        %2601 = vmatprep.subr.bf16.mxu0 0
        %2602 = vmatpush1.bf16.msra.mxu0 %v2579
        %2603 = vmatprep.subr.bf16.mxu0 0
        %2604 = vmatpush1.bf16.msra.mxu0 %v2580
        %2605 = vmatprep.subr.bf16.mxu0 0
        %2606 = vmatpush1.bf16.msra.mxu0 0
        %2607 = vmatprep.subr.bf16.mxu0 0
        %2608 = vmatpush1.bf16.msra.mxu0 0
        %2609 = vmatprep.subr.bf16.mxu0 0
        %2610 = vmatpush1.bf16.msra.mxu0 0
        %2611 = vmatprep.subr.bf16.mxu0 0
        %2612 = vmatpush1.bf16.msra.mxu0 0
        %2613 = vmatprep.subr.bf16.mxu0 0
        %2614 = vmatpush1.bf16.msra.mxu0 0
        %2615 = vmatprep.subr.bf16.mxu0 0
        %2616 = vmatpush1.bf16.msra.mxu0 0
        %2617 = vmatprep.subr.bf16.mxu0 0
        %2618 = vmatpush1.bf16.msra.mxu0 0
        %2619 = vmatprep.subr.bf16.mxu0 0
        %2620 = vmatpush1.bf16.msra.mxu0 0
        %2621 = vmatprep.mubr.bf16.mxu0 0
        %2622 = vmatmul.mubr.bf16.gmra.mrb[0].mxu0 %v1946
        %v2623 = vpop.f32.mrb[0].mxu0
        %v2624 = vadd.f32 0.0, %v2623
        %v2625 = vpop.f32.mrb[0].mxu0
        %v2626 = vpop.f32.mrb[0].mxu0
        %v2627 = vadd.f32 0.0, %v2626
        %v2628 = vpop.f32.mrb[0].mxu0
        %2629 = vmatprep.mubr.bf16.mxu0 0
        %2630 = vmatmul.mubr.bf16.gmra.mrb[0].mxu0 %v1947
        %v2631 = vpop.f32.mrb[0].mxu0
        %v2632 = vadd.f32 0.0, %v2631
        %v2633 = vpop.f32.mrb[0].mxu0
        %v2634 = vpop.f32.mrb[0].mxu0
        %v2635 = vadd.f32 0.0, %v2634
        %v2636 = vpop.f32.mrb[0].mxu0
        %2637 = vmatprep.mubr.bf16.mxu0 0
        %2638 = vmatmul.mubr.bf16.gmra.mrb[0].mxu0 %v1948
        %v2639 = vpop.f32.mrb[0].mxu0
        %v2640 = vadd.f32 0.0, %v2639
        %v2641 = vpop.f32.mrb[0].mxu0
        %v2642 = vpop.f32.mrb[0].mxu0
        %v2643 = vadd.f32 0.0, %v2642
        %v2644 = vpop.f32.mrb[0].mxu0
        %2645 = vmatprep.mubr.bf16.mxu0 0
        %2646 = vmatmul.mubr.bf16.gmra.mrb[0].mxu0 %v1949
        %v2647 = vpop.f32.mrb[0].mxu0
        %v2648 = vadd.f32 0.0, %v2647
        %v2649 = vpop.f32.mrb[0].mxu0
        %v2650 = vpop.f32.mrb[0].mxu0
        %v2651 = vadd.f32 0.0, %v2650
        %v2652 = vpop.f32.mrb[0].mxu0
        %2653 = vmatprep.mubr.bf16.mxu0 0
        %2654 = vmatmul.mubr.bf16.gmra.mrb[0].mxu0 %v1950
        %v2655 = vpop.f32.mrb[0].mxu0
        %v2656 = vadd.f32 0.0, %v2655
        %v2657 = vpop.f32.mrb[0].mxu0
        %v2658 = vpop.f32.mrb[0].mxu0
        %v2659 = vadd.f32 0.0, %v2658
        %v2660 = vpop.f32.mrb[0].mxu0
        %2661 = vmatprep.mubr.bf16.mxu0 0
        %2662 = vmatmul.mubr.bf16.gmra.mrb[0].mxu0 %v1951
        %v2663 = vpop.f32.mrb[0].mxu0
        %v2664 = vadd.f32 0.0, %v2663
        %v2665 = vpop.f32.mrb[0].mxu0
        %v2666 = vpop.f32.mrb[0].mxu0
        %v2667 = vadd.f32 0.0, %v2666
        %v2668 = vpop.f32.mrb[0].mxu0
        %2669 = vmatprep.mubr.bf16.mxu0 0
        %2670 = vmatmul.mubr.bf16.gmra.mrb[0].mxu0 %v1952
        %v2671 = vpop.f32.mrb[0].mxu0
        %v2672 = vadd.f32 0.0, %v2671
        %v2673 = vpop.f32.mrb[0].mxu0
        %v2674 = vpop.f32.mrb[0].mxu0
        %v2675 = vadd.f32 0.0, %v2674
        %v2676 = vpop.f32.mrb[0].mxu0
        %2677 = vmatprep.mubr.bf16.mxu0 0
        %2678 = vmatmul.mubr.bf16.gmra.mrb[0].mxu0 %v2539
        %v2679 = vpop.f32.mrb[0].mxu0
        %v2680 = vadd.f32 0.0, %v2679
        %v2681 = vpop.f32.mrb[0].mxu0
        %v2682 = vpop.f32.mrb[0].mxu0
        %v2683 = vadd.f32 0.0, %v2682
        %v2684 = vpop.f32.mrb[0].mxu0
        %2685 = vdwg.mxu0
        %v2686 = vadd.f32 %v2496, %v2624
        %v2687 = vadd.f32 %v2497, %v2627
        %v2688 = vadd.f32 %v2498, %v2632
        %v2689 = vadd.f32 %v2499, %v2635
        %v2690 = vadd.f32 %v2500, %v2640
        %v2691 = vadd.f32 %v2501, %v2643
        %v2692 = vadd.f32 %v2502, %v2648
        %v2693 = vadd.f32 %v2503, %v2651
        %v2694 = vadd.f32 %v2504, %v2656
        %v2695 = vadd.f32 %v2505, %v2659
        %v2696 = vadd.f32 %v2506, %v2664
        %v2697 = vadd.f32 %v2507, %v2667
        %v2698 = vadd.f32 %v2508, %v2672
        %v2699 = vadd.f32 %v2509, %v2675
        %v2700 = vadd.f32 %v2510, %v2680
        %v2701 = vadd.f32 %v2511, %v2683
        %s2702 = scalar_lea.vmem %s1148, 384 [#allocation5]
        %v2703 = vld [vmem:[%s2702] sm:$0xf]
        %v2704 = vld [vmem:[%s2702 + $0x4] sm:$0xf]
        %v2705 = vld [vmem:[%s2702 + $0x8] sm:$0xf]
        %v2706 = vld [vmem:[%s2702 + $0xc] sm:$0xf]
        %v2707 = vld [vmem:[%s2702 + $0x10] sm:$0xf]
        %v2708 = vld [vmem:[%s2702 + $0x14] sm:$0xf]
        %v2709 = vld [vmem:[%s2702 + $0x18] sm:$0xf]
        %v2710 = vld [vmem:[%s2702 + $0x1c] sm:$0xf]
        %v2711 = vld [vmem:[%s2702 + $0x20] sm:$0xf]
        %v2712 = vld [vmem:[%s2702 + $0x24] sm:$0xf]
        %v2713 = vld [vmem:[%s2702 + $0x28] sm:$0xf]
        %v2714 = vld [vmem:[%s2702 + $0x2c] sm:$0xf]
        %v2715 = vld [vmem:[%s2702 + $0x30] sm:$0xf]
        %v2716 = vld [vmem:[%s2702 + $0x34] sm:$0xf]
        %v2717 = vld [vmem:[%s2702 + $0x38] sm:$0xf]
        %v2718 = vld [vmem:[%s2702 + $0x3c] sm:$0xf]
        %v2721 = vunpack.c.l.b16 %v1244
        %v2722 = vunpack.c.l.b16 %v1245
        %v2723 = vpack.c.b16 %v2722, %v2721
        %v2741 = vunpack.c.l.b16 %v2703
        %v2742 = vunpack.c.l.b16 %v2704
        %v2743 = vunpack.c.l.b16 %v2705
        %v2744 = vunpack.c.l.b16 %v2706
        %v2745 = vunpack.c.l.b16 %v2707
        %v2746 = vunpack.c.l.b16 %v2708
        %v2747 = vunpack.c.l.b16 %v2709
        %v2748 = vunpack.c.l.b16 %v2710
        %v2749 = vunpack.c.l.b16 %v2711
        %v2750 = vunpack.c.l.b16 %v2712
        %v2751 = vunpack.c.l.b16 %v2713
        %v2752 = vunpack.c.l.b16 %v2714
        %v2753 = vunpack.c.l.b16 %v2715
        %v2754 = vunpack.c.l.b16 %v2716
        %v2755 = vunpack.c.l.b16 %v2717
        %v2756 = vunpack.c.l.b16 %v2718
        %v2757 = vpack.c.b16 %v2742, %v2741
        %v2758 = vpack.c.b16 %v2744, %v2743
        %v2759 = vpack.c.b16 %v2746, %v2745
        %v2760 = vpack.c.b16 %v2748, %v2747
        %v2761 = vpack.c.b16 %v2750, %v2749
        %v2762 = vpack.c.b16 %v2752, %v2751
        %v2763 = vpack.c.b16 %v2754, %v2753
        %v2764 = vpack.c.b16 %v2756, %v2755
        %2773 = vmatprep.subr.bf16.mxu0 0
        %2774 = vmatpush1.bf16.msra.mxu0 %v2757
        %2775 = vmatprep.subr.bf16.mxu0 0
        %2776 = vmatpush1.bf16.msra.mxu0 %v2758
        %2777 = vmatprep.subr.bf16.mxu0 0
        %2778 = vmatpush1.bf16.msra.mxu0 %v2759
        %2779 = vmatprep.subr.bf16.mxu0 0
        %2780 = vmatpush1.bf16.msra.mxu0 %v2760
        %2781 = vmatprep.subr.bf16.mxu0 0
        %2782 = vmatpush1.bf16.msra.mxu0 %v2761
        %2783 = vmatprep.subr.bf16.mxu0 0
        %2784 = vmatpush1.bf16.msra.mxu0 %v2762
        %2785 = vmatprep.subr.bf16.mxu0 0
        %2786 = vmatpush1.bf16.msra.mxu0 %v2763
        %2787 = vmatprep.subr.bf16.mxu0 0
        %2788 = vmatpush1.bf16.msra.mxu0 %v2764
        %2789 = vmatprep.subr.bf16.mxu0 0
        %2790 = vmatpush1.bf16.msra.mxu0 0
        %2791 = vmatprep.subr.bf16.mxu0 0
        %2792 = vmatpush1.bf16.msra.mxu0 0
        %2793 = vmatprep.subr.bf16.mxu0 0
        %2794 = vmatpush1.bf16.msra.mxu0 0
        %2795 = vmatprep.subr.bf16.mxu0 0
        %2796 = vmatpush1.bf16.msra.mxu0 0
        %2797 = vmatprep.subr.bf16.mxu0 0
        %2798 = vmatpush1.bf16.msra.mxu0 0
        %2799 = vmatprep.subr.bf16.mxu0 0
        %2800 = vmatpush1.bf16.msra.mxu0 0
        %2801 = vmatprep.subr.bf16.mxu0 0
        %2802 = vmatpush1.bf16.msra.mxu0 0
        %2803 = vmatprep.subr.bf16.mxu0 0
        %2804 = vmatpush1.bf16.msra.mxu0 0
        %2805 = vmatprep.mubr.bf16.mxu0 0
        %2806 = vmatmul.mubr.bf16.gmra.mrb[0].mxu0 %v1686
        %v2807 = vpop.f32.mrb[0].mxu0
        %v2808 = vadd.f32 0.0, %v2807
        %v2809 = vpop.f32.mrb[0].mxu0
        %v2810 = vpop.f32.mrb[0].mxu0
        %v2811 = vadd.f32 0.0, %v2810
        %v2812 = vpop.f32.mrb[0].mxu0
        %2813 = vmatprep.mubr.bf16.mxu0 0
        %2814 = vmatmul.mubr.bf16.gmra.mrb[0].mxu0 %v1687
        %v2815 = vpop.f32.mrb[0].mxu0
        %v2816 = vadd.f32 0.0, %v2815
        %v2817 = vpop.f32.mrb[0].mxu0
        %v2818 = vpop.f32.mrb[0].mxu0
        %v2819 = vadd.f32 0.0, %v2818
        %v2820 = vpop.f32.mrb[0].mxu0
        %2821 = vmatprep.mubr.bf16.mxu0 0
        %2822 = vmatmul.mubr.bf16.gmra.mrb[0].mxu0 %v1688
        %v2823 = vpop.f32.mrb[0].mxu0
        %v2824 = vadd.f32 0.0, %v2823
        %v2825 = vpop.f32.mrb[0].mxu0
        %v2826 = vpop.f32.mrb[0].mxu0
        %v2827 = vadd.f32 0.0, %v2826
        %v2828 = vpop.f32.mrb[0].mxu0
        %2829 = vmatprep.mubr.bf16.mxu0 0
        %2830 = vmatmul.mubr.bf16.gmra.mrb[0].mxu0 %v1689
        %v2831 = vpop.f32.mrb[0].mxu0
        %v2832 = vadd.f32 0.0, %v2831
        %v2833 = vpop.f32.mrb[0].mxu0
        %v2834 = vpop.f32.mrb[0].mxu0
        %v2835 = vadd.f32 0.0, %v2834
        %v2836 = vpop.f32.mrb[0].mxu0
        %2837 = vmatprep.mubr.bf16.mxu0 0
        %2838 = vmatmul.mubr.bf16.gmra.mrb[0].mxu0 %v1690
        %v2839 = vpop.f32.mrb[0].mxu0
        %v2840 = vadd.f32 0.0, %v2839
        %v2841 = vpop.f32.mrb[0].mxu0
        %v2842 = vpop.f32.mrb[0].mxu0
        %v2843 = vadd.f32 0.0, %v2842
        %v2844 = vpop.f32.mrb[0].mxu0
        %2845 = vmatprep.mubr.bf16.mxu0 0
        %2846 = vmatmul.mubr.bf16.gmra.mrb[0].mxu0 %v1691
        %v2847 = vpop.f32.mrb[0].mxu0
        %v2848 = vadd.f32 0.0, %v2847
        %v2849 = vpop.f32.mrb[0].mxu0
        %v2850 = vpop.f32.mrb[0].mxu0
        %v2851 = vadd.f32 0.0, %v2850
        %v2852 = vpop.f32.mrb[0].mxu0
        %2853 = vmatprep.mubr.bf16.mxu0 0
        %2854 = vmatmul.mubr.bf16.gmra.mrb[0].mxu0 %v2143
        %v2855 = vpop.f32.mrb[0].mxu0
        %v2856 = vadd.f32 0.0, %v2855
        %v2857 = vpop.f32.mrb[0].mxu0
        %v2858 = vpop.f32.mrb[0].mxu0
        %v2859 = vadd.f32 0.0, %v2858
        %v2860 = vpop.f32.mrb[0].mxu0
        %2861 = vmatprep.mubr.bf16.mxu0 0
        %2862 = vmatmul.mubr.bf16.gmra.mrb[0].mxu0 %v2723
        %v2863 = vpop.f32.mrb[0].mxu0
        %v2864 = vadd.f32 0.0, %v2863
        %v2865 = vpop.f32.mrb[0].mxu0
        %v2866 = vpop.f32.mrb[0].mxu0
        %v2867 = vadd.f32 0.0, %v2866
        %v2868 = vpop.f32.mrb[0].mxu0
        %2869 = vdwg.mxu0
        %v2870 = vadd.f32 %v2686, %v2808
        %v2871 = vadd.f32 %v2687, %v2811
        %v2872 = vadd.f32 %v2688, %v2816
        %v2873 = vadd.f32 %v2689, %v2819
        %v2874 = vadd.f32 %v2690, %v2824
        %v2875 = vadd.f32 %v2691, %v2827
        %v2876 = vadd.f32 %v2692, %v2832
        %v2877 = vadd.f32 %v2693, %v2835
        %v2878 = vadd.f32 %v2694, %v2840
        %v2879 = vadd.f32 %v2695, %v2843
        %v2880 = vadd.f32 %v2696, %v2848
        %v2881 = vadd.f32 %v2697, %v2851
        %v2882 = vadd.f32 %v2698, %v2856
        %v2883 = vadd.f32 %v2699, %v2859
        %v2884 = vadd.f32 %v2700, %v2864
        %v2885 = vadd.f32 %v2701, %v2867
        %v2887 = vshrl.u32 %v1244, 16
        %v2889 = vrot.slane %v2887, 4
        %v2890 = vshll.u32 %v1244, 16
        %v2892 = vrot.slane %v2890, 5
        %v2893 = vor.u32 %v2889, %v2892
        %v2894 = vrot.slane %v2893, 4
        %v2896 = vshll.u32 %v1245, 16
        %v2898 = vrot.slane %v2896, 5
        %v2899 = vsel %vm1265, %v2894, %v2898
        %v2900 = vshrl.u32 %v1245, 16
        %v2902 = vrot.slane %v2900, 4
        %v2903 = vor.u32 %v2902, %v2898
        %v2904 = vrot.slane %v2903, 4
        %v2906 = vshll.u32 %v1246, 16
        %v2908 = vrot.slane %v2906, 5
        %v2909 = vsel %vm1265, %v2904, %v2908
        %s2910 = scalar_lea.vmem %s1148, 448 [#allocation5]
        %v2911 = vld [vmem:[%s2910] sm:$0xf]
        %v2912 = vld [vmem:[%s2910 + $0x4] sm:$0xf]
        %v2913 = vld [vmem:[%s2910 + $0x8] sm:$0xf]
        %v2914 = vld [vmem:[%s2910 + $0xc] sm:$0xf]
        %v2915 = vld [vmem:[%s2910 + $0x10] sm:$0xf]
        %v2916 = vld [vmem:[%s2910 + $0x14] sm:$0xf]
        %v2917 = vld [vmem:[%s2910 + $0x18] sm:$0xf]
        %v2918 = vld [vmem:[%s2910 + $0x1c] sm:$0xf]
        %v2919 = vld [vmem:[%s2910 + $0x20] sm:$0xf]
        %v2920 = vld [vmem:[%s2910 + $0x24] sm:$0xf]
        %v2921 = vld [vmem:[%s2910 + $0x28] sm:$0xf]
        %v2922 = vld [vmem:[%s2910 + $0x2c] sm:$0xf]
        %v2923 = vld [vmem:[%s2910 + $0x30] sm:$0xf]
        %v2924 = vld [vmem:[%s2910 + $0x34] sm:$0xf]
        %v2925 = vld [vmem:[%s2910 + $0x38] sm:$0xf]
        %v2926 = vld [vmem:[%s2910 + $0x3c] sm:$0xf]
        %v2927 = vunpack.c.l.b16 %v2899
        %v2928 = vunpack.c.l.b16 %v2909
        %v2929 = vpack.c.b16 %v2928, %v2927
        %v2947 = vunpack.c.l.b16 %v2911
        %v2948 = vunpack.c.l.b16 %v2912
        %v2949 = vunpack.c.l.b16 %v2913
        %v2950 = vunpack.c.l.b16 %v2914
        %v2951 = vunpack.c.l.b16 %v2915
        %v2952 = vunpack.c.l.b16 %v2916
        %v2953 = vunpack.c.l.b16 %v2917
        %v2954 = vunpack.c.l.b16 %v2918
        %v2955 = vunpack.c.l.b16 %v2919
        %v2956 = vunpack.c.l.b16 %v2920
        %v2957 = vunpack.c.l.b16 %v2921
        %v2958 = vunpack.c.l.b16 %v2922
        %v2959 = vunpack.c.l.b16 %v2923
        %v2960 = vunpack.c.l.b16 %v2924
        %v2961 = vunpack.c.l.b16 %v2925
        %v2962 = vunpack.c.l.b16 %v2926
        %v2963 = vpack.c.b16 %v2948, %v2947
        %v2964 = vpack.c.b16 %v2950, %v2949
        %v2965 = vpack.c.b16 %v2952, %v2951
        %v2966 = vpack.c.b16 %v2954, %v2953
        %v2967 = vpack.c.b16 %v2956, %v2955
        %v2968 = vpack.c.b16 %v2958, %v2957
        %v2969 = vpack.c.b16 %v2960, %v2959
        %v2970 = vpack.c.b16 %v2962, %v2961
        %2979 = vmatprep.subr.bf16.mxu0 0
        %2980 = vmatpush1.bf16.msra.mxu0 %v2963
        %2981 = vmatprep.subr.bf16.mxu0 0
        %2982 = vmatpush1.bf16.msra.mxu0 %v2964
        %2983 = vmatprep.subr.bf16.mxu0 0
        %2984 = vmatpush1.bf16.msra.mxu0 %v2965
        %2985 = vmatprep.subr.bf16.mxu0 0
        %2986 = vmatpush1.bf16.msra.mxu0 %v2966
        %2987 = vmatprep.subr.bf16.mxu0 0
        %2988 = vmatpush1.bf16.msra.mxu0 %v2967
        %2989 = vmatprep.subr.bf16.mxu0 0
        %2990 = vmatpush1.bf16.msra.mxu0 %v2968
        %2991 = vmatprep.subr.bf16.mxu0 0
        %2992 = vmatpush1.bf16.msra.mxu0 %v2969
        %2993 = vmatprep.subr.bf16.mxu0 0
        %2994 = vmatpush1.bf16.msra.mxu0 %v2970
        %2995 = vmatprep.subr.bf16.mxu0 0
        %2996 = vmatpush1.bf16.msra.mxu0 0
        %2997 = vmatprep.subr.bf16.mxu0 0
        %2998 = vmatpush1.bf16.msra.mxu0 0
        %2999 = vmatprep.subr.bf16.mxu0 0
        %3000 = vmatpush1.bf16.msra.mxu0 0
        %3001 = vmatprep.subr.bf16.mxu0 0
        %3002 = vmatpush1.bf16.msra.mxu0 0
        %3003 = vmatprep.subr.bf16.mxu0 0
        %3004 = vmatpush1.bf16.msra.mxu0 0
        %3005 = vmatprep.subr.bf16.mxu0 0
        %3006 = vmatpush1.bf16.msra.mxu0 0
        %3007 = vmatprep.subr.bf16.mxu0 0
        %3008 = vmatpush1.bf16.msra.mxu0 0
        %3009 = vmatprep.subr.bf16.mxu0 0
        %3010 = vmatpush1.bf16.msra.mxu0 0
        %3011 = vmatprep.mubr.bf16.mxu0 0
        %3012 = vmatmul.mubr.bf16.gmra.mrb[0].mxu0 %v1493
        %v3013 = vpop.f32.mrb[0].mxu0
        %v3014 = vadd.f32 0.0, %v3013
        %v3015 = vpop.f32.mrb[0].mxu0
        %v3016 = vpop.f32.mrb[0].mxu0
        %v3017 = vadd.f32 0.0, %v3016
        %v3018 = vpop.f32.mrb[0].mxu0
        %3019 = vmatprep.mubr.bf16.mxu0 0
        %3020 = vmatmul.mubr.bf16.gmra.mrb[0].mxu0 %v1494
        %v3021 = vpop.f32.mrb[0].mxu0
        %v3022 = vadd.f32 0.0, %v3021
        %v3023 = vpop.f32.mrb[0].mxu0
        %v3024 = vpop.f32.mrb[0].mxu0
        %v3025 = vadd.f32 0.0, %v3024
        %v3026 = vpop.f32.mrb[0].mxu0
        %3027 = vmatprep.mubr.bf16.mxu0 0
        %3028 = vmatmul.mubr.bf16.gmra.mrb[0].mxu0 %v1495
        %v3029 = vpop.f32.mrb[0].mxu0
        %v3030 = vadd.f32 0.0, %v3029
        %v3031 = vpop.f32.mrb[0].mxu0
        %v3032 = vpop.f32.mrb[0].mxu0
        %v3033 = vadd.f32 0.0, %v3032
        %v3034 = vpop.f32.mrb[0].mxu0
        %3035 = vmatprep.mubr.bf16.mxu0 0
        %3036 = vmatmul.mubr.bf16.gmra.mrb[0].mxu0 %v1496
        %v3037 = vpop.f32.mrb[0].mxu0
        %v3038 = vadd.f32 0.0, %v3037
        %v3039 = vpop.f32.mrb[0].mxu0
        %v3040 = vpop.f32.mrb[0].mxu0
        %v3041 = vadd.f32 0.0, %v3040
        %v3042 = vpop.f32.mrb[0].mxu0
        %3043 = vmatprep.mubr.bf16.mxu0 0
        %3044 = vmatmul.mubr.bf16.gmra.mrb[0].mxu0 %v1497
        %v3045 = vpop.f32.mrb[0].mxu0
        %v3046 = vadd.f32 0.0, %v3045
        %v3047 = vpop.f32.mrb[0].mxu0
        %v3048 = vpop.f32.mrb[0].mxu0
        %v3049 = vadd.f32 0.0, %v3048
        %v3050 = vpop.f32.mrb[0].mxu0
        %3051 = vmatprep.mubr.bf16.mxu0 0
        %3052 = vmatmul.mubr.bf16.gmra.mrb[0].mxu0 %v1498
        %v3053 = vpop.f32.mrb[0].mxu0
        %v3054 = vadd.f32 0.0, %v3053
        %v3055 = vpop.f32.mrb[0].mxu0
        %v3056 = vpop.f32.mrb[0].mxu0
        %v3057 = vadd.f32 0.0, %v3056
        %v3058 = vpop.f32.mrb[0].mxu0
        %3059 = vmatprep.mubr.bf16.mxu0 0
        %3060 = vmatmul.mubr.bf16.gmra.mrb[0].mxu0 %v2349
        %v3061 = vpop.f32.mrb[0].mxu0
        %v3062 = vadd.f32 0.0, %v3061
        %v3063 = vpop.f32.mrb[0].mxu0
        %v3064 = vpop.f32.mrb[0].mxu0
        %v3065 = vadd.f32 0.0, %v3064
        %v3066 = vpop.f32.mrb[0].mxu0
        %3067 = vmatprep.mubr.bf16.mxu0 0
        %3068 = vmatmul.mubr.bf16.gmra.mrb[0].mxu0 %v2929
        %v3069 = vpop.f32.mrb[0].mxu0
        %v3070 = vadd.f32 0.0, %v3069
        %v3071 = vpop.f32.mrb[0].mxu0
        %v3072 = vpop.f32.mrb[0].mxu0
        %v3073 = vadd.f32 0.0, %v3072
        %v3074 = vpop.f32.mrb[0].mxu0
        %3075 = vdwg.mxu0
        %v3076 = vadd.f32 %v2870, %v3014
        %v3077 = vadd.f32 %v2871, %v3017
        %v3078 = vadd.f32 %v2872, %v3022
        %v3079 = vadd.f32 %v2873, %v3025
        %v3080 = vadd.f32 %v2874, %v3030
        %v3081 = vadd.f32 %v2875, %v3033
        %v3082 = vadd.f32 %v2876, %v3038
        %v3083 = vadd.f32 %v2877, %v3041
        %v3084 = vadd.f32 %v2878, %v3046
        %v3085 = vadd.f32 %v2879, %v3049
        %v3086 = vadd.f32 %v2880, %v3054
        %v3087 = vadd.f32 %v2881, %v3057
        %v3088 = vadd.f32 %v2882, %v3062
        %v3089 = vadd.f32 %v2883, %v3065
        %v3090 = vadd.f32 %v2884, %v3070
        %v3091 = vadd.f32 %v2885, %v3073
        %v3093 = vrot.slane %v1244, 5
        %v3094 = vrot.slane %v3093, 4
        %v3095 = vrot.slane %v1245, 5
        %v3096 = vsel %vm1855, %v3094, %v3095
        %v3097 = vrot.slane %v3095, 4
        %v3098 = vrot.slane %v1246, 5
        %v3099 = vsel %vm1855, %v3097, %v3098
        %s3100 = scalar_lea.vmem %s1148, 512 [#allocation5]
        %v3101 = vld [vmem:[%s3100] sm:$0xf]
        %v3102 = vld [vmem:[%s3100 + $0x4] sm:$0xf]
        %v3103 = vld [vmem:[%s3100 + $0x8] sm:$0xf]
        %v3104 = vld [vmem:[%s3100 + $0xc] sm:$0xf]
        %v3105 = vld [vmem:[%s3100 + $0x10] sm:$0xf]
        %v3106 = vld [vmem:[%s3100 + $0x14] sm:$0xf]
        %v3107 = vld [vmem:[%s3100 + $0x18] sm:$0xf]
        %v3108 = vld [vmem:[%s3100 + $0x1c] sm:$0xf]
        %v3109 = vld [vmem:[%s3100 + $0x20] sm:$0xf]
        %v3110 = vld [vmem:[%s3100 + $0x24] sm:$0xf]
        %v3111 = vld [vmem:[%s3100 + $0x28] sm:$0xf]
        %v3112 = vld [vmem:[%s3100 + $0x2c] sm:$0xf]
        %v3113 = vld [vmem:[%s3100 + $0x30] sm:$0xf]
        %v3114 = vld [vmem:[%s3100 + $0x34] sm:$0xf]
        %v3115 = vld [vmem:[%s3100 + $0x38] sm:$0xf]
        %v3116 = vld [vmem:[%s3100 + $0x3c] sm:$0xf]
        %v3117 = vunpack.c.l.b16 %v3096
        %v3118 = vunpack.c.l.b16 %v3099
        %v3119 = vpack.c.b16 %v3118, %v3117
        %v3137 = vunpack.c.l.b16 %v3101
        %v3138 = vunpack.c.l.b16 %v3102
        %v3139 = vunpack.c.l.b16 %v3103
        %v3140 = vunpack.c.l.b16 %v3104
        %v3141 = vunpack.c.l.b16 %v3105
        %v3142 = vunpack.c.l.b16 %v3106
        %v3143 = vunpack.c.l.b16 %v3107
        %v3144 = vunpack.c.l.b16 %v3108
        %v3145 = vunpack.c.l.b16 %v3109
        %v3146 = vunpack.c.l.b16 %v3110
        %v3147 = vunpack.c.l.b16 %v3111
        %v3148 = vunpack.c.l.b16 %v3112
        %v3149 = vunpack.c.l.b16 %v3113
        %v3150 = vunpack.c.l.b16 %v3114
        %v3151 = vunpack.c.l.b16 %v3115
        %v3152 = vunpack.c.l.b16 %v3116
        %v3153 = vpack.c.b16 %v3138, %v3137
        %v3154 = vpack.c.b16 %v3140, %v3139
        %v3155 = vpack.c.b16 %v3142, %v3141
        %v3156 = vpack.c.b16 %v3144, %v3143
        %v3157 = vpack.c.b16 %v3146, %v3145
        %v3158 = vpack.c.b16 %v3148, %v3147
        %v3159 = vpack.c.b16 %v3150, %v3149
        %v3160 = vpack.c.b16 %v3152, %v3151
        %3169 = vmatprep.subr.bf16.mxu0 0
        %3170 = vmatpush1.bf16.msra.mxu0 %v3153
        %3171 = vmatprep.subr.bf16.mxu0 0
        %3172 = vmatpush1.bf16.msra.mxu0 %v3154
        %3173 = vmatprep.subr.bf16.mxu0 0
        %3174 = vmatpush1.bf16.msra.mxu0 %v3155
        %3175 = vmatprep.subr.bf16.mxu0 0
        %3176 = vmatpush1.bf16.msra.mxu0 %v3156
        %3177 = vmatprep.subr.bf16.mxu0 0
        %3178 = vmatpush1.bf16.msra.mxu0 %v3157
        %3179 = vmatprep.subr.bf16.mxu0 0
        %3180 = vmatpush1.bf16.msra.mxu0 %v3158
        %3181 = vmatprep.subr.bf16.mxu0 0
        %3182 = vmatpush1.bf16.msra.mxu0 %v3159
        %3183 = vmatprep.subr.bf16.mxu0 0
        %3184 = vmatpush1.bf16.msra.mxu0 %v3160
        %3185 = vmatprep.subr.bf16.mxu0 0
        %3186 = vmatpush1.bf16.msra.mxu0 0
        %3187 = vmatprep.subr.bf16.mxu0 0
        %3188 = vmatpush1.bf16.msra.mxu0 0
        %3189 = vmatprep.subr.bf16.mxu0 0
        %3190 = vmatpush1.bf16.msra.mxu0 0
        %3191 = vmatprep.subr.bf16.mxu0 0
        %3192 = vmatpush1.bf16.msra.mxu0 0
        %3193 = vmatprep.subr.bf16.mxu0 0
        %3194 = vmatpush1.bf16.msra.mxu0 0
        %3195 = vmatprep.subr.bf16.mxu0 0
        %3196 = vmatpush1.bf16.msra.mxu0 0
        %3197 = vmatprep.subr.bf16.mxu0 0
        %3198 = vmatpush1.bf16.msra.mxu0 0
        %3199 = vmatprep.subr.bf16.mxu0 0
        %3200 = vmatpush1.bf16.msra.mxu0 0
        %3201 = vmatprep.mubr.bf16.mxu0 0
        %3202 = vmatmul.mubr.bf16.gmra.mrb[0].mxu0 %v1947
        %v3203 = vpop.f32.mrb[0].mxu0
        %v3204 = vadd.f32 0.0, %v3203
        %v3205 = vpop.f32.mrb[0].mxu0
        %v3206 = vpop.f32.mrb[0].mxu0
        %v3207 = vadd.f32 0.0, %v3206
        %v3208 = vpop.f32.mrb[0].mxu0
        %3209 = vmatprep.mubr.bf16.mxu0 0
        %3210 = vmatmul.mubr.bf16.gmra.mrb[0].mxu0 %v1948
        %v3211 = vpop.f32.mrb[0].mxu0
        %v3212 = vadd.f32 0.0, %v3211
        %v3213 = vpop.f32.mrb[0].mxu0
        %v3214 = vpop.f32.mrb[0].mxu0
        %v3215 = vadd.f32 0.0, %v3214
        %v3216 = vpop.f32.mrb[0].mxu0
        %3217 = vmatprep.mubr.bf16.mxu0 0
        %3218 = vmatmul.mubr.bf16.gmra.mrb[0].mxu0 %v1949
        %v3219 = vpop.f32.mrb[0].mxu0
        %v3220 = vadd.f32 0.0, %v3219
        %v3221 = vpop.f32.mrb[0].mxu0
        %v3222 = vpop.f32.mrb[0].mxu0
        %v3223 = vadd.f32 0.0, %v3222
        %v3224 = vpop.f32.mrb[0].mxu0
        %3225 = vmatprep.mubr.bf16.mxu0 0
        %3226 = vmatmul.mubr.bf16.gmra.mrb[0].mxu0 %v1950
        %v3227 = vpop.f32.mrb[0].mxu0
        %v3228 = vadd.f32 0.0, %v3227
        %v3229 = vpop.f32.mrb[0].mxu0
        %v3230 = vpop.f32.mrb[0].mxu0
        %v3231 = vadd.f32 0.0, %v3230
        %v3232 = vpop.f32.mrb[0].mxu0
        %3233 = vmatprep.mubr.bf16.mxu0 0
        %3234 = vmatmul.mubr.bf16.gmra.mrb[0].mxu0 %v1951
        %v3235 = vpop.f32.mrb[0].mxu0
        %v3236 = vadd.f32 0.0, %v3235
        %v3237 = vpop.f32.mrb[0].mxu0
        %v3238 = vpop.f32.mrb[0].mxu0
        %v3239 = vadd.f32 0.0, %v3238
        %v3240 = vpop.f32.mrb[0].mxu0
        %3241 = vmatprep.mubr.bf16.mxu0 0
        %3242 = vmatmul.mubr.bf16.gmra.mrb[0].mxu0 %v1952
        %v3243 = vpop.f32.mrb[0].mxu0
        %v3244 = vadd.f32 0.0, %v3243
        %v3245 = vpop.f32.mrb[0].mxu0
        %v3246 = vpop.f32.mrb[0].mxu0
        %v3247 = vadd.f32 0.0, %v3246
        %v3248 = vpop.f32.mrb[0].mxu0
        %3249 = vmatprep.mubr.bf16.mxu0 0
        %3250 = vmatmul.mubr.bf16.gmra.mrb[0].mxu0 %v2539
        %v3251 = vpop.f32.mrb[0].mxu0
        %v3252 = vadd.f32 0.0, %v3251
        %v3253 = vpop.f32.mrb[0].mxu0
        %v3254 = vpop.f32.mrb[0].mxu0
        %v3255 = vadd.f32 0.0, %v3254
        %v3256 = vpop.f32.mrb[0].mxu0
        %3257 = vmatprep.mubr.bf16.mxu0 0
        %3258 = vmatmul.mubr.bf16.gmra.mrb[0].mxu0 %v3119
        %v3259 = vpop.f32.mrb[0].mxu0
        %v3260 = vadd.f32 0.0, %v3259
        %v3261 = vpop.f32.mrb[0].mxu0
        %v3262 = vpop.f32.mrb[0].mxu0
        %v3263 = vadd.f32 0.0, %v3262
        %v3264 = vpop.f32.mrb[0].mxu0
        %3265 = vdwg.mxu0
        %v3266 = vadd.f32 %v3076, %v3204
        %v3267 = vadd.f32 %v3077, %v3207
        %v3268 = vadd.f32 %v3078, %v3212
        %v3269 = vadd.f32 %v3079, %v3215
        %v3270 = vadd.f32 %v3080, %v3220
        %v3271 = vadd.f32 %v3081, %v3223
        %v3272 = vadd.f32 %v3082, %v3228
        %v3273 = vadd.f32 %v3083, %v3231
        %v3274 = vadd.f32 %v3084, %v3236
        %v3275 = vadd.f32 %v3085, %v3239
        %v3276 = vadd.f32 %v3086, %v3244
        %v3277 = vadd.f32 %v3087, %v3247
        %v3278 = vadd.f32 %v3088, %v3252
        %v3279 = vadd.f32 %v3089, %v3255
        %v3280 = vadd.f32 %v3090, %v3260
        %v3281 = vadd.f32 %v3091, %v3263
        %v3282 = vld [vmem:[#allocation2] sm:$0xff]
        %v3283 = vld [vmem:[#allocation2 + $0x8] sm:$0xff]
        %v3284 = vld [vmem:[#allocation2 + $0x10] sm:$0xff]
        %v3285 = vld [vmem:[#allocation2 + $0x18] sm:$0xff]
        %v3286 = vld [vmem:[#allocation2 + $0x20] sm:$0xff]
        %v3287 = vld [vmem:[#allocation2 + $0x28] sm:$0xff]
        %v3288 = vld [vmem:[#allocation2 + $0x30] sm:$0xff]
        %v3289 = vld [vmem:[#allocation2 + $0x38] sm:$0xff]
        %v3290 = vld [vmem:[#allocation2 + $0x40] sm:$0xff]
        %v3291 = vld [vmem:[#allocation2 + $0x48] sm:$0xff]
        %v3292 = vld [vmem:[#allocation2 + $0x50] sm:$0xff]
        %v3293 = vld [vmem:[#allocation2 + $0x58] sm:$0xff]
        %v3294 = vld [vmem:[#allocation2 + $0x60] sm:$0xff]
        %v3295 = vld [vmem:[#allocation2 + $0x68] sm:$0xff]
        %v3296 = vld [vmem:[#allocation2 + $0x70] sm:$0xff]
        %v3297 = vld [vmem:[#allocation2 + $0x78] sm:$0xff]
        %v3298 = vadd.f32 %v3282, %v3266
        %v3299 = vadd.f32 %v3283, %v3267
        %v3300 = vadd.f32 %v3284, %v3268
        %v3301 = vadd.f32 %v3285, %v3269
        %v3302 = vadd.f32 %v3286, %v3270
        %v3303 = vadd.f32 %v3287, %v3271
        %v3304 = vadd.f32 %v3288, %v3272
        %v3305 = vadd.f32 %v3289, %v3273
        %v3306 = vadd.f32 %v3290, %v3274
        %v3307 = vadd.f32 %v3291, %v3275
        %v3308 = vadd.f32 %v3292, %v3276
        %v3309 = vadd.f32 %v3293, %v3277
        %v3310 = vadd.f32 %v3294, %v3278
        %v3311 = vadd.f32 %v3295, %v3279
        %v3312 = vadd.f32 %v3296, %v3280
        %v3313 = vadd.f32 %v3297, %v3281
        %3314 = vst [vmem:[#allocation2] sm:$0xff] %v3298
        %3315 = vst [vmem:[#allocation2 + $0x8] sm:$0xff] %v3299
        %3316 = vst [vmem:[#allocation2 + $0x10] sm:$0xff] %v3300
        %3317 = vst [vmem:[#allocation2 + $0x18] sm:$0xff] %v3301
        %3318 = vst [vmem:[#allocation2 + $0x20] sm:$0xff] %v3302
        %3319 = vst [vmem:[#allocation2 + $0x28] sm:$0xff] %v3303
        %3320 = vst [vmem:[#allocation2 + $0x30] sm:$0xff] %v3304
        %3321 = vst [vmem:[#allocation2 + $0x38] sm:$0xff] %v3305
        %3322 = vst [vmem:[#allocation2 + $0x40] sm:$0xff] %v3306
        %3323 = vst [vmem:[#allocation2 + $0x48] sm:$0xff] %v3307
        %3324 = vst [vmem:[#allocation2 + $0x50] sm:$0xff] %v3308
        %3325 = vst [vmem:[#allocation2 + $0x58] sm:$0xff] %v3309
        %3326 = vst [vmem:[#allocation2 + $0x60] sm:$0xff] %v3310
        %3327 = vst [vmem:[#allocation2 + $0x68] sm:$0xff] %v3311
        %3328 = vst [vmem:[#allocation2 + $0x70] sm:$0xff] %v3312
        %3329 = vst [vmem:[#allocation2 + $0x78] sm:$0xff] %v3313
        %p3330 = scmp.eq.s32.totalorder %s27, 1
        // Predicated region
        $region171: #{conv_bnr_forward.1} parent=153 // pred_check
          %p3331 = pneg %p3330
        $region172: #{conv_bnr_forward.1} parent=153 // pred_check_branch
          %3333 = sbr.rel (%p3331) target = $region174
        $region173: #{conv_bnr_forward.1} parent=153 // pred_region
          %v3334 = vld [vmem:[#allocation2] sm:$0xff]
          %v3335 = vld [vmem:[#allocation2 + $0x8] sm:$0xff]
          %v3336 = vld [vmem:[#allocation2 + $0x10] sm:$0xff]
          %v3337 = vld [vmem:[#allocation2 + $0x18] sm:$0xff]
          %v3338 = vld [vmem:[#allocation2 + $0x20] sm:$0xff]
          %v3339 = vld [vmem:[#allocation2 + $0x28] sm:$0xff]
          %v3340 = vld [vmem:[#allocation2 + $0x30] sm:$0xff]
          %v3341 = vld [vmem:[#allocation2 + $0x38] sm:$0xff]
          %v3342 = vld [vmem:[#allocation2 + $0x40] sm:$0xff]
          %v3343 = vld [vmem:[#allocation2 + $0x48] sm:$0xff]
          %v3344 = vld [vmem:[#allocation2 + $0x50] sm:$0xff]
          %v3345 = vld [vmem:[#allocation2 + $0x58] sm:$0xff]
          %v3346 = vld [vmem:[#allocation2 + $0x60] sm:$0xff]
          %v3347 = vld [vmem:[#allocation2 + $0x68] sm:$0xff]
          %v3348 = vld [vmem:[#allocation2 + $0x70] sm:$0xff]
          %v3349 = vld [vmem:[#allocation2 + $0x78] sm:$0xff]
          %v3350 = vld [vmem:[%s1194] sm:$0x1]
          %v3352 = vlaneseq
          %v3353 = vshrl.u32 %v3352, 7
          %v3354 = vsub.s32 0, %v3353
          %v3355 = vrot.slane %v3350, %v3354
          %v3357 = vadd.f32 %v3334, %v3355
          %v3358 = vadd.f32 %v3335, %v3355
          %v3359 = vadd.f32 %v3336, %v3355
          %v3360 = vadd.f32 %v3337, %v3355
          %v3361 = vadd.f32 %v3338, %v3355
          %v3362 = vadd.f32 %v3339, %v3355
          %v3363 = vadd.f32 %v3340, %v3355
          %v3364 = vadd.f32 %v3341, %v3355
          %v3365 = vadd.f32 %v3342, %v3355
          %v3366 = vadd.f32 %v3343, %v3355
          %v3367 = vadd.f32 %v3344, %v3355
          %v3368 = vadd.f32 %v3345, %v3355
          %v3369 = vadd.f32 %v3346, %v3355
          %v3370 = vadd.f32 %v3347, %v3355
          %v3371 = vadd.f32 %v3348, %v3355
          %v3372 = vadd.f32 %v3349, %v3355
          %v3373 = vmax.f32 %v3357, 0.0
          %v3374 = vmax.f32 %v3358, 0.0
          %v3375 = vmax.f32 %v3359, 0.0
          %v3376 = vmax.f32 %v3360, 0.0
          %v3377 = vmax.f32 %v3361, 0.0
          %v3378 = vmax.f32 %v3362, 0.0
          %v3379 = vmax.f32 %v3363, 0.0
          %v3380 = vmax.f32 %v3364, 0.0
          %v3381 = vmax.f32 %v3365, 0.0
          %v3382 = vmax.f32 %v3366, 0.0
          %v3383 = vmax.f32 %v3367, 0.0
          %v3384 = vmax.f32 %v3368, 0.0
          %v3385 = vmax.f32 %v3369, 0.0
          %v3386 = vmax.f32 %v3370, 0.0
          %v3387 = vmax.f32 %v3371, 0.0
          %v3388 = vmax.f32 %v3372, 0.0
          %3389 = vst [vmem:[%s1181] sm:$0xff] %v3373
          %3390 = vst [vmem:[%s1181 + $0x8] sm:$0xff] %v3374
          %3391 = vst [vmem:[%s1181 + $0x10] sm:$0xff] %v3375
          %3392 = vst [vmem:[%s1181 + $0x18] sm:$0xff] %v3376
          %3393 = vst [vmem:[%s1181 + $0x20] sm:$0xff] %v3377
          %3394 = vst [vmem:[%s1181 + $0x28] sm:$0xff] %v3378
          %3395 = vst [vmem:[%s1181 + $0x30] sm:$0xff] %v3379
          %3396 = vst [vmem:[%s1181 + $0x38] sm:$0xff] %v3380
          %3397 = vst [vmem:[%s1181 + $0x40] sm:$0xff] %v3381
          %3398 = vst [vmem:[%s1181 + $0x48] sm:$0xff] %v3382
          %3399 = vst [vmem:[%s1181 + $0x50] sm:$0xff] %v3383
          %3400 = vst [vmem:[%s1181 + $0x58] sm:$0xff] %v3384
          %3401 = vst [vmem:[%s1181 + $0x60] sm:$0xff] %v3385
          %3402 = vst [vmem:[%s1181 + $0x68] sm:$0xff] %v3386
          %3403 = vst [vmem:[%s1181 + $0x70] sm:$0xff] %v3387
          %3404 = vst [vmem:[%s1181 + $0x78] sm:$0xff] %v3388
        $region174: #{conv_bnr_forward.1} parent=153 // pred_fallthru
          _
        %s3405 = sand.u32 %s174, 1
        %s3406 = scalar_lea.sflag [#allocation7], %s3405
        %s3407 = sand.u32 %s174, 1
        %s3408 = smul.addr %s3407, 128
        %s3409 = scalar_lea.vmem [#allocation6], %s3408
        // Predicated region
        $region175: #{conv_bnr_forward.1} parent=153 // pred_check
          %p3410 = pneg %p184
        $region176: #{conv_bnr_forward.1} parent=153 // pred_check_branch
          %3412 = sbr.rel (%p3410) target = $region178
        $region177: #{conv_bnr_forward.1} parent=153 // pred_region
          %s3413 = smul.u32 8, %s25
          %s3415 = ssub.s32 2048, 2048
          %3416 = vsyncadd %s3406, %s3415
          %s3417 = smul.addr %s3413, 2
          %s3418 = sadd.s32 %s26, %s3417
          %s3419 = smul.addr %s24, 32
          %s3420 = sadd.s32 %s3418, %s3419
          %s3421 = smul.addr %s3420, 128
          %s3422 = scalar_lea.hbm %s4, %s3421
          %s3423 = sshll.u32 %s3409, 4
          %s3424 = int_to_ptr.vmem [resolvable:$true] %s3423
          %3429 = dma.vmem_to_hbm [thread:$0]  %s3424, 2048, %s3422, %s3406, 128, 128, 8
        $region178: #{conv_bnr_forward.1} parent=153 // pred_fallthru
          _
      $region154: #{conv_bnr_forward.1} parent=5 // pred_fallthru
        _
      %p3430 = scmp.le.s32.totalorder 2, %s13
      // Predicated region
      $region179: #{conv_bnr_forward.1} parent=5 // pred_check
        %p3431 = pneg %p3430
      $region180: #{conv_bnr_forward.1} parent=5 // pred_check_branch
        %3433 = sbr.rel (%p3431) target = $region182
      $region181: #{conv_bnr_forward.1} parent=5 // pred_region
        %s3434 = ssub.s32 %s13, 2
        // Predicated region
        $region183: #{conv_bnr_forward.1} parent=181 // pred_check
          %p3435 = pneg %p190
        $region184: #{conv_bnr_forward.1} parent=181 // pred_check_branch
          %3437 = sbr.rel (%p3435) target = $region186
        $region185: #{conv_bnr_forward.1} parent=181 // pred_region
          %s3438 = sand.u32 %s175, 1
          %s3439 = scalar_lea.sflag [#allocation7], %s3438
          %s3440 = sand.u32 %s175, 1
          %s3441 = smul.addr %s3440, 128
          %s3442 = scalar_lea.vmem [#allocation6], %s3441
          %3443 = dma.done %s3439, 2048
        $region186: #{conv_bnr_forward.1} parent=181 // pred_fallthru
          _
      $region182: #{conv_bnr_forward.1} parent=5 // pred_fallthru
        _
    $region6: #{conv_bnr_forward.1} parent=1 // loop_footer
      %s17 = sadd.s32 1, %s13
    $region7: #{conv_bnr_forward.1} parent=1 // loop_footer_branch
      %12 = sbr.rel target = $region3
    $region8: #{conv_bnr_forward.1} parent=1 // loop_exit
      _
    %3444 = vsyncpa [#allocation7], 1
    %s3445 = scalar_lea.sflag [#allocation7], 1
    %3446 = vsyncpa %s3445, 1

</llo_original>
